<compile_context>
chip_gen: v6e
topology: v6e:2x2x1
jax: 0.10.0
libtpu: 0.0.40
codegen_flags: <defaults>
</compile_context>

<pallas_src>
import functools
import math

import numpy as np
import jax
import jax.numpy as jnp
from jax import lax
from jax.experimental import pallas as pl
from jax.experimental.pallas import tpu as pltpu


def _round_up(x, m):
    return ((x + m - 1) // m) * m


def _disc_block_kernel(x_ref, w1_ref, b1_ref, w2_ref, b2_ref, mask_ref, pool_ref,
                       out_ref, pad_ref, acc_ref, *, K, Wp, NW, OFF0, neg_slope,
                       compute_dtype):
    f32 = jnp.float32

    def maybe_cast(v):
        return v if compute_dtype is None else v.astype(compute_dtype)

    # Re-initialize per-step scratch: pad_ref's margins must be zero (they are
    # conv2's spatial zero padding) and grid steps must stay independent so the
    # batch axis can be "parallel" (megacore on v7x).
    pad_ref[...] = jnp.zeros_like(pad_ref)
    acc_ref[...] = jnp.zeros_like(acc_ref)

    # ---- conv1: 9 shifted-slice matmuls accumulated (f32) directly into the
    #      interior window of pad_ref (which doubles as conv2's padded input).
    for ky in range(K):
        for kx in range(K):
            t = ky * K + kx
            off = ky * Wp + kx
            xs = maybe_cast(x_ref[0, :, off:off + NW])        # (IC, NW)
            wt = maybe_cast(w1_ref[t])                        # (IC, IC)
            pad_ref[:, OFF0:OFF0 + NW] += jnp.dot(
                wt, xs, preferred_element_type=f32)

    # bias + LeakyReLU(0.2), then zero the junk boundary columns so the scratch
    # becomes a correctly zero-padded input for conv2.
    h1 = pad_ref[:, OFF0:OFF0 + NW] + b1_ref[...]             # (IC, NW) + (IC, 1)
    h1 = jnp.where(h1 >= 0, h1, neg_slope * h1)
    pad_ref[:, OFF0:OFF0 + NW] = h1 * mask_ref[...]           # (1, NW) mask

    # ---- conv2: same wide-row trick, reading shifted slices of pad_ref ----
    base = OFF0 - Wp - 1
    for ky in range(K):
        for kx in range(K):
            t = ky * K + kx
            off = base + ky * Wp + kx
            xs = maybe_cast(pad_ref[:, off:off + NW])         # (IC, NW)
            wt = maybe_cast(w2_ref[t])                        # (OC, IC)
            acc_ref[...] += jnp.dot(wt, xs, preferred_element_type=f32)

    h2 = acc_ref[...] + b2_ref[...]                           # (OC, NW)
    h2 = jnp.where(h2 >= 0, h2, neg_slope * h2)

    # ---- fused 2x2 average pool (and junk-column drop): one small matmul ----
    out_ref[0] = jnp.dot(h2, pool_ref[...],
                         preferred_element_type=f32).astype(out_ref.dtype)


class DiscriminatorBlockPallas:
    """Pallas/TPU implementation of the StyleGAN-XL DiscriminatorBlock forward."""

    def __init__(self, in_channels, out_channels, downsample=True, *, key,
                 neg_slope=0.2, compute_dtype=None):
        self.in_channels = in_channels
        self.out_channels = out_channels
        self.downsample = downsample
        self.neg_slope = neg_slope
        self.kernel_size = 3
        self.compute_dtype = compute_dtype
        # EqualizedConv2d params (PyTorch init: randn weights, zero bias).
        k1, k2 = jax.random.split(key)
        self.conv1_weight = jax.random.normal(
            k1, (in_channels, in_channels, 3, 3), jnp.float32)
        self.conv1_bias = jnp.zeros((in_channels,), jnp.float32)
        self.conv2_weight = jax.random.normal(
            k2, (out_channels, in_channels, 3, 3), jnp.float32)
        self.conv2_bias = jnp.zeros((out_channels,), jnp.float32)
        self.scale1 = 1.0 / math.sqrt(in_channels * 3 * 3)
        self.scale2 = 1.0 / math.sqrt(in_channels * 3 * 3)

    def __call__(self, x):
        B, IC, H, W = x.shape
        assert IC == self.in_channels
        OC, K = self.out_channels, self.kernel_size
        KK = K * K
        Hp, Wp = H + 2, W + 2
        NW = H * Wp                                  # "wide" row-flattened conv width
        XLEN = _round_up(Hp * Wp + 2, 128)           # flattened padded-input length
        OFF0 = _round_up(Wp + 1, 128)                # lane-aligned scratch write offset
        SLEN = _round_up(OFF0 + NW + Wp + 1, 128)    # conv2 padded-input scratch length

        # ---------- plain-JAX glue: pad + flatten input, fold scales ----------
        x_pad = jnp.pad(x, ((0, 0), (0, 0), (1, 1), (1, 1)))
        x_flat = jnp.pad(x_pad.reshape(B, IC, Hp * Wp),
                         ((0, 0), (0, 0), (0, XLEN - Hp * Wp)))
        # per-tap weight matrices with the equalized-lr scale folded in: (KK, Cout, Cin)
        w1 = jnp.transpose(self.conv1_weight * self.scale1,
                           (2, 3, 0, 1)).reshape(KK, IC, IC)
        w2 = jnp.transpose(self.conv2_weight * self.scale2,
                           (2, 3, 0, 1)).reshape(KK, OC, IC)
        b1 = self.conv1_bias.reshape(IC, 1)
        b2 = self.conv2_bias.reshape(OC, 1)

        # mask of real (non-junk) columns in the wide row layout
        col = np.arange(NW) % Wp
        row = np.arange(NW) // Wp
        valid = col < W
        mask = valid.astype(np.float32).reshape(1, NW)

        # pooling / column-selection matrix (drops junk columns; averages 2x2)
        # TODO(synk): for very large H*W, switch to a halo'd row-tiled grid axis
        # (per-tile pooling matrix) so this matrix and the VMEM buffers stay bounded.
        if self.downsample:
            assert H % 2 == 0 and W % 2 == 0, "avg_pool2d(2) needs even H, W"
            Ho, Wo = H // 2, W // 2
            NOUT = Ho * Wo
            P = np.zeros((NW, NOUT), np.float32)
            P[np.arange(NW)[valid],
              (row[valid] // 2) * Wo + (col[valid] // 2)] = 0.25
        else:
            Ho, Wo = H, W
            NOUT = H * W
            P = np.zeros((NW, NOUT), np.float32)
            P[np.arange(NW)[valid], row[valid] * W + col[valid]] = 1.0

        mask = jnp.asarray(mask)
        P = jnp.asarray(P)

        kernel = functools.partial(
            _disc_block_kernel, K=K, Wp=Wp, NW=NW, OFF0=OFF0,
            neg_slope=self.neg_slope, compute_dtype=self.compute_dtype)

        out = pl.pallas_call(
            kernel,
            out_shape=jax.ShapeDtypeStruct((B, OC, NOUT), x.dtype),
            grid_spec=pltpu.PrefetchScalarGridSpec(
                num_scalar_prefetch=0,
                grid=(B,),
                in_specs=[
                    pl.BlockSpec((1, IC, XLEN), lambda b: (b, 0, 0)),   # x (padded, flat)
                    pl.BlockSpec((KK, IC, IC), lambda b: (0, 0, 0)),    # conv1 tap weights
                    pl.BlockSpec((IC, 1), lambda b: (0, 0)),            # conv1 bias
                    pl.BlockSpec((KK, OC, IC), lambda b: (0, 0, 0)),    # conv2 tap weights
                    pl.BlockSpec((OC, 1), lambda b: (0, 0)),            # conv2 bias
                    pl.BlockSpec((1, NW), lambda b: (0, 0)),            # junk-column mask
                    pl.BlockSpec((NW, NOUT), lambda b: (0, 0)),         # pool/select matrix
                ],
                out_specs=pl.BlockSpec((1, OC, NOUT), lambda b: (b, 0, 0)),
                scratch_shapes=[
                    pltpu.VMEM((IC, SLEN), jnp.float32),   # conv1 acc / conv2 padded input
                    pltpu.VMEM((OC, NW), jnp.float32),     # conv2 accumulator
                ],
            ),
            compiler_params=pltpu.CompilerParams(
                dimension_semantics=("parallel",)),
        )(x_flat, w1, b1, w2, b2, mask, P)

        return out.reshape(B, OC, Ho, Wo)


def reference_forward(m, x):
    """Pure-JAX reference mirroring the PyTorch DiscriminatorBlock forward."""
    def eq_conv(h, w, b, scale):
        out = lax.conv_general_dilated(
            h, w * scale, window_strides=(1, 1), padding=[(1, 1), (1, 1)],
            dimension_numbers=('NCHW', 'OIHW', 'NCHW'),
            precision=lax.Precision.HIGHEST)
        return out + b.reshape(1, -1, 1, 1)

    out = eq_conv(x, m.conv1_weight, m.conv1_bias, m.scale1)
    out = jnp.where(out >= 0, out, m.neg_slope * out)
    out = eq_conv(out, m.conv2_weight, m.conv2_bias, m.scale2)
    out = jnp.where(out >= 0, out, m.neg_slope * out)
    if m.downsample:
        B, C, H, W = out.shape
        out = out.reshape(B, C, H // 2, 2, W // 2, 2).mean(axis=(3, 5))
    return out


if __name__ == "__main__":
    key = jax.random.PRNGKey(0)
    kparam, kx, kb1, kb2 = jax.random.split(key, 4)

    B, IC, OC, H, W = 2, 4, 8, 16, 16
    block = DiscriminatorBlockPallas(IC, OC, downsample=True, key=kparam)
    # Non-zero biases to exercise the bias path (PyTorch init is zeros).
    block.conv1_bias = 0.1 * jax.random.normal(kb1, (IC,), jnp.float32)
    block.conv2_bias = 0.1 * jax.random.normal(kb2, (OC,), jnp.float32)

    x = jax.random.normal(kx, (B, IC, H, W), jnp.float32)

    out = block(x)
    out = jax.block_until_ready(out)

    ref = reference_forward(block, x)
    assert out.shape == (B, OC, H // 2, W // 2), out.shape
    max_err = float(jnp.max(jnp.abs(out - ref)))
    assert jnp.allclose(out, ref, rtol=2e-3, atol=2e-3), f"max abs err={max_err}"

    print("KERNEL_OK")
</pallas_src>

<mosaic_0001>
module attributes {stable_mosaic.version = 11 : i64} {
  func.func @_disc_block_kernel(%arg0: i32, %arg1: memref<1x4x384xf32, #tpu.memory_space<vmem>>, %arg2: memref<9x4x4xf32, #tpu.memory_space<vmem>>, %arg3: memref<4x1xf32, #tpu.memory_space<vmem>>, %arg4: memref<9x8x4xf32, #tpu.memory_space<vmem>>, %arg5: memref<8x1xf32, #tpu.memory_space<vmem>>, %arg6: memref<1x288xf32, #tpu.memory_space<vmem>>, %arg7: memref<288x64xf32, #tpu.memory_space<vmem>>, %arg8: memref<1x8x64xf32, #tpu.memory_space<vmem>>, %arg9: memref<4x512xf32, #tpu.memory_space<vmem>>, %arg10: memref<8x288xf32, #tpu.memory_space<vmem>>) attributes {dimension_semantics = [#tpu.dimension_semantics<parallel>], iteration_bounds = array<i64: 2>, scalar_prefetch = 0 : i64, scratch_operands = 2 : i64, tpu.core_type = #tpu.core_type<tc>, window_params = [{transform_indices = @transform_0, window_bounds = array<i64: 1, 4, 384>}, {pipeline_mode = #tpu.pipeline_mode<synchronous>, transform_indices = @transform_1, window_bounds = array<i64: 9, 4, 4>}, {pipeline_mode = #tpu.pipeline_mode<synchronous>, transform_indices = @transform_2, window_bounds = array<i64: 4, 1>}, {pipeline_mode = #tpu.pipeline_mode<synchronous>, transform_indices = @transform_3, window_bounds = array<i64: 9, 8, 4>}, {pipeline_mode = #tpu.pipeline_mode<synchronous>, transform_indices = @transform_4, window_bounds = array<i64: 8, 1>}, {pipeline_mode = #tpu.pipeline_mode<synchronous>, transform_indices = @transform_5, window_bounds = array<i64: 1, 288>}, {pipeline_mode = #tpu.pipeline_mode<synchronous>, transform_indices = @transform_6, window_bounds = array<i64: 288, 64>}, {transform_indices = @transform_7, window_bounds = array<i64: 1, 8, 64>}]} {
    %cst = arith.constant 0.000000e+00 : f32
    %0 = vector.broadcast %cst : f32 to vector<4x512xf32>
    %c0 = arith.constant 0 : index
    %c0_0 = arith.constant 0 : index
    %1 = vector.load %arg9[%c0, %c0_0] : memref<4x512xf32, #tpu.memory_space<vmem>>, vector<4x512xf32>
    tpu.vector_store %arg9[%c0, %c0_0], %0 {strides = array<i32>} : memref<4x512xf32, #tpu.memory_space<vmem>>, vector<4x512xf32>,
    %cst_1 = arith.constant 0.000000e+00 : f32
    %2 = vector.broadcast %cst_1 : f32 to vector<8x288xf32>
    %c0_2 = arith.constant 0 : index
    %c0_3 = arith.constant 0 : index
    %3 = vector.load %arg10[%c0_2, %c0_3] : memref<8x288xf32, #tpu.memory_space<vmem>>, vector<8x288xf32>
    tpu.vector_store %arg10[%c0_2, %c0_3], %2 {strides = array<i32>} : memref<8x288xf32, #tpu.memory_space<vmem>>, vector<8x288xf32>,
    %c0_4 = arith.constant 0 : index
    %c0_5 = arith.constant 0 : index
    %c0_6 = arith.constant 0 : index
    %4 = vector.load %arg1[%c0_4, %c0_5, %c0_6] : memref<1x4x384xf32, #tpu.memory_space<vmem>>, vector<1x4x288xf32>
    %5 = vector.shape_cast %4 : vector<1x4x288xf32> to vector<4x288xf32>
    %c0_7 = arith.constant 0 : index
    %c0_8 = arith.constant 0 : index
    %c0_9 = arith.constant 0 : index
    %6 = vector.load %arg2[%c0_7, %c0_8, %c0_9] : memref<9x4x4xf32, #tpu.memory_space<vmem>>, vector<1x4x4xf32>
    %7 = vector.shape_cast %6 : vector<1x4x4xf32> to vector<4x4xf32>
    %c0_10 = arith.constant 0 : index
    %c128 = arith.constant 128 : index
    %8 = vector.load %arg9[%c0_10, %c128] : memref<4x512xf32, #tpu.memory_space<vmem>>, vector<4x288xf32>
    %cst_11 = arith.constant dense<0.000000e+00> : vector<4x288xf32>
    %9 = tpu.matmul %7, %5, %cst_11 {dimension_numbers = #tpu.dot_dimension_numbers<[1], [0], [0], [1], [0, 0, 1, 1], [], []>} : vector<4x4xf32>, vector<4x288xf32>, vector<4x288xf32> -> vector<4x288xf32>
    %10 = arith.addf %8, %9 : vector<4x288xf32>
    %c0_12 = arith.constant 0 : index
    %c128_13 = arith.constant 128 : index
    %11 = vector.load %arg9[%c0_12, %c128_13] : memref<4x512xf32, #tpu.memory_space<vmem>>, vector<4x288xf32>
    tpu.vector_store %arg9[%c0_12, %c128_13], %10 {strides = array<i32>} : memref<4x512xf32, #tpu.memory_space<vmem>>, vector<4x288xf32>,
    %c0_14 = arith.constant 0 : index
    %c0_15 = arith.constant 0 : index
    %c1 = arith.constant 1 : index
    %12 = vector.load %arg1[%c0_14, %c0_15, %c1] : memref<1x4x384xf32, #tpu.memory_space<vmem>>, vector<1x4x288xf32>
    %13 = vector.shape_cast %12 : vector<1x4x288xf32> to vector<4x288xf32>
    %c1_16 = arith.constant 1 : index
    %c0_17 = arith.constant 0 : index
    %c0_18 = arith.constant 0 : index
    %14 = vector.load %arg2[%c1_16, %c0_17, %c0_18] : memref<9x4x4xf32, #tpu.memory_space<vmem>>, vector<1x4x4xf32>
    %15 = vector.shape_cast %14 : vector<1x4x4xf32> to vector<4x4xf32>
    %c0_19 = arith.constant 0 : index
    %c128_20 = arith.constant 128 : index
    %16 = vector.load %arg9[%c0_19, %c128_20] : memref<4x512xf32, #tpu.memory_space<vmem>>, vector<4x288xf32>
    %cst_21 = arith.constant dense<0.000000e+00> : vector<4x288xf32>
    %17 = tpu.matmul %15, %13, %cst_21 {dimension_numbers = #tpu.dot_dimension_numbers<[1], [0], [0], [1], [0, 0, 1, 1], [], []>} : vector<4x4xf32>, vector<4x288xf32>, vector<4x288xf32> -> vector<4x288xf32>
    %18 = arith.addf %16, %17 : vector<4x288xf32>
    %c0_22 = arith.constant 0 : index
    %c128_23 = arith.constant 128 : index
    %19 = vector.load %arg9[%c0_22, %c128_23] : memref<4x512xf32, #tpu.memory_space<vmem>>, vector<4x288xf32>
    tpu.vector_store %arg9[%c0_22, %c128_23], %18 {strides = array<i32>} : memref<4x512xf32, #tpu.memory_space<vmem>>, vector<4x288xf32>,
    %c0_24 = arith.constant 0 : index
    %c0_25 = arith.constant 0 : index
    %c2 = arith.constant 2 : index
    %20 = vector.load %arg1[%c0_24, %c0_25, %c2] : memref<1x4x384xf32, #tpu.memory_space<vmem>>, vector<1x4x288xf32>
    %21 = vector.shape_cast %20 : vector<1x4x288xf32> to vector<4x288xf32>
    %c2_26 = arith.constant 2 : index
    %c0_27 = arith.constant 0 : index
    %c0_28 = arith.constant 0 : index
    %22 = vector.load %arg2[%c2_26, %c0_27, %c0_28] : memref<9x4x4xf32, #tpu.memory_space<vmem>>, vector<1x4x4xf32>
    %23 = vector.shape_cast %22 : vector<1x4x4xf32> to vector<4x4xf32>
    %c0_29 = arith.constant 0 : index
    %c128_30 = arith.constant 128 : index
    %24 = vector.load %arg9[%c0_29, %c128_30] : memref<4x512xf32, #tpu.memory_space<vmem>>, vector<4x288xf32>
    %cst_31 = arith.constant dense<0.000000e+00> : vector<4x288xf32>
    %25 = tpu.matmul %23, %21, %cst_31 {dimension_numbers = #tpu.dot_dimension_numbers<[1], [0], [0], [1], [0, 0, 1, 1], [], []>} : vector<4x4xf32>, vector<4x288xf32>, vector<4x288xf32> -> vector<4x288xf32>
    %26 = arith.addf %24, %25 : vector<4x288xf32>
    %c0_32 = arith.constant 0 : index
    %c128_33 = arith.constant 128 : index
    %27 = vector.load %arg9[%c0_32, %c128_33] : memref<4x512xf32, #tpu.memory_space<vmem>>, vector<4x288xf32>
    tpu.vector_store %arg9[%c0_32, %c128_33], %26 {strides = array<i32>} : memref<4x512xf32, #tpu.memory_space<vmem>>, vector<4x288xf32>,
    %c0_34 = arith.constant 0 : index
    %c0_35 = arith.constant 0 : index
    %c18 = arith.constant 18 : index
    %28 = vector.load %arg1[%c0_34, %c0_35, %c18] : memref<1x4x384xf32, #tpu.memory_space<vmem>>, vector<1x4x288xf32>
    %29 = vector.shape_cast %28 : vector<1x4x288xf32> to vector<4x288xf32>
    %c3 = arith.constant 3 : index
    %c0_36 = arith.constant 0 : index
    %c0_37 = arith.constant 0 : index
    %30 = vector.load %arg2[%c3, %c0_36, %c0_37] : memref<9x4x4xf32, #tpu.memory_space<vmem>>, vector<1x4x4xf32>
    %31 = vector.shape_cast %30 : vector<1x4x4xf32> to vector<4x4xf32>
    %c0_38 = arith.constant 0 : index
    %c128_39 = arith.constant 128 : index
    %32 = vector.load %arg9[%c0_38, %c128_39] : memref<4x512xf32, #tpu.memory_space<vmem>>, vector<4x288xf32>
    %cst_40 = arith.constant dense<0.000000e+00> : vector<4x288xf32>
    %33 = tpu.matmul %31, %29, %cst_40 {dimension_numbers = #tpu.dot_dimension_numbers<[1], [0], [0], [1], [0, 0, 1, 1], [], []>} : vector<4x4xf32>, vector<4x288xf32>, vector<4x288xf32> -> vector<4x288xf32>
    %34 = arith.addf %32, %33 : vector<4x288xf32>
    %c0_41 = arith.constant 0 : index
    %c128_42 = arith.constant 128 : index
    %35 = vector.load %arg9[%c0_41, %c128_42] : memref<4x512xf32, #tpu.memory_space<vmem>>, vector<4x288xf32>
    tpu.vector_store %arg9[%c0_41, %c128_42], %34 {strides = array<i32>} : memref<4x512xf32, #tpu.memory_space<vmem>>, vector<4x288xf32>,
    %c0_43 = arith.constant 0 : index
    %c0_44 = arith.constant 0 : index
    %c19 = arith.constant 19 : index
    %36 = vector.load %arg1[%c0_43, %c0_44, %c19] : memref<1x4x384xf32, #tpu.memory_space<vmem>>, vector<1x4x288xf32>
    %37 = vector.shape_cast %36 : vector<1x4x288xf32> to vector<4x288xf32>
    %c4 = arith.constant 4 : index
    %c0_45 = arith.constant 0 : index
    %c0_46 = arith.constant 0 : index
    %38 = vector.load %arg2[%c4, %c0_45, %c0_46] : memref<9x4x4xf32, #tpu.memory_space<vmem>>, vector<1x4x4xf32>
    %39 = vector.shape_cast %38 : vector<1x4x4xf32> to vector<4x4xf32>
    %c0_47 = arith.constant 0 : index
    %c128_48 = arith.constant 128 : index
    %40 = vector.load %arg9[%c0_47, %c128_48] : memref<4x512xf32, #tpu.memory_space<vmem>>, vector<4x288xf32>
    %cst_49 = arith.constant dense<0.000000e+00> : vector<4x288xf32>
    %41 = tpu.matmul %39, %37, %cst_49 {dimension_numbers = #tpu.dot_dimension_numbers<[1], [0], [0], [1], [0, 0, 1, 1], [], []>} : vector<4x4xf32>, vector<4x288xf32>, vector<4x288xf32> -> vector<4x288xf32>
    %42 = arith.addf %40, %41 : vector<4x288xf32>
    %c0_50 = arith.constant 0 : index
    %c128_51 = arith.constant 128 : index
    %43 = vector.load %arg9[%c0_50, %c128_51] : memref<4x512xf32, #tpu.memory_space<vmem>>, vector<4x288xf32>
    tpu.vector_store %arg9[%c0_50, %c128_51], %42 {strides = array<i32>} : memref<4x512xf32, #tpu.memory_space<vmem>>, vector<4x288xf32>,
    %c0_52 = arith.constant 0 : index
    %c0_53 = arith.constant 0 : index
    %c20 = arith.constant 20 : index
    %44 = vector.load %arg1[%c0_52, %c0_53, %c20] : memref<1x4x384xf32, #tpu.memory_space<vmem>>, vector<1x4x288xf32>
    %45 = vector.shape_cast %44 : vector<1x4x288xf32> to vector<4x288xf32>
    %c5 = arith.constant 5 : index
    %c0_54 = arith.constant 0 : index
    %c0_55 = arith.constant 0 : index
    %46 = vector.load %arg2[%c5, %c0_54, %c0_55] : memref<9x4x4xf32, #tpu.memory_space<vmem>>, vector<1x4x4xf32>
    %47 = vector.shape_cast %46 : vector<1x4x4xf32> to vector<4x4xf32>
    %c0_56 = arith.constant 0 : index
    %c128_57 = arith.constant 128 : index
    %48 = vector.load %arg9[%c0_56, %c128_57] : memref<4x512xf32, #tpu.memory_space<vmem>>, vector<4x288xf32>
    %cst_58 = arith.constant dense<0.000000e+00> : vector<4x288xf32>
    %49 = tpu.matmul %47, %45, %cst_58 {dimension_numbers = #tpu.dot_dimension_numbers<[1], [0], [0], [1], [0, 0, 1, 1], [], []>} : vector<4x4xf32>, vector<4x288xf32>, vector<4x288xf32> -> vector<4x288xf32>
    %50 = arith.addf %48, %49 : vector<4x288xf32>
    %c0_59 = arith.constant 0 : index
    %c128_60 = arith.constant 128 : index
    %51 = vector.load %arg9[%c0_59, %c128_60] : memref<4x512xf32, #tpu.memory_space<vmem>>, vector<4x288xf32>
    tpu.vector_store %arg9[%c0_59, %c128_60], %50 {strides = array<i32>} : memref<4x512xf32, #tpu.memory_space<vmem>>, vector<4x288xf32>,
    %c0_61 = arith.constant 0 : index
    %c0_62 = arith.constant 0 : index
    %c36 = arith.constant 36 : index
    %52 = vector.load %arg1[%c0_61, %c0_62, %c36] : memref<1x4x384xf32, #tpu.memory_space<vmem>>, vector<1x4x288xf32>
    %53 = vector.shape_cast %52 : vector<1x4x288xf32> to vector<4x288xf32>
    %c6 = arith.constant 6 : index
    %c0_63 = arith.constant 0 : index
    %c0_64 = arith.constant 0 : index
    %54 = vector.load %arg2[%c6, %c0_63, %c0_64] : memref<9x4x4xf32, #tpu.memory_space<vmem>>, vector<1x4x4xf32>
    %55 = vector.shape_cast %54 : vector<1x4x4xf32> to vector<4x4xf32>
    %c0_65 = arith.constant 0 : index
    %c128_66 = arith.constant 128 : index
    %56 = vector.load %arg9[%c0_65, %c128_66] : memref<4x512xf32, #tpu.memory_space<vmem>>, vector<4x288xf32>
    %cst_67 = arith.constant dense<0.000000e+00> : vector<4x288xf32>
    %57 = tpu.matmul %55, %53, %cst_67 {dimension_numbers = #tpu.dot_dimension_numbers<[1], [0], [0], [1], [0, 0, 1, 1], [], []>} : vector<4x4xf32>, vector<4x288xf32>, vector<4x288xf32> -> vector<4x288xf32>
    %58 = arith.addf %56, %57 : vector<4x288xf32>
    %c0_68 = arith.constant 0 : index
    %c128_69 = arith.constant 128 : index
    %59 = vector.load %arg9[%c0_68, %c128_69] : memref<4x512xf32, #tpu.memory_space<vmem>>, vector<4x288xf32>
    tpu.vector_store %arg9[%c0_68, %c128_69], %58 {strides = array<i32>} : memref<4x512xf32, #tpu.memory_space<vmem>>, vector<4x288xf32>,
    %c0_70 = arith.constant 0 : index
    %c0_71 = arith.constant 0 : index
    %c37 = arith.constant 37 : index
    %60 = vector.load %arg1[%c0_70, %c0_71, %c37] : memref<1x4x384xf32, #tpu.memory_space<vmem>>, vector<1x4x288xf32>
    %61 = vector.shape_cast %60 : vector<1x4x288xf32> to vector<4x288xf32>
    %c7 = arith.constant 7 : index
    %c0_72 = arith.constant 0 : index
    %c0_73 = arith.constant 0 : index
    %62 = vector.load %arg2[%c7, %c0_72, %c0_73] : memref<9x4x4xf32, #tpu.memory_space<vmem>>, vector<1x4x4xf32>
    %63 = vector.shape_cast %62 : vector<1x4x4xf32> to vector<4x4xf32>
    %c0_74 = arith.constant 0 : index
    %c128_75 = arith.constant 128 : index
    %64 = vector.load %arg9[%c0_74, %c128_75] : memref<4x512xf32, #tpu.memory_space<vmem>>, vector<4x288xf32>
    %cst_76 = arith.constant dense<0.000000e+00> : vector<4x288xf32>
    %65 = tpu.matmul %63, %61, %cst_76 {dimension_numbers = #tpu.dot_dimension_numbers<[1], [0], [0], [1], [0, 0, 1, 1], [], []>} : vector<4x4xf32>, vector<4x288xf32>, vector<4x288xf32> -> vector<4x288xf32>
    %66 = arith.addf %64, %65 : vector<4x288xf32>
    %c0_77 = arith.constant 0 : index
    %c128_78 = arith.constant 128 : index
    %67 = vector.load %arg9[%c0_77, %c128_78] : memref<4x512xf32, #tpu.memory_space<vmem>>, vector<4x288xf32>
    tpu.vector_store %arg9[%c0_77, %c128_78], %66 {strides = array<i32>} : memref<4x512xf32, #tpu.memory_space<vmem>>, vector<4x288xf32>,
    %c0_79 = arith.constant 0 : index
    %c0_80 = arith.constant 0 : index
    %c38 = arith.constant 38 : index
    %68 = vector.load %arg1[%c0_79, %c0_80, %c38] : memref<1x4x384xf32, #tpu.memory_space<vmem>>, vector<1x4x288xf32>
    %69 = vector.shape_cast %68 : vector<1x4x288xf32> to vector<4x288xf32>
    %c8 = arith.constant 8 : index
    %c0_81 = arith.constant 0 : index
    %c0_82 = arith.constant 0 : index
    %70 = vector.load %arg2[%c8, %c0_81, %c0_82] : memref<9x4x4xf32, #tpu.memory_space<vmem>>, vector<1x4x4xf32>
    %71 = vector.shape_cast %70 : vector<1x4x4xf32> to vector<4x4xf32>
    %c0_83 = arith.constant 0 : index
    %c128_84 = arith.constant 128 : index
    %72 = vector.load %arg9[%c0_83, %c128_84] : memref<4x512xf32, #tpu.memory_space<vmem>>, vector<4x288xf32>
    %cst_85 = arith.constant dense<0.000000e+00> : vector<4x288xf32>
    %73 = tpu.matmul %71, %69, %cst_85 {dimension_numbers = #tpu.dot_dimension_numbers<[1], [0], [0], [1], [0, 0, 1, 1], [], []>} : vector<4x4xf32>, vector<4x288xf32>, vector<4x288xf32> -> vector<4x288xf32>
    %74 = arith.addf %72, %73 : vector<4x288xf32>
    %c0_86 = arith.constant 0 : index
    %c128_87 = arith.constant 128 : index
    %75 = vector.load %arg9[%c0_86, %c128_87] : memref<4x512xf32, #tpu.memory_space<vmem>>, vector<4x288xf32>
    tpu.vector_store %arg9[%c0_86, %c128_87], %74 {strides = array<i32>} : memref<4x512xf32, #tpu.memory_space<vmem>>, vector<4x288xf32>,
    %c0_88 = arith.constant 0 : index
    %c128_89 = arith.constant 128 : index
    %76 = vector.load %arg9[%c0_88, %c128_89] : memref<4x512xf32, #tpu.memory_space<vmem>>, vector<4x288xf32>
    %c0_90 = arith.constant 0 : index
    %c0_91 = arith.constant 0 : index
    %77 = vector.load %arg3[%c0_90, %c0_91] : memref<4x1xf32, #tpu.memory_space<vmem>>, vector<4x1xf32>
    %78 = vector.broadcast %77 : vector<4x1xf32> to vector<4x288xf32>
    %79 = arith.addf %76, %78 : vector<4x288xf32>
    %cst_92 = arith.constant 0.000000e+00 : f32
    %80 = vector.broadcast %cst_92 : f32 to vector<4x288xf32>
    %81 = arith.cmpf oge, %79, %80 : vector<4x288xf32>
    %cst_93 = arith.constant 2.000000e-01 : f32
    %82 = vector.broadcast %cst_93 : f32 to vector<4x288xf32>
    %83 = arith.mulf %82, %79 : vector<4x288xf32>
    %84 = arith.select %81, %79, %83 : vector<4x288xi1>, vector<4x288xf32>
    %c0_94 = arith.constant 0 : index
    %c0_95 = arith.constant 0 : index
    %85 = vector.load %arg6[%c0_94, %c0_95] : memref<1x288xf32, #tpu.memory_space<vmem>>, vector<1x288xf32>
    %86 = vector.broadcast %85 : vector<1x288xf32> to vector<4x288xf32>
    %87 = arith.mulf %84, %86 : vector<4x288xf32>
    %c0_96 = arith.constant 0 : index
    %c128_97 = arith.constant 128 : index
    %88 = vector.load %arg9[%c0_96, %c128_97] : memref<4x512xf32, #tpu.memory_space<vmem>>, vector<4x288xf32>
    tpu.vector_store %arg9[%c0_96, %c128_97], %87 {strides = array<i32>} : memref<4x512xf32, #tpu.memory_space<vmem>>, vector<4x288xf32>,
    %c0_98 = arith.constant 0 : index
    %c109 = arith.constant 109 : index
    %89 = vector.load %arg9[%c0_98, %c109] : memref<4x512xf32, #tpu.memory_space<vmem>>, vector<4x288xf32>
    %c0_99 = arith.constant 0 : index
    %c0_100 = arith.constant 0 : index
    %c0_101 = arith.constant 0 : index
    %90 = vector.load %arg4[%c0_99, %c0_100, %c0_101] : memref<9x8x4xf32, #tpu.memory_space<vmem>>, vector<1x8x4xf32>
    %91 = vector.shape_cast %90 : vector<1x8x4xf32> to vector<8x4xf32>
    %c0_102 = arith.constant 0 : index
    %c0_103 = arith.constant 0 : index
    %92 = vector.load %arg10[%c0_102, %c0_103] : memref<8x288xf32, #tpu.memory_space<vmem>>, vector<8x288xf32>
    %cst_104 = arith.constant dense<0.000000e+00> : vector<8x288xf32>
    %93 = tpu.matmul %91, %89, %cst_104 {dimension_numbers = #tpu.dot_dimension_numbers<[1], [0], [0], [1], [0, 0, 1, 1], [], []>} : vector<8x4xf32>, vector<4x288xf32>, vector<8x288xf32> -> vector<8x288xf32>
    %94 = arith.addf %92, %93 : vector<8x288xf32>
    %c0_105 = arith.constant 0 : index
    %c0_106 = arith.constant 0 : index
    %95 = vector.load %arg10[%c0_105, %c0_106] : memref<8x288xf32, #tpu.memory_space<vmem>>, vector<8x288xf32>
    tpu.vector_store %arg10[%c0_105, %c0_106], %94 {strides = array<i32>} : memref<8x288xf32, #tpu.memory_space<vmem>>, vector<8x288xf32>,
    %c0_107 = arith.constant 0 : index
    %c110 = arith.constant 110 : index
    %96 = vector.load %arg9[%c0_107, %c110] : memref<4x512xf32, #tpu.memory_space<vmem>>, vector<4x288xf32>
    %c1_108 = arith.constant 1 : index
    %c0_109 = arith.constant 0 : index
    %c0_110 = arith.constant 0 : index
    %97 = vector.load %arg4[%c1_108, %c0_109, %c0_110] : memref<9x8x4xf32, #tpu.memory_space<vmem>>, vector<1x8x4xf32>
    %98 = vector.shape_cast %97 : vector<1x8x4xf32> to vector<8x4xf32>
    %c0_111 = arith.constant 0 : index
    %c0_112 = arith.constant 0 : index
    %99 = vector.load %arg10[%c0_111, %c0_112] : memref<8x288xf32, #tpu.memory_space<vmem>>, vector<8x288xf32>
    %cst_113 = arith.constant dense<0.000000e+00> : vector<8x288xf32>
    %100 = tpu.matmul %98, %96, %cst_113 {dimension_numbers = #tpu.dot_dimension_numbers<[1], [0], [0], [1], [0, 0, 1, 1], [], []>} : vector<8x4xf32>, vector<4x288xf32>, vector<8x288xf32> -> vector<8x288xf32>
    %101 = arith.addf %99, %100 : vector<8x288xf32>
    %c0_114 = arith.constant 0 : index
    %c0_115 = arith.constant 0 : index
    %102 = vector.load %arg10[%c0_114, %c0_115] : memref<8x288xf32, #tpu.memory_space<vmem>>, vector<8x288xf32>
    tpu.vector_store %arg10[%c0_114, %c0_115], %101 {strides = array<i32>} : memref<8x288xf32, #tpu.memory_space<vmem>>, vector<8x288xf32>,
    %c0_116 = arith.constant 0 : index
    %c111 = arith.constant 111 : index
    %103 = vector.load %arg9[%c0_116, %c111] : memref<4x512xf32, #tpu.memory_space<vmem>>, vector<4x288xf32>
    %c2_117 = arith.constant 2 : index
    %c0_118 = arith.constant 0 : index
    %c0_119 = arith.constant 0 : index
    %104 = vector.load %arg4[%c2_117, %c0_118, %c0_119] : memref<9x8x4xf32, #tpu.memory_space<vmem>>, vector<1x8x4xf32>
    %105 = vector.shape_cast %104 : vector<1x8x4xf32> to vector<8x4xf32>
    %c0_120 = arith.constant 0 : index
    %c0_121 = arith.constant 0 : index
    %106 = vector.load %arg10[%c0_120, %c0_121] : memref<8x288xf32, #tpu.memory_space<vmem>>, vector<8x288xf32>
    %cst_122 = arith.constant dense<0.000000e+00> : vector<8x288xf32>
    %107 = tpu.matmul %105, %103, %cst_122 {dimension_numbers = #tpu.dot_dimension_numbers<[1], [0], [0], [1], [0, 0, 1, 1], [], []>} : vector<8x4xf32>, vector<4x288xf32>, vector<8x288xf32> -> vector<8x288xf32>
    %108 = arith.addf %106, %107 : vector<8x288xf32>
    %c0_123 = arith.constant 0 : index
    %c0_124 = arith.constant 0 : index
    %109 = vector.load %arg10[%c0_123, %c0_124] : memref<8x288xf32, #tpu.memory_space<vmem>>, vector<8x288xf32>
    tpu.vector_store %arg10[%c0_123, %c0_124], %108 {strides = array<i32>} : memref<8x288xf32, #tpu.memory_space<vmem>>, vector<8x288xf32>,
    %c0_125 = arith.constant 0 : index
    %c127 = arith.constant 127 : index
    %110 = vector.load %arg9[%c0_125, %c127] : memref<4x512xf32, #tpu.memory_space<vmem>>, vector<4x288xf32>
    %c3_126 = arith.constant 3 : index
    %c0_127 = arith.constant 0 : index
    %c0_128 = arith.constant 0 : index
    %111 = vector.load %arg4[%c3_126, %c0_127, %c0_128] : memref<9x8x4xf32, #tpu.memory_space<vmem>>, vector<1x8x4xf32>
    %112 = vector.shape_cast %111 : vector<1x8x4xf32> to vector<8x4xf32>
    %c0_129 = arith.constant 0 : index
    %c0_130 = arith.constant 0 : index
    %113 = vector.load %arg10[%c0_129, %c0_130] : memref<8x288xf32, #tpu.memory_space<vmem>>, vector<8x288xf32>
    %cst_131 = arith.constant dense<0.000000e+00> : vector<8x288xf32>
    %114 = tpu.matmul %112, %110, %cst_131 {dimension_numbers = #tpu.dot_dimension_numbers<[1], [0], [0], [1], [0, 0, 1, 1], [], []>} : vector<8x4xf32>, vector<4x288xf32>, vector<8x288xf32> -> vector<8x288xf32>
    %115 = arith.addf %113, %114 : vector<8x288xf32>
    %c0_132 = arith.constant 0 : index
    %c0_133 = arith.constant 0 : index
    %116 = vector.load %arg10[%c0_132, %c0_133] : memref<8x288xf32, #tpu.memory_space<vmem>>, vector<8x288xf32>
    tpu.vector_store %arg10[%c0_132, %c0_133], %115 {strides = array<i32>} : memref<8x288xf32, #tpu.memory_space<vmem>>, vector<8x288xf32>,
    %c0_134 = arith.constant 0 : index
    %c128_135 = arith.constant 128 : index
    %117 = vector.load %arg9[%c0_134, %c128_135] : memref<4x512xf32, #tpu.memory_space<vmem>>, vector<4x288xf32>
    %c4_136 = arith.constant 4 : index
    %c0_137 = arith.constant 0 : index
    %c0_138 = arith.constant 0 : index
    %118 = vector.load %arg4[%c4_136, %c0_137, %c0_138] : memref<9x8x4xf32, #tpu.memory_space<vmem>>, vector<1x8x4xf32>
    %119 = vector.shape_cast %118 : vector<1x8x4xf32> to vector<8x4xf32>
    %c0_139 = arith.constant 0 : index
    %c0_140 = arith.constant 0 : index
    %120 = vector.load %arg10[%c0_139, %c0_140] : memref<8x288xf32, #tpu.memory_space<vmem>>, vector<8x288xf32>
    %cst_141 = arith.constant dense<0.000000e+00> : vector<8x288xf32>
    %121 = tpu.matmul %119, %117, %cst_141 {dimension_numbers = #tpu.dot_dimension_numbers<[1], [0], [0], [1], [0, 0, 1, 1], [], []>} : vector<8x4xf32>, vector<4x288xf32>, vector<8x288xf32> -> vector<8x288xf32>
    %122 = arith.addf %120, %121 : vector<8x288xf32>
    %c0_142 = arith.constant 0 : index
    %c0_143 = arith.constant 0 : index
    %123 = vector.load %arg10[%c0_142, %c0_143] : memref<8x288xf32, #tpu.memory_space<vmem>>, vector<8x288xf32>
    tpu.vector_store %arg10[%c0_142, %c0_143], %122 {strides = array<i32>} : memref<8x288xf32, #tpu.memory_space<vmem>>, vector<8x288xf32>,
    %c0_144 = arith.constant 0 : index
    %c129 = arith.constant 129 : index
    %124 = vector.load %arg9[%c0_144, %c129] : memref<4x512xf32, #tpu.memory_space<vmem>>, vector<4x288xf32>
    %c5_145 = arith.constant 5 : index
    %c0_146 = arith.constant 0 : index
    %c0_147 = arith.constant 0 : index
    %125 = vector.load %arg4[%c5_145, %c0_146, %c0_147] : memref<9x8x4xf32, #tpu.memory_space<vmem>>, vector<1x8x4xf32>
    %126 = vector.shape_cast %125 : vector<1x8x4xf32> to vector<8x4xf32>
    %c0_148 = arith.constant 0 : index
    %c0_149 = arith.constant 0 : index
    %127 = vector.load %arg10[%c0_148, %c0_149] : memref<8x288xf32, #tpu.memory_space<vmem>>, vector<8x288xf32>
    %cst_150 = arith.constant dense<0.000000e+00> : vector<8x288xf32>
    %128 = tpu.matmul %126, %124, %cst_150 {dimension_numbers = #tpu.dot_dimension_numbers<[1], [0], [0], [1], [0, 0, 1, 1], [], []>} : vector<8x4xf32>, vector<4x288xf32>, vector<8x288xf32> -> vector<8x288xf32>
    %129 = arith.addf %127, %128 : vector<8x288xf32>
    %c0_151 = arith.constant 0 : index
    %c0_152 = arith.constant 0 : index
    %130 = vector.load %arg10[%c0_151, %c0_152] : memref<8x288xf32, #tpu.memory_space<vmem>>, vector<8x288xf32>
    tpu.vector_store %arg10[%c0_151, %c0_152], %129 {strides = array<i32>} : memref<8x288xf32, #tpu.memory_space<vmem>>, vector<8x288xf32>,
    %c0_153 = arith.constant 0 : index
    %c145 = arith.constant 145 : index
    %131 = vector.load %arg9[%c0_153, %c145] : memref<4x512xf32, #tpu.memory_space<vmem>>, vector<4x288xf32>
    %c6_154 = arith.constant 6 : index
    %c0_155 = arith.constant 0 : index
    %c0_156 = arith.constant 0 : index
    %132 = vector.load %arg4[%c6_154, %c0_155, %c0_156] : memref<9x8x4xf32, #tpu.memory_space<vmem>>, vector<1x8x4xf32>
    %133 = vector.shape_cast %132 : vector<1x8x4xf32> to vector<8x4xf32>
    %c0_157 = arith.constant 0 : index
    %c0_158 = arith.constant 0 : index
    %134 = vector.load %arg10[%c0_157, %c0_158] : memref<8x288xf32, #tpu.memory_space<vmem>>, vector<8x288xf32>
    %cst_159 = arith.constant dense<0.000000e+00> : vector<8x288xf32>
    %135 = tpu.matmul %133, %131, %cst_159 {dimension_numbers = #tpu.dot_dimension_numbers<[1], [0], [0], [1], [0, 0, 1, 1], [], []>} : vector<8x4xf32>, vector<4x288xf32>, vector<8x288xf32> -> vector<8x288xf32>
    %136 = arith.addf %134, %135 : vector<8x288xf32>
    %c0_160 = arith.constant 0 : index
    %c0_161 = arith.constant 0 : index
    %137 = vector.load %arg10[%c0_160, %c0_161] : memref<8x288xf32, #tpu.memory_space<vmem>>, vector<8x288xf32>
    tpu.vector_store %arg10[%c0_160, %c0_161], %136 {strides = array<i32>} : memref<8x288xf32, #tpu.memory_space<vmem>>, vector<8x288xf32>,
    %c0_162 = arith.constant 0 : index
    %c146 = arith.constant 146 : index
    %138 = vector.load %arg9[%c0_162, %c146] : memref<4x512xf32, #tpu.memory_space<vmem>>, vector<4x288xf32>
    %c7_163 = arith.constant 7 : index
    %c0_164 = arith.constant 0 : index
    %c0_165 = arith.constant 0 : index
    %139 = vector.load %arg4[%c7_163, %c0_164, %c0_165] : memref<9x8x4xf32, #tpu.memory_space<vmem>>, vector<1x8x4xf32>
    %140 = vector.shape_cast %139 : vector<1x8x4xf32> to vector<8x4xf32>
    %c0_166 = arith.constant 0 : index
    %c0_167 = arith.constant 0 : index
    %141 = vector.load %arg10[%c0_166, %c0_167] : memref<8x288xf32, #tpu.memory_space<vmem>>, vector<8x288xf32>
    %cst_168 = arith.constant dense<0.000000e+00> : vector<8x288xf32>
    %142 = tpu.matmul %140, %138, %cst_168 {dimension_numbers = #tpu.dot_dimension_numbers<[1], [0], [0], [1], [0, 0, 1, 1], [], []>} : vector<8x4xf32>, vector<4x288xf32>, vector<8x288xf32> -> vector<8x288xf32>
    %143 = arith.addf %141, %142 : vector<8x288xf32>
    %c0_169 = arith.constant 0 : index
    %c0_170 = arith.constant 0 : index
    %144 = vector.load %arg10[%c0_169, %c0_170] : memref<8x288xf32, #tpu.memory_space<vmem>>, vector<8x288xf32>
    tpu.vector_store %arg10[%c0_169, %c0_170], %143 {strides = array<i32>} : memref<8x288xf32, #tpu.memory_space<vmem>>, vector<8x288xf32>,
    %c0_171 = arith.constant 0 : index
    %c147 = arith.constant 147 : index
    %145 = vector.load %arg9[%c0_171, %c147] : memref<4x512xf32, #tpu.memory_space<vmem>>, vector<4x288xf32>
    %c8_172 = arith.constant 8 : index
    %c0_173 = arith.constant 0 : index
    %c0_174 = arith.constant 0 : index
    %146 = vector.load %arg4[%c8_172, %c0_173, %c0_174] : memref<9x8x4xf32, #tpu.memory_space<vmem>>, vector<1x8x4xf32>
    %147 = vector.shape_cast %146 : vector<1x8x4xf32> to vector<8x4xf32>
    %c0_175 = arith.constant 0 : index
    %c0_176 = arith.constant 0 : index
    %148 = vector.load %arg10[%c0_175, %c0_176] : memref<8x288xf32, #tpu.memory_space<vmem>>, vector<8x288xf32>
    %cst_177 = arith.constant dense<0.000000e+00> : vector<8x288xf32>
    %149 = tpu.matmul %147, %145, %cst_177 {dimension_numbers = #tpu.dot_dimension_numbers<[1], [0], [0], [1], [0, 0, 1, 1], [], []>} : vector<8x4xf32>, vector<4x288xf32>, vector<8x288xf32> -> vector<8x288xf32>
    %150 = arith.addf %148, %149 : vector<8x288xf32>
    %c0_178 = arith.constant 0 : index
    %c0_179 = arith.constant 0 : index
    %151 = vector.load %arg10[%c0_178, %c0_179] : memref<8x288xf32, #tpu.memory_space<vmem>>, vector<8x288xf32>
    tpu.vector_store %arg10[%c0_178, %c0_179], %150 {strides = array<i32>} : memref<8x288xf32, #tpu.memory_space<vmem>>, vector<8x288xf32>,
    %c0_180 = arith.constant 0 : index
    %c0_181 = arith.constant 0 : index
    %152 = vector.load %arg10[%c0_180, %c0_181] : memref<8x288xf32, #tpu.memory_space<vmem>>, vector<8x288xf32>
    %c0_182 = arith.constant 0 : index
    %c0_183 = arith.constant 0 : index
    %153 = vector.load %arg5[%c0_182, %c0_183] : memref<8x1xf32, #tpu.memory_space<vmem>>, vector<8x1xf32>
    %154 = vector.broadcast %153 : vector<8x1xf32> to vector<8x288xf32>
    %155 = arith.addf %152, %154 : vector<8x288xf32>
    %cst_184 = arith.constant 0.000000e+00 : f32
    %156 = vector.broadcast %cst_184 : f32 to vector<8x288xf32>
    %157 = arith.cmpf oge, %155, %156 : vector<8x288xf32>
    %cst_185 = arith.constant 2.000000e-01 : f32
    %158 = vector.broadcast %cst_185 : f32 to vector<8x288xf32>
    %159 = arith.mulf %158, %155 : vector<8x288xf32>
    %160 = arith.select %157, %155, %159 : vector<8x288xi1>, vector<8x288xf32>
    %c0_186 = arith.constant 0 : index
    %c0_187 = arith.constant 0 : index
    %161 = vector.load %arg7[%c0_186, %c0_187] : memref<288x64xf32, #tpu.memory_space<vmem>>, vector<288x64xf32>
    %cst_188 = arith.constant dense<0.000000e+00> : vector<8x64xf32>
    %162 = tpu.matmul %160, %161, %cst_188 {dimension_numbers = #tpu.dot_dimension_numbers<[1], [0], [0], [1], [0, 0, 1, 1], [], []>} : vector<8x288xf32>, vector<288x64xf32>, vector<8x64xf32> -> vector<8x64xf32>
    %c0_189 = arith.constant 0 : index
    %c0_190 = arith.constant 0 : index
    %c0_191 = arith.constant 0 : index
    %163 = vector.load %arg8[%c0_189, %c0_190, %c0_191] : memref<1x8x64xf32, #tpu.memory_space<vmem>>, vector<1x8x64xf32>
    %164 = vector.shape_cast %163 : vector<1x8x64xf32> to vector<8x64xf32>
    %165 = vector.shape_cast %162 : vector<8x64xf32> to vector<1x8x64xf32>
    tpu.vector_store %arg8[%c0_189, %c0_190, %c0_191], %165 {strides = array<i32>} : memref<1x8x64xf32, #tpu.memory_space<vmem>>, vector<1x8x64xf32>,
    return
  }
  func.func @transform_0(%arg0: i32) -> (i32, i32, i32) {
    %c0_i32 = arith.constant 0 : i32
    %c0_i32_0 = arith.constant 0 : i32
    %c0_i32_1 = arith.constant 0 : i32
    return %arg0, %c0_i32, %c0_i32_0 : i32, i32, i32
  }
  func.func @transform_1(%arg0: i32) -> (i32, i32, i32) {
    %c0_i32 = arith.constant 0 : i32
    %c0_i32_0 = arith.constant 0 : i32
    %c0_i32_1 = arith.constant 0 : i32
    %c0_i32_2 = arith.constant 0 : i32
    return %c0_i32, %c0_i32_0, %c0_i32_1 : i32, i32, i32
  }
  func.func @transform_2(%arg0: i32) -> (i32, i32) {
    %c0_i32 = arith.constant 0 : i32
    %c0_i32_0 = arith.constant 0 : i32
    %c0_i32_1 = arith.constant 0 : i32
    return %c0_i32, %c0_i32_0 : i32, i32
  }
  func.func @transform_3(%arg0: i32) -> (i32, i32, i32) {
    %c0_i32 = arith.constant 0 : i32
    %c0_i32_0 = arith.constant 0 : i32
    %c0_i32_1 = arith.constant 0 : i32
    %c0_i32_2 = arith.constant 0 : i32
    return %c0_i32, %c0_i32_0, %c0_i32_1 : i32, i32, i32
  }
  func.func @transform_4(%arg0: i32) -> (i32, i32) {
    %c0_i32 = arith.constant 0 : i32
    %c0_i32_0 = arith.constant 0 : i32
    %c0_i32_1 = arith.constant 0 : i32
    return %c0_i32, %c0_i32_0 : i32, i32
  }
  func.func @transform_5(%arg0: i32) -> (i32, i32) {
    %c0_i32 = arith.constant 0 : i32
    %c0_i32_0 = arith.constant 0 : i32
    %c0_i32_1 = arith.constant 0 : i32
    return %c0_i32, %c0_i32_0 : i32, i32
  }
  func.func @transform_6(%arg0: i32) -> (i32, i32) {
    %c0_i32 = arith.constant 0 : i32
    %c0_i32_0 = arith.constant 0 : i32
    %c0_i32_1 = arith.constant 0 : i32
    return %c0_i32, %c0_i32_0 : i32, i32
  }
  func.func @transform_7(%arg0: i32) -> (i32, i32, i32) {
    %c0_i32 = arith.constant 0 : i32
    %c0_i32_0 = arith.constant 0 : i32
    %c0_i32_1 = arith.constant 0 : i32
    return %arg0, %c0_i32, %c0_i32_0 : i32, i32, i32
  }
}

</mosaic_0001>

<llo_original>
// kernel: tpu_custom_call.1
$region0: #{tpu_custom_call.1}
  #allocation0 [shape = 'u32[]', space=smem, size = 0x4, offset = 0x4, fixed_abs, tag = 'smem constant byte address 0x4 - core index']
  #allocation1 [shape = 'u32[144,128]{1,0:T(1,128)}', space=vmem, size = 0x12000, scoped, tag = 'internal scratch']
  #allocation2 [shape = 'f32[4,512]{1,0:T(4,128)}', space=vmem, size = 0x2000, scoped, tag = 'scratch operand']
  #allocation3 [shape = 'f32[8,288]{1,0:T(8,128)}', space=vmem, size = 0x3000, scoped, tag = 'scratch operand']
  %s0 = inlined_call_operand.vmem [shape: f32[2,4,384], index: 0, kind: input, shape index: {}]
  %s1 = inlined_call_operand.vmem [shape: f32[9,4,4], index: 1, kind: input, shape index: {}]
  %s2 = inlined_call_operand.vmem [shape: f32[4,1], index: 2, kind: input, shape index: {}]
  %s3 = inlined_call_operand.vmem [shape: f32[9,8,4], index: 3, kind: input, shape index: {}]
  %s4 = inlined_call_operand.vmem [shape: f32[8,1], index: 4, kind: input, shape index: {}]
  %s5 = inlined_call_operand.vmem [shape: f32[1,288], index: 5, kind: input, shape index: {}]
  %s6 = inlined_call_operand.vmem [shape: f32[288,64], index: 6, kind: input, shape index: {}]
  %s7 = inlined_call_operand.hbm [shape: f32[2,8,64], index: 7, kind: output, shape index: {}]
  %s8 = sld [smem:[#allocation0]]
  $region61: #{tpu_custom_call.1} parent=0
    _
  %s10 = ssub.s32 1, %s8
  %s11 = scalar_select 0, %s10, %s8
  $region1: #{tpu_custom_call.1} parent=0
    #allocation4 [shape = 'u8[8192]{0}', space=vmem, size = 0x2000, scoped, tag = 'output window, operand 0']
    #allocation5 [shape = 's32[2]{0}', space=sflag, size = 0x8, scoped, tag = 'scoped memory for tpu_custom_call.1']
    %12 = vsyncpa [#allocation5], 0
    %s13 = scalar_lea.sflag [#allocation5], 1
    %14 = vsyncpa %s13, 0
    loop: start=0, step=1, limit=4
    $region2: #{tpu_custom_call.1} parent=1 // loop_pre_header
      _
    $region3: #{tpu_custom_call.1} parent=1 // loop_header
      %s16 = sphi 0, %s20
      %p17 = scmp.ge.s32.totalorder %s16, 4
      %s26 = sphi 0, %s28
      %s29 = sphi 0, %s26
      %s30 = sphi 0, %s29
      %s46 = sphi 0, %s30
      %s50 = sphi 0, %s50
      %s52 = sphi 0, %s50
      %s53 = sphi 0, %s52
      %s67 = sphi 0, %s53
      %s71 = sphi 0, %s71
      %s73 = sphi 0, %s71
      %s74 = sphi 0, %s73
      %s88 = sphi 0, %s74
      %s92 = sphi 0, %s92
      %s94 = sphi 0, %s92
      %s95 = sphi 0, %s94
      %s109 = sphi 0, %s95
      %s113 = sphi 0, %s113
      %s115 = sphi 0, %s113
      %s116 = sphi 0, %s115
      %s130 = sphi 0, %s116
      %s134 = sphi 0, %s134
      %s136 = sphi 0, %s134
      %s137 = sphi 0, %s136
      %s151 = sphi 0, %s137
      %s155 = sphi 0, %s155
      %s157 = sphi 0, %s155
      %s158 = sphi 0, %s157
      %s172 = sphi 0, %s158
      %s178 = sphi 0, %s180
      %s181 = sphi 0, %s178
      %s182 = sphi 0, %s181
      %s198 = sphi 0, %s182
    $region4: #{tpu_custom_call.1} parent=1 // loop_header_branch
      %19 = sbr.rel (%p17) target = $region8
    $region5: #{tpu_custom_call.1} parent=1 // loop_body
      %s21 = ssub.s32 %s16, 1
      %s22 = ssub.s32 %s16, 2
      %s23 = sadd.s32 %s16, 1
      %s24 = ssub.s32 %s16, %s23
      %p25 = scmp.eq.s32.totalorder %s24, 0
      %s27 = sadd.s32 %s26, 1
      %s28 = scalar_select %p25, %s26, %s27
      %p31 = pneg %p25
      %p32 = scmp.eq.s32.totalorder %s16, 1
      %p33 = por %p31, %p32
      %p34 = scmp.ne.s32.totalorder %s26, %s29
      %p35 = scmp.eq.s32.totalorder %s16, 0
      %p36 = por %p34, %p35
      %p37 = scmp.ne.s32.totalorder %s26, %s29
      %p38 = scmp.eq.s32.totalorder %s21, 1
      %p39 = por %p37, %p38
      %p40 = scmp.ne.s32.totalorder %s29, %s30
      %p41 = scmp.eq.s32.totalorder %s21, 0
      %p42 = por %p40, %p41
      %p43 = scmp.ne.s32.totalorder %s29, %s30
      %p44 = scmp.eq.s32.totalorder %s22, 1
      %p45 = por %p43, %p44
      %p47 = scmp.ne.s32.totalorder %s30, %s46
      %p48 = scmp.eq.s32.totalorder %s22, 0
      %p49 = por %p47, %p48
      %s51 = sadd.s32 %s50, 1
      %p54 = scmp.eq.s32.totalorder %s16, 1
      %p55 = scmp.ne.s32.totalorder %s50, %s52
      %p56 = scmp.eq.s32.totalorder %s16, 0
      %p57 = por %p55, %p56
      %p58 = scmp.ne.s32.totalorder %s50, %s52
      %p59 = scmp.eq.s32.totalorder %s21, 1
      %p60 = por %p58, %p59
      %p61 = scmp.ne.s32.totalorder %s52, %s53
      %p62 = scmp.eq.s32.totalorder %s21, 0
      %p63 = por %p61, %p62
      %p64 = scmp.ne.s32.totalorder %s52, %s53
      %p65 = scmp.eq.s32.totalorder %s22, 1
      %p66 = por %p64, %p65
      %p68 = scmp.ne.s32.totalorder %s53, %s67
      %p69 = scmp.eq.s32.totalorder %s22, 0
      %p70 = por %p68, %p69
      %s72 = sadd.s32 %s71, 1
      %p75 = scmp.eq.s32.totalorder %s16, 1
      %p76 = scmp.ne.s32.totalorder %s71, %s73
      %p77 = scmp.eq.s32.totalorder %s16, 0
      %p78 = por %p76, %p77
      %p79 = scmp.ne.s32.totalorder %s71, %s73
      %p80 = scmp.eq.s32.totalorder %s21, 1
      %p81 = por %p79, %p80
      %p82 = scmp.ne.s32.totalorder %s73, %s74
      %p83 = scmp.eq.s32.totalorder %s21, 0
      %p84 = por %p82, %p83
      %p85 = scmp.ne.s32.totalorder %s73, %s74
      %p86 = scmp.eq.s32.totalorder %s22, 1
      %p87 = por %p85, %p86
      %p89 = scmp.ne.s32.totalorder %s74, %s88
      %p90 = scmp.eq.s32.totalorder %s22, 0
      %p91 = por %p89, %p90
      %s93 = sadd.s32 %s92, 1
      %p96 = scmp.eq.s32.totalorder %s16, 1
      %p97 = scmp.ne.s32.totalorder %s92, %s94
      %p98 = scmp.eq.s32.totalorder %s16, 0
      %p99 = por %p97, %p98
      %p100 = scmp.ne.s32.totalorder %s92, %s94
      %p101 = scmp.eq.s32.totalorder %s21, 1
      %p102 = por %p100, %p101
      %p103 = scmp.ne.s32.totalorder %s94, %s95
      %p104 = scmp.eq.s32.totalorder %s21, 0
      %p105 = por %p103, %p104
      %p106 = scmp.ne.s32.totalorder %s94, %s95
      %p107 = scmp.eq.s32.totalorder %s22, 1
      %p108 = por %p106, %p107
      %p110 = scmp.ne.s32.totalorder %s95, %s109
      %p111 = scmp.eq.s32.totalorder %s22, 0
      %p112 = por %p110, %p111
      %s114 = sadd.s32 %s113, 1
      %p117 = scmp.eq.s32.totalorder %s16, 1
      %p118 = scmp.ne.s32.totalorder %s113, %s115
      %p119 = scmp.eq.s32.totalorder %s16, 0
      %p120 = por %p118, %p119
      %p121 = scmp.ne.s32.totalorder %s113, %s115
      %p122 = scmp.eq.s32.totalorder %s21, 1
      %p123 = por %p121, %p122
      %p124 = scmp.ne.s32.totalorder %s115, %s116
      %p125 = scmp.eq.s32.totalorder %s21, 0
      %p126 = por %p124, %p125
      %p127 = scmp.ne.s32.totalorder %s115, %s116
      %p128 = scmp.eq.s32.totalorder %s22, 1
      %p129 = por %p127, %p128
      %p131 = scmp.ne.s32.totalorder %s116, %s130
      %p132 = scmp.eq.s32.totalorder %s22, 0
      %p133 = por %p131, %p132
      %s135 = sadd.s32 %s134, 1
      %p138 = scmp.eq.s32.totalorder %s16, 1
      %p139 = scmp.ne.s32.totalorder %s134, %s136
      %p140 = scmp.eq.s32.totalorder %s16, 0
      %p141 = por %p139, %p140
      %p142 = scmp.ne.s32.totalorder %s134, %s136
      %p143 = scmp.eq.s32.totalorder %s21, 1
      %p144 = por %p142, %p143
      %p145 = scmp.ne.s32.totalorder %s136, %s137
      %p146 = scmp.eq.s32.totalorder %s21, 0
      %p147 = por %p145, %p146
      %p148 = scmp.ne.s32.totalorder %s136, %s137
      %p149 = scmp.eq.s32.totalorder %s22, 1
      %p150 = por %p148, %p149
      %p152 = scmp.ne.s32.totalorder %s137, %s151
      %p153 = scmp.eq.s32.totalorder %s22, 0
      %p154 = por %p152, %p153
      %s156 = sadd.s32 %s155, 1
      %p159 = scmp.eq.s32.totalorder %s16, 1
      %p160 = scmp.ne.s32.totalorder %s155, %s157
      %p161 = scmp.eq.s32.totalorder %s16, 0
      %p162 = por %p160, %p161
      %p163 = scmp.ne.s32.totalorder %s155, %s157
      %p164 = scmp.eq.s32.totalorder %s21, 1
      %p165 = por %p163, %p164
      %p166 = scmp.ne.s32.totalorder %s157, %s158
      %p167 = scmp.eq.s32.totalorder %s21, 0
      %p168 = por %p166, %p167
      %p169 = scmp.ne.s32.totalorder %s157, %s158
      %p170 = scmp.eq.s32.totalorder %s22, 1
      %p171 = por %p169, %p170
      %p173 = scmp.ne.s32.totalorder %s158, %s172
      %p174 = scmp.eq.s32.totalorder %s22, 0
      %p175 = por %p173, %p174
      %s176 = ssub.s32 %s16, %s23
      %p177 = scmp.eq.s32.totalorder %s176, 0
      %s179 = sadd.s32 %s178, 1
      %s180 = scalar_select %p177, %s178, %s179
      %p183 = pneg %p177
      %p184 = scmp.eq.s32.totalorder %s16, 1
      %p185 = por %p183, %p184
      %p186 = scmp.ne.s32.totalorder %s178, %s181
      %p187 = scmp.eq.s32.totalorder %s16, 0
      %p188 = por %p186, %p187
      %p189 = scmp.ne.s32.totalorder %s178, %s181
      %p190 = scmp.eq.s32.totalorder %s21, 1
      %p191 = por %p189, %p190
      %p192 = scmp.ne.s32.totalorder %s181, %s182
      %p193 = scmp.eq.s32.totalorder %s21, 0
      %p194 = por %p192, %p193
      %p195 = scmp.ne.s32.totalorder %s181, %s182
      %p196 = scmp.eq.s32.totalorder %s22, 1
      %p197 = por %p195, %p196
      %p199 = scmp.ne.s32.totalorder %s182, %s198
      %p200 = scmp.eq.s32.totalorder %s22, 0
      %p201 = por %p199, %p200
      %p202 = scmp.le.s32.totalorder 1, %s16
      %p203 = scmp.lt.s32.totalorder %s16, 3
      %p204 = pnand %p202, %p203
      %p205 = pneg %p204
      // Predicated region
      $region9: #{tpu_custom_call.1} parent=5 // pred_check
        _
      $region10: #{tpu_custom_call.1} parent=5 // pred_check_branch
        %207 = sbr.rel (%p204) target = $region12
      $region11: #{tpu_custom_call.1} parent=5 // pred_region
        %s208 = ssub.s32 %s16, 1
        // Predicated region
        $region13: #{tpu_custom_call.1} parent=11 // pred_check
          %p209 = pneg %p63
        $region14: #{tpu_custom_call.1} parent=11 // pred_check_branch
          %211 = sbr.rel (%p209) target = $region16
        $region15: #{tpu_custom_call.1} parent=11 // pred_region
          _
        $region16: #{tpu_custom_call.1} parent=11 // pred_fallthru
          _
        // Predicated region
        $region17: #{tpu_custom_call.1} parent=11 // pred_check
          %p212 = pneg %p84
        $region18: #{tpu_custom_call.1} parent=11 // pred_check_branch
          %214 = sbr.rel (%p212) target = $region20
        $region19: #{tpu_custom_call.1} parent=11 // pred_region
          _
        $region20: #{tpu_custom_call.1} parent=11 // pred_fallthru
          _
        // Predicated region
        $region21: #{tpu_custom_call.1} parent=11 // pred_check
          %p215 = pneg %p105
        $region22: #{tpu_custom_call.1} parent=11 // pred_check_branch
          %217 = sbr.rel (%p215) target = $region24
        $region23: #{tpu_custom_call.1} parent=11 // pred_region
          _
        $region24: #{tpu_custom_call.1} parent=11 // pred_fallthru
          _
        // Predicated region
        $region25: #{tpu_custom_call.1} parent=11 // pred_check
          %p218 = pneg %p126
        $region26: #{tpu_custom_call.1} parent=11 // pred_check_branch
          %220 = sbr.rel (%p218) target = $region28
        $region27: #{tpu_custom_call.1} parent=11 // pred_region
          _
        $region28: #{tpu_custom_call.1} parent=11 // pred_fallthru
          _
        // Predicated region
        $region29: #{tpu_custom_call.1} parent=11 // pred_check
          %p221 = pneg %p147
        $region30: #{tpu_custom_call.1} parent=11 // pred_check_branch
          %223 = sbr.rel (%p221) target = $region32
        $region31: #{tpu_custom_call.1} parent=11 // pred_region
          _
        $region32: #{tpu_custom_call.1} parent=11 // pred_fallthru
          _
        // Predicated region
        $region33: #{tpu_custom_call.1} parent=11 // pred_check
          %p224 = pneg %p168
        $region34: #{tpu_custom_call.1} parent=11 // pred_check_branch
          %226 = sbr.rel (%p224) target = $region36
        $region35: #{tpu_custom_call.1} parent=11 // pred_region
          _
        $region36: #{tpu_custom_call.1} parent=11 // pred_fallthru
          _
      $region12: #{tpu_custom_call.1} parent=5 // pred_fallthru
        _
      %p227 = scmp.lt.s32.totalorder %s16, 2
      // Predicated region
      $region37: #{tpu_custom_call.1} parent=5 // pred_check
        %p228 = pneg %p227
      $region38: #{tpu_custom_call.1} parent=5 // pred_check_branch
        %230 = sbr.rel (%p228) target = $region40
      $region39: #{tpu_custom_call.1} parent=5 // pred_region
        // Predicated region
        $region41: #{tpu_custom_call.1} parent=39 // pred_check
          %p231 = pneg %p36
        $region42: #{tpu_custom_call.1} parent=39 // pred_check_branch
          %233 = sbr.rel (%p231) target = $region44
        $region43: #{tpu_custom_call.1} parent=39 // pred_region
          %p234 = scmp.lt.s32.totalorder %s16, 1
          %s235 = scalar_select %p234, %s16, 1
          %s236 = smul.addr %s235, 3
          %s237 = smul.addr %s236, 4
          %s238 = scalar_lea.vmem %s0, %s237
        $region44: #{tpu_custom_call.1} parent=39 // pred_fallthru
          _
      $region40: #{tpu_custom_call.1} parent=5 // pred_fallthru
        _
      %p239 = scmp.le.s32.totalorder 1, %s16
      %p240 = scmp.lt.s32.totalorder %s16, 3
      %p241 = pnand %p239, %p240
      %p242 = pneg %p241
      // Predicated region
      $region45: #{tpu_custom_call.1} parent=5 // pred_check
        _
      $region46: #{tpu_custom_call.1} parent=5 // pred_check_branch
        %244 = sbr.rel (%p241) target = $region48
      $region47: #{tpu_custom_call.1} parent=5 // pred_region
        %s245 = ssub.s32 %s16, 1
        %p246 = scmp.lt.s32.totalorder %s21, 1
        %s247 = scalar_select %p246, %s21, 1
        %s248 = smul.addr %s247, 3
        %s249 = smul.addr %s248, 4
        %s250 = scalar_lea.vmem %s0, %s249
        %p251 = pneg %p42
        %p252 = pneg %p39
        %p253 = pneg %p63
        %p254 = pneg %p60
        %p255 = pneg %p84
        %p256 = pneg %p81
        %p257 = pneg %p105
        %p258 = pneg %p102
        %p259 = pneg %p126
        %p260 = pneg %p123
        %p261 = pneg %p147
        %p262 = pneg %p144
        %p263 = pneg %p168
        %p264 = pneg %p165
        %p265 = pneg %p194
        %p266 = pneg %p191
        %s267 = sand.u32 %s181, 1
        %s268 = scalar_lea.sflag [#allocation5], %s267
        %s269 = sand.u32 %s181, 1
        %s270 = smul.addr %s269, 8
        %s271 = scalar_lea.vmem [#allocation4], %s270
        %p272 = scmp.lt.s32.totalorder %s21, 1
        %s273 = scalar_select %p272, %s21, 1
        %s274 = smul.addr %s273, 3
        %s275 = smul.addr %s274, 4
        %s276 = scalar_lea.vmem %s0, %s275
        %277 = vst [vmem:[#allocation2] sm:$0xff] 0.0
        %278 = vst [vmem:[#allocation2 + $0x8] sm:$0xff] 0.0
        %279 = vst [vmem:[#allocation3] sm:$0xff] 0.0
        %280 = vst [vmem:[#allocation3 + $0x8] sm:$0xff] 0.0
        %vm281 = vcmask 261120
        %282 = vst.msk [vmem:[#allocation3 + $0x10] sm:$0xff] %vm281, 0.0
        %v283 = vld [vmem:[%s276] sm:$0xff]
        %v284 = vld [vmem:[%s276 + $0x8] sm:$0xf]
        %v285 = vld [vmem:[%s1] sm:$0xf]
        %v286 = vld [vmem:[#allocation2 + $0x4] sm:$0xff]
        %v287 = vld [vmem:[#allocation2 + $0xc] sm:$0xf]
        %v290 = vcombine.high %v283, %v283
        %vm291 = vcmask 31744
        %v293 = vsel %vm291, %v285, 0
        %vm295 = vcmask 1043456
        %v296 = vsel %vm295, %v283, 0
        %v298 = vsel %vm295, %v290, 0
        %v300 = vsel %vm295, %v284, 0
        %302 = vmatprep.subr.mxu0 0.0
        %303 = vmatpush1.msra.mxu0 0.0
        %304 = vmatprep.subr.mxu0 0.0
        %305 = vmatpush1.msra.mxu0 0.0
        %306 = vmatprep.subr.mxu0 0.0
        %307 = vmatpush1.msra.mxu0 0.0
        %308 = vmatprep.subr.mxu0 0.0
        %309 = vmatpush1.msra.mxu0 0.0
        %310 = vmatprep.subr.mxu0 0.0
        %311 = vmatpush1.msra.mxu0 0.0
        %312 = vmatprep.subr.mxu0 0.0
        %313 = vmatpush1.msra.mxu0 0.0
        %314 = vmatprep.subr.mxu0 0.0
        %315 = vmatpush1.msra.mxu0 0.0
        %316 = vmatprep.subr.mxu0 0.0
        %317 = vmatpush1.msra.mxu0 0.0
        %318 = vmatprep.subr.mxu0 0.0
        %319 = vmatpush1.msra.mxu0 0.0
        %320 = vmatprep.subr.mxu0 0.0
        %321 = vmatpush1.msra.mxu0 0.0
        %322 = vmatprep.subr.mxu0 0.0
        %323 = vmatpush1.msra.mxu0 0.0
        %324 = vmatprep.subr.mxu0 0.0
        %325 = vmatpush1.msra.mxu0 0.0
        %326 = vmatprep.subr.mxu0 0.0
        %327 = vmatpush1.msra.mxu0 0.0
        %328 = vmatprep.subr.mxu0 0.0
        %329 = vmatpush1.msra.mxu0 0.0
        %330 = vmatprep.subr.mxu0 0.0
        %331 = vmatpush1.msra.mxu0 0.0
        %332 = vmatprep.subr.mxu0 %v298
        %333 = vmatpush1.msra.mxu0 %v296
        %334 = vmatprep.subr.mxu0 0.0
        %335 = vmatpush2.msra.mxu0 0.0
        %336 = vmatprep.subr.mxu0 0.0
        %337 = vmatpush2.msra.mxu0 0.0
        %338 = vmatprep.subr.mxu0 0.0
        %339 = vmatpush2.msra.mxu0 0.0
        %340 = vmatprep.subr.mxu0 0.0
        %341 = vmatpush2.msra.mxu0 0.0
        %342 = vmatprep.subr.mxu0 0.0
        %343 = vmatpush2.msra.mxu0 0.0
        %344 = vmatprep.subr.mxu0 0.0
        %345 = vmatpush2.msra.mxu0 0.0
        %346 = vmatprep.subr.mxu0 0.0
        %347 = vmatpush2.msra.mxu0 0.0
        %348 = vmatprep.subr.mxu0 0.0
        %349 = vmatpush2.msra.mxu0 0.0
        %350 = vmatprep.subr.mxu0 0.0
        %351 = vmatpush2.msra.mxu0 0.0
        %352 = vmatprep.subr.mxu0 0.0
        %353 = vmatpush2.msra.mxu0 0.0
        %354 = vmatprep.subr.mxu0 0.0
        %355 = vmatpush2.msra.mxu0 0.0
        %356 = vmatprep.subr.mxu0 0.0
        %357 = vmatpush2.msra.mxu0 0.0
        %358 = vmatprep.subr.mxu0 0.0
        %359 = vmatpush2.msra.mxu0 0.0
        %360 = vmatprep.subr.mxu0 0.0
        %361 = vmatpush2.msra.mxu0 0.0
        %362 = vmatprep.subr.mxu0 0.0
        %363 = vmatpush2.msra.mxu0 0.0
        %364 = vmatprep.subr.mxu0 0.0
        %365 = vmatpush2.msra.mxu0 0.0
        %366 = vmatprep.mubr.f32.mxu0 0.0
        %367 = vmatmul.mubr.f32.gmra.mxu0 %v293
        %v368 = vpop.f32.mrf.mxu0
        %v369 = vadd.f32 0.0, %v368
        %v370 = vpop.f32.mrf.mxu0
        %v371 = vadd.f32 0.0, %v370
        %372 = vdwg.mxu0
        %373 = vmatprep.subr.mxu0 0.0
        %374 = vmatpush1.msra.mxu0 0.0
        %375 = vmatprep.subr.mxu0 0.0
        %376 = vmatpush1.msra.mxu0 0.0
        %377 = vmatprep.subr.mxu0 0.0
        %378 = vmatpush1.msra.mxu0 0.0
        %379 = vmatprep.subr.mxu0 0.0
        %380 = vmatpush1.msra.mxu0 0.0
        %381 = vmatprep.subr.mxu0 0.0
        %382 = vmatpush1.msra.mxu0 0.0
        %383 = vmatprep.subr.mxu0 0.0
        %384 = vmatpush1.msra.mxu0 0.0
        %385 = vmatprep.subr.mxu0 0.0
        %386 = vmatpush1.msra.mxu0 0.0
        %387 = vmatprep.subr.mxu0 0.0
        %388 = vmatpush1.msra.mxu0 0.0
        %389 = vmatprep.subr.mxu0 0.0
        %390 = vmatpush1.msra.mxu0 0.0
        %391 = vmatprep.subr.mxu0 0.0
        %392 = vmatpush1.msra.mxu0 0.0
        %393 = vmatprep.subr.mxu0 0.0
        %394 = vmatpush1.msra.mxu0 0.0
        %395 = vmatprep.subr.mxu0 0.0
        %396 = vmatpush1.msra.mxu0 0.0
        %397 = vmatprep.subr.mxu0 0.0
        %398 = vmatpush1.msra.mxu0 0.0
        %399 = vmatprep.subr.mxu0 0.0
        %400 = vmatpush1.msra.mxu0 0.0
        %401 = vmatprep.subr.mxu0 0.0
        %402 = vmatpush1.msra.mxu0 0.0
        %403 = vmatprep.subr.mxu0 0.0
        %404 = vmatpush1.msra.mxu0 %v300
        %405 = vmatprep.subr.mxu0 0.0
        %406 = vmatpush2.msra.mxu0 0.0
        %407 = vmatprep.subr.mxu0 0.0
        %408 = vmatpush2.msra.mxu0 0.0
        %409 = vmatprep.subr.mxu0 0.0
        %410 = vmatpush2.msra.mxu0 0.0
        %411 = vmatprep.subr.mxu0 0.0
        %412 = vmatpush2.msra.mxu0 0.0
        %413 = vmatprep.subr.mxu0 0.0
        %414 = vmatpush2.msra.mxu0 0.0
        %415 = vmatprep.subr.mxu0 0.0
        %416 = vmatpush2.msra.mxu0 0.0
        %417 = vmatprep.subr.mxu0 0.0
        %418 = vmatpush2.msra.mxu0 0.0
        %419 = vmatprep.subr.mxu0 0.0
        %420 = vmatpush2.msra.mxu0 0.0
        %421 = vmatprep.subr.mxu0 0.0
        %422 = vmatpush2.msra.mxu0 0.0
        %423 = vmatprep.subr.mxu0 0.0
        %424 = vmatpush2.msra.mxu0 0.0
        %425 = vmatprep.subr.mxu0 0.0
        %426 = vmatpush2.msra.mxu0 0.0
        %427 = vmatprep.subr.mxu0 0.0
        %428 = vmatpush2.msra.mxu0 0.0
        %429 = vmatprep.subr.mxu0 0.0
        %430 = vmatpush2.msra.mxu0 0.0
        %431 = vmatprep.subr.mxu0 0.0
        %432 = vmatpush2.msra.mxu0 0.0
        %433 = vmatprep.subr.mxu0 0.0
        %434 = vmatpush2.msra.mxu0 0.0
        %435 = vmatprep.subr.mxu0 0.0
        %436 = vmatpush2.msra.mxu0 0.0
        %437 = vmatprep.mubr.f32.mxu0 0.0
        %438 = vmatmul.mubr.f32.gmra.mxu0 %v293
        %v439 = vpop.f32.mrf.mxu0
        %v440 = vadd.f32 0.0, %v439
        %v441 = vpop.f32.mrf.mxu0
        %442 = vdwg.mxu0
        %v445 = vcombine.low %v369, %v371
        %v447 = vadd.f32 %v286, %v445
        %v448 = vadd.f32 %v287, %v440
        %449 = vst [vmem:[#allocation2 + $0x4] sm:$0xff] %v447
        %vm450 = vcmask 257024
        %451 = vst.msk [vmem:[#allocation2 + $0xc] sm:$0xf] %vm450, %v448
        %v452 = vld [vmem:[%s276] sm:$0xff]
        %v453 = vld [vmem:[%s276 + $0x8] sm:$0xf]
        %s454 = scalar_lea.vmem %s1, 4
        %v455 = vld [vmem:[%s454] sm:$0xf]
        %v456 = vld [vmem:[#allocation2 + $0x4] sm:$0xff]
        %v457 = vld [vmem:[#allocation2 + $0xc] sm:$0xf]
        %v460 = vcombine.high %v452, %v452
        %461 = vrot.lane.b32.xlu0 %v452, 127
        %v462 = vpop.permute.xlu0 %461
        %463 = vrot.lane.b32.xlu0 %v460, 127
        %v464 = vpop.permute.xlu0 %463
        %465 = vrot.lane.b32.xlu0 %v453, 127
        %v466 = vpop.permute.xlu0 %465
        %vm467 = vcmask 1039360
        %v468 = vsel %vm467, %v462, %v464
        %v469 = vsel %vm467, %v464, %v466
        %v471 = vsel %vm291, %v455, 0
        %v473 = vsel %vm295, %v468, 0
        %v475 = vsel %vm295, %v469, 0
        %v477 = vsel %vm295, %v466, 0
        %479 = vmatprep.subr.mxu0 0.0
        %480 = vmatpush1.msra.mxu0 0.0
        %481 = vmatprep.subr.mxu0 0.0
        %482 = vmatpush1.msra.mxu0 0.0
        %483 = vmatprep.subr.mxu0 0.0
        %484 = vmatpush1.msra.mxu0 0.0
        %485 = vmatprep.subr.mxu0 0.0
        %486 = vmatpush1.msra.mxu0 0.0
        %487 = vmatprep.subr.mxu0 0.0
        %488 = vmatpush1.msra.mxu0 0.0
        %489 = vmatprep.subr.mxu0 0.0
        %490 = vmatpush1.msra.mxu0 0.0
        %491 = vmatprep.subr.mxu0 0.0
        %492 = vmatpush1.msra.mxu0 0.0
        %493 = vmatprep.subr.mxu0 0.0
        %494 = vmatpush1.msra.mxu0 0.0
        %495 = vmatprep.subr.mxu0 0.0
        %496 = vmatpush1.msra.mxu0 0.0
        %497 = vmatprep.subr.mxu0 0.0
        %498 = vmatpush1.msra.mxu0 0.0
        %499 = vmatprep.subr.mxu0 0.0
        %500 = vmatpush1.msra.mxu0 0.0
        %501 = vmatprep.subr.mxu0 0.0
        %502 = vmatpush1.msra.mxu0 0.0
        %503 = vmatprep.subr.mxu0 0.0
        %504 = vmatpush1.msra.mxu0 0.0
        %505 = vmatprep.subr.mxu0 0.0
        %506 = vmatpush1.msra.mxu0 0.0
        %507 = vmatprep.subr.mxu0 0.0
        %508 = vmatpush1.msra.mxu0 0.0
        %509 = vmatprep.subr.mxu0 %v475
        %510 = vmatpush1.msra.mxu0 %v473
        %511 = vmatprep.subr.mxu0 0.0
        %512 = vmatpush2.msra.mxu0 0.0
        %513 = vmatprep.subr.mxu0 0.0
        %514 = vmatpush2.msra.mxu0 0.0
        %515 = vmatprep.subr.mxu0 0.0
        %516 = vmatpush2.msra.mxu0 0.0
        %517 = vmatprep.subr.mxu0 0.0
        %518 = vmatpush2.msra.mxu0 0.0
        %519 = vmatprep.subr.mxu0 0.0
        %520 = vmatpush2.msra.mxu0 0.0
        %521 = vmatprep.subr.mxu0 0.0
        %522 = vmatpush2.msra.mxu0 0.0
        %523 = vmatprep.subr.mxu0 0.0
        %524 = vmatpush2.msra.mxu0 0.0
        %525 = vmatprep.subr.mxu0 0.0
        %526 = vmatpush2.msra.mxu0 0.0
        %527 = vmatprep.subr.mxu0 0.0
        %528 = vmatpush2.msra.mxu0 0.0
        %529 = vmatprep.subr.mxu0 0.0
        %530 = vmatpush2.msra.mxu0 0.0
        %531 = vmatprep.subr.mxu0 0.0
        %532 = vmatpush2.msra.mxu0 0.0
        %533 = vmatprep.subr.mxu0 0.0
        %534 = vmatpush2.msra.mxu0 0.0
        %535 = vmatprep.subr.mxu0 0.0
        %536 = vmatpush2.msra.mxu0 0.0
        %537 = vmatprep.subr.mxu0 0.0
        %538 = vmatpush2.msra.mxu0 0.0
        %539 = vmatprep.subr.mxu0 0.0
        %540 = vmatpush2.msra.mxu0 0.0
        %541 = vmatprep.subr.mxu0 0.0
        %542 = vmatpush2.msra.mxu0 0.0
        %543 = vmatprep.mubr.f32.mxu0 0.0
        %544 = vmatmul.mubr.f32.gmra.mxu0 %v471
        %v545 = vpop.f32.mrf.mxu0
        %v546 = vadd.f32 0.0, %v545
        %v547 = vpop.f32.mrf.mxu0
        %v548 = vadd.f32 0.0, %v547
        %549 = vdwg.mxu0
        %550 = vmatprep.subr.mxu0 0.0
        %551 = vmatpush1.msra.mxu0 0.0
        %552 = vmatprep.subr.mxu0 0.0
        %553 = vmatpush1.msra.mxu0 0.0
        %554 = vmatprep.subr.mxu0 0.0
        %555 = vmatpush1.msra.mxu0 0.0
        %556 = vmatprep.subr.mxu0 0.0
        %557 = vmatpush1.msra.mxu0 0.0
        %558 = vmatprep.subr.mxu0 0.0
        %559 = vmatpush1.msra.mxu0 0.0
        %560 = vmatprep.subr.mxu0 0.0
        %561 = vmatpush1.msra.mxu0 0.0
        %562 = vmatprep.subr.mxu0 0.0
        %563 = vmatpush1.msra.mxu0 0.0
        %564 = vmatprep.subr.mxu0 0.0
        %565 = vmatpush1.msra.mxu0 0.0
        %566 = vmatprep.subr.mxu0 0.0
        %567 = vmatpush1.msra.mxu0 0.0
        %568 = vmatprep.subr.mxu0 0.0
        %569 = vmatpush1.msra.mxu0 0.0
        %570 = vmatprep.subr.mxu0 0.0
        %571 = vmatpush1.msra.mxu0 0.0
        %572 = vmatprep.subr.mxu0 0.0
        %573 = vmatpush1.msra.mxu0 0.0
        %574 = vmatprep.subr.mxu0 0.0
        %575 = vmatpush1.msra.mxu0 0.0
        %576 = vmatprep.subr.mxu0 0.0
        %577 = vmatpush1.msra.mxu0 0.0
        %578 = vmatprep.subr.mxu0 0.0
        %579 = vmatpush1.msra.mxu0 0.0
        %580 = vmatprep.subr.mxu0 0.0
        %581 = vmatpush1.msra.mxu0 %v477
        %582 = vmatprep.subr.mxu0 0.0
        %583 = vmatpush2.msra.mxu0 0.0
        %584 = vmatprep.subr.mxu0 0.0
        %585 = vmatpush2.msra.mxu0 0.0
        %586 = vmatprep.subr.mxu0 0.0
        %587 = vmatpush2.msra.mxu0 0.0
        %588 = vmatprep.subr.mxu0 0.0
        %589 = vmatpush2.msra.mxu0 0.0
        %590 = vmatprep.subr.mxu0 0.0
        %591 = vmatpush2.msra.mxu0 0.0
        %592 = vmatprep.subr.mxu0 0.0
        %593 = vmatpush2.msra.mxu0 0.0
        %594 = vmatprep.subr.mxu0 0.0
        %595 = vmatpush2.msra.mxu0 0.0
        %596 = vmatprep.subr.mxu0 0.0
        %597 = vmatpush2.msra.mxu0 0.0
        %598 = vmatprep.subr.mxu0 0.0
        %599 = vmatpush2.msra.mxu0 0.0
        %600 = vmatprep.subr.mxu0 0.0
        %601 = vmatpush2.msra.mxu0 0.0
        %602 = vmatprep.subr.mxu0 0.0
        %603 = vmatpush2.msra.mxu0 0.0
        %604 = vmatprep.subr.mxu0 0.0
        %605 = vmatpush2.msra.mxu0 0.0
        %606 = vmatprep.subr.mxu0 0.0
        %607 = vmatpush2.msra.mxu0 0.0
        %608 = vmatprep.subr.mxu0 0.0
        %609 = vmatpush2.msra.mxu0 0.0
        %610 = vmatprep.subr.mxu0 0.0
        %611 = vmatpush2.msra.mxu0 0.0
        %612 = vmatprep.subr.mxu0 0.0
        %613 = vmatpush2.msra.mxu0 0.0
        %614 = vmatprep.mubr.f32.mxu0 0.0
        %615 = vmatmul.mubr.f32.gmra.mxu0 %v471
        %v616 = vpop.f32.mrf.mxu0
        %v617 = vadd.f32 0.0, %v616
        %v618 = vpop.f32.mrf.mxu0
        %619 = vdwg.mxu0
        %v622 = vcombine.low %v546, %v548
        %v624 = vadd.f32 %v456, %v622
        %v625 = vadd.f32 %v457, %v617
        %626 = vst [vmem:[#allocation2 + $0x4] sm:$0xff] %v624
        %627 = vst.msk [vmem:[#allocation2 + $0xc] sm:$0xf] %vm450, %v625
        %v628 = vld [vmem:[%s276] sm:$0xff]
        %v629 = vld [vmem:[%s276 + $0x8] sm:$0xf]
        %s630 = scalar_lea.vmem %s1, 8
        %v631 = vld [vmem:[%s630] sm:$0xf]
        %v632 = vld [vmem:[#allocation2 + $0x4] sm:$0xff]
        %v633 = vld [vmem:[#allocation2 + $0xc] sm:$0xf]
        %v636 = vcombine.high %v628, %v628
        %637 = vrot.lane.b32.xlu0 %v628, 126
        %v638 = vpop.permute.xlu0 %637
        %639 = vrot.lane.b32.xlu0 %v636, 126
        %v640 = vpop.permute.xlu0 %639
        %641 = vrot.lane.b32.xlu0 %v629, 126
        %v642 = vpop.permute.xlu0 %641
        %vm643 = vcmask 1031168
        %v644 = vsel %vm643, %v638, %v640
        %v645 = vsel %vm643, %v640, %v642
        %v647 = vsel %vm291, %v631, 0
        %v649 = vsel %vm295, %v644, 0
        %v651 = vsel %vm295, %v645, 0
        %v653 = vsel %vm295, %v642, 0
        %655 = vmatprep.subr.mxu0 0.0
        %656 = vmatpush1.msra.mxu0 0.0
        %657 = vmatprep.subr.mxu0 0.0
        %658 = vmatpush1.msra.mxu0 0.0
        %659 = vmatprep.subr.mxu0 0.0
        %660 = vmatpush1.msra.mxu0 0.0
        %661 = vmatprep.subr.mxu0 0.0
        %662 = vmatpush1.msra.mxu0 0.0
        %663 = vmatprep.subr.mxu0 0.0
        %664 = vmatpush1.msra.mxu0 0.0
        %665 = vmatprep.subr.mxu0 0.0
        %666 = vmatpush1.msra.mxu0 0.0
        %667 = vmatprep.subr.mxu0 0.0
        %668 = vmatpush1.msra.mxu0 0.0
        %669 = vmatprep.subr.mxu0 0.0
        %670 = vmatpush1.msra.mxu0 0.0
        %671 = vmatprep.subr.mxu0 0.0
        %672 = vmatpush1.msra.mxu0 0.0
        %673 = vmatprep.subr.mxu0 0.0
        %674 = vmatpush1.msra.mxu0 0.0
        %675 = vmatprep.subr.mxu0 0.0
        %676 = vmatpush1.msra.mxu0 0.0
        %677 = vmatprep.subr.mxu0 0.0
        %678 = vmatpush1.msra.mxu0 0.0
        %679 = vmatprep.subr.mxu0 0.0
        %680 = vmatpush1.msra.mxu0 0.0
        %681 = vmatprep.subr.mxu0 0.0
        %682 = vmatpush1.msra.mxu0 0.0
        %683 = vmatprep.subr.mxu0 0.0
        %684 = vmatpush1.msra.mxu0 0.0
        %685 = vmatprep.subr.mxu0 %v651
        %686 = vmatpush1.msra.mxu0 %v649
        %687 = vmatprep.subr.mxu0 0.0
        %688 = vmatpush2.msra.mxu0 0.0
        %689 = vmatprep.subr.mxu0 0.0
        %690 = vmatpush2.msra.mxu0 0.0
        %691 = vmatprep.subr.mxu0 0.0
        %692 = vmatpush2.msra.mxu0 0.0
        %693 = vmatprep.subr.mxu0 0.0
        %694 = vmatpush2.msra.mxu0 0.0
        %695 = vmatprep.subr.mxu0 0.0
        %696 = vmatpush2.msra.mxu0 0.0
        %697 = vmatprep.subr.mxu0 0.0
        %698 = vmatpush2.msra.mxu0 0.0
        %699 = vmatprep.subr.mxu0 0.0
        %700 = vmatpush2.msra.mxu0 0.0
        %701 = vmatprep.subr.mxu0 0.0
        %702 = vmatpush2.msra.mxu0 0.0
        %703 = vmatprep.subr.mxu0 0.0
        %704 = vmatpush2.msra.mxu0 0.0
        %705 = vmatprep.subr.mxu0 0.0
        %706 = vmatpush2.msra.mxu0 0.0
        %707 = vmatprep.subr.mxu0 0.0
        %708 = vmatpush2.msra.mxu0 0.0
        %709 = vmatprep.subr.mxu0 0.0
        %710 = vmatpush2.msra.mxu0 0.0
        %711 = vmatprep.subr.mxu0 0.0
        %712 = vmatpush2.msra.mxu0 0.0
        %713 = vmatprep.subr.mxu0 0.0
        %714 = vmatpush2.msra.mxu0 0.0
        %715 = vmatprep.subr.mxu0 0.0
        %716 = vmatpush2.msra.mxu0 0.0
        %717 = vmatprep.subr.mxu0 0.0
        %718 = vmatpush2.msra.mxu0 0.0
        %719 = vmatprep.mubr.f32.mxu0 0.0
        %720 = vmatmul.mubr.f32.gmra.mxu0 %v647
        %v721 = vpop.f32.mrf.mxu0
        %v722 = vadd.f32 0.0, %v721
        %v723 = vpop.f32.mrf.mxu0
        %v724 = vadd.f32 0.0, %v723
        %725 = vdwg.mxu0
        %726 = vmatprep.subr.mxu0 0.0
        %727 = vmatpush1.msra.mxu0 0.0
        %728 = vmatprep.subr.mxu0 0.0
        %729 = vmatpush1.msra.mxu0 0.0
        %730 = vmatprep.subr.mxu0 0.0
        %731 = vmatpush1.msra.mxu0 0.0
        %732 = vmatprep.subr.mxu0 0.0
        %733 = vmatpush1.msra.mxu0 0.0
        %734 = vmatprep.subr.mxu0 0.0
        %735 = vmatpush1.msra.mxu0 0.0
        %736 = vmatprep.subr.mxu0 0.0
        %737 = vmatpush1.msra.mxu0 0.0
        %738 = vmatprep.subr.mxu0 0.0
        %739 = vmatpush1.msra.mxu0 0.0
        %740 = vmatprep.subr.mxu0 0.0
        %741 = vmatpush1.msra.mxu0 0.0
        %742 = vmatprep.subr.mxu0 0.0
        %743 = vmatpush1.msra.mxu0 0.0
        %744 = vmatprep.subr.mxu0 0.0
        %745 = vmatpush1.msra.mxu0 0.0
        %746 = vmatprep.subr.mxu0 0.0
        %747 = vmatpush1.msra.mxu0 0.0
        %748 = vmatprep.subr.mxu0 0.0
        %749 = vmatpush1.msra.mxu0 0.0
        %750 = vmatprep.subr.mxu0 0.0
        %751 = vmatpush1.msra.mxu0 0.0
        %752 = vmatprep.subr.mxu0 0.0
        %753 = vmatpush1.msra.mxu0 0.0
        %754 = vmatprep.subr.mxu0 0.0
        %755 = vmatpush1.msra.mxu0 0.0
        %756 = vmatprep.subr.mxu0 0.0
        %757 = vmatpush1.msra.mxu0 %v653
        %758 = vmatprep.subr.mxu0 0.0
        %759 = vmatpush2.msra.mxu0 0.0
        %760 = vmatprep.subr.mxu0 0.0
        %761 = vmatpush2.msra.mxu0 0.0
        %762 = vmatprep.subr.mxu0 0.0
        %763 = vmatpush2.msra.mxu0 0.0
        %764 = vmatprep.subr.mxu0 0.0
        %765 = vmatpush2.msra.mxu0 0.0
        %766 = vmatprep.subr.mxu0 0.0
        %767 = vmatpush2.msra.mxu0 0.0
        %768 = vmatprep.subr.mxu0 0.0
        %769 = vmatpush2.msra.mxu0 0.0
        %770 = vmatprep.subr.mxu0 0.0
        %771 = vmatpush2.msra.mxu0 0.0
        %772 = vmatprep.subr.mxu0 0.0
        %773 = vmatpush2.msra.mxu0 0.0
        %774 = vmatprep.subr.mxu0 0.0
        %775 = vmatpush2.msra.mxu0 0.0
        %776 = vmatprep.subr.mxu0 0.0
        %777 = vmatpush2.msra.mxu0 0.0
        %778 = vmatprep.subr.mxu0 0.0
        %779 = vmatpush2.msra.mxu0 0.0
        %780 = vmatprep.subr.mxu0 0.0
        %781 = vmatpush2.msra.mxu0 0.0
        %782 = vmatprep.subr.mxu0 0.0
        %783 = vmatpush2.msra.mxu0 0.0
        %784 = vmatprep.subr.mxu0 0.0
        %785 = vmatpush2.msra.mxu0 0.0
        %786 = vmatprep.subr.mxu0 0.0
        %787 = vmatpush2.msra.mxu0 0.0
        %788 = vmatprep.subr.mxu0 0.0
        %789 = vmatpush2.msra.mxu0 0.0
        %790 = vmatprep.mubr.f32.mxu0 0.0
        %791 = vmatmul.mubr.f32.gmra.mxu0 %v647
        %v792 = vpop.f32.mrf.mxu0
        %v793 = vadd.f32 0.0, %v792
        %v794 = vpop.f32.mrf.mxu0
        %795 = vdwg.mxu0
        %v798 = vcombine.low %v722, %v724
        %v800 = vadd.f32 %v632, %v798
        %v801 = vadd.f32 %v633, %v793
        %802 = vst [vmem:[#allocation2 + $0x4] sm:$0xff] %v800
        %803 = vst.msk [vmem:[#allocation2 + $0xc] sm:$0xf] %vm450, %v801
        %v804 = vld [vmem:[%s276] sm:$0xff]
        %v805 = vld [vmem:[%s276 + $0x8] sm:$0xf]
        %s806 = scalar_lea.vmem %s1, 12
        %v807 = vld [vmem:[%s806] sm:$0xf]
        %v808 = vld [vmem:[#allocation2 + $0x4] sm:$0xff]
        %v809 = vld [vmem:[#allocation2 + $0xc] sm:$0xf]
        %v812 = vcombine.high %v804, %v804
        %813 = vrot.lane.b32.xlu0 %v804, 110
        %v814 = vpop.permute.xlu0 %813
        %815 = vrot.lane.b32.xlu0 %v812, 110
        %v816 = vpop.permute.xlu0 %815
        %817 = vrot.lane.b32.xlu0 %v805, 110
        %v818 = vpop.permute.xlu0 %817
        %vm819 = vcmask 900096
        %v820 = vsel %vm819, %v814, %v816
        %v821 = vsel %vm819, %v816, %v818
        %v823 = vsel %vm291, %v807, 0
        %v825 = vsel %vm295, %v820, 0
        %v827 = vsel %vm295, %v821, 0
        %v829 = vsel %vm295, %v818, 0
        %831 = vmatprep.subr.mxu0 0.0
        %832 = vmatpush1.msra.mxu0 0.0
        %833 = vmatprep.subr.mxu0 0.0
        %834 = vmatpush1.msra.mxu0 0.0
        %835 = vmatprep.subr.mxu0 0.0
        %836 = vmatpush1.msra.mxu0 0.0
        %837 = vmatprep.subr.mxu0 0.0
        %838 = vmatpush1.msra.mxu0 0.0
        %839 = vmatprep.subr.mxu0 0.0
        %840 = vmatpush1.msra.mxu0 0.0
        %841 = vmatprep.subr.mxu0 0.0
        %842 = vmatpush1.msra.mxu0 0.0
        %843 = vmatprep.subr.mxu0 0.0
        %844 = vmatpush1.msra.mxu0 0.0
        %845 = vmatprep.subr.mxu0 0.0
        %846 = vmatpush1.msra.mxu0 0.0
        %847 = vmatprep.subr.mxu0 0.0
        %848 = vmatpush1.msra.mxu0 0.0
        %849 = vmatprep.subr.mxu0 0.0
        %850 = vmatpush1.msra.mxu0 0.0
        %851 = vmatprep.subr.mxu0 0.0
        %852 = vmatpush1.msra.mxu0 0.0
        %853 = vmatprep.subr.mxu0 0.0
        %854 = vmatpush1.msra.mxu0 0.0
        %855 = vmatprep.subr.mxu0 0.0
        %856 = vmatpush1.msra.mxu0 0.0
        %857 = vmatprep.subr.mxu0 0.0
        %858 = vmatpush1.msra.mxu0 0.0
        %859 = vmatprep.subr.mxu0 0.0
        %860 = vmatpush1.msra.mxu0 0.0
        %861 = vmatprep.subr.mxu0 %v827
        %862 = vmatpush1.msra.mxu0 %v825
        %863 = vmatprep.subr.mxu0 0.0
        %864 = vmatpush2.msra.mxu0 0.0
        %865 = vmatprep.subr.mxu0 0.0
        %866 = vmatpush2.msra.mxu0 0.0
        %867 = vmatprep.subr.mxu0 0.0
        %868 = vmatpush2.msra.mxu0 0.0
        %869 = vmatprep.subr.mxu0 0.0
        %870 = vmatpush2.msra.mxu0 0.0
        %871 = vmatprep.subr.mxu0 0.0
        %872 = vmatpush2.msra.mxu0 0.0
        %873 = vmatprep.subr.mxu0 0.0
        %874 = vmatpush2.msra.mxu0 0.0
        %875 = vmatprep.subr.mxu0 0.0
        %876 = vmatpush2.msra.mxu0 0.0
        %877 = vmatprep.subr.mxu0 0.0
        %878 = vmatpush2.msra.mxu0 0.0
        %879 = vmatprep.subr.mxu0 0.0
        %880 = vmatpush2.msra.mxu0 0.0
        %881 = vmatprep.subr.mxu0 0.0
        %882 = vmatpush2.msra.mxu0 0.0
        %883 = vmatprep.subr.mxu0 0.0
        %884 = vmatpush2.msra.mxu0 0.0
        %885 = vmatprep.subr.mxu0 0.0
        %886 = vmatpush2.msra.mxu0 0.0
        %887 = vmatprep.subr.mxu0 0.0
        %888 = vmatpush2.msra.mxu0 0.0
        %889 = vmatprep.subr.mxu0 0.0
        %890 = vmatpush2.msra.mxu0 0.0
        %891 = vmatprep.subr.mxu0 0.0
        %892 = vmatpush2.msra.mxu0 0.0
        %893 = vmatprep.subr.mxu0 0.0
        %894 = vmatpush2.msra.mxu0 0.0
        %895 = vmatprep.mubr.f32.mxu0 0.0
        %896 = vmatmul.mubr.f32.gmra.mxu0 %v823
        %v897 = vpop.f32.mrf.mxu0
        %v898 = vadd.f32 0.0, %v897
        %v899 = vpop.f32.mrf.mxu0
        %v900 = vadd.f32 0.0, %v899
        %901 = vdwg.mxu0
        %902 = vmatprep.subr.mxu0 0.0
        %903 = vmatpush1.msra.mxu0 0.0
        %904 = vmatprep.subr.mxu0 0.0
        %905 = vmatpush1.msra.mxu0 0.0
        %906 = vmatprep.subr.mxu0 0.0
        %907 = vmatpush1.msra.mxu0 0.0
        %908 = vmatprep.subr.mxu0 0.0
        %909 = vmatpush1.msra.mxu0 0.0
        %910 = vmatprep.subr.mxu0 0.0
        %911 = vmatpush1.msra.mxu0 0.0
        %912 = vmatprep.subr.mxu0 0.0
        %913 = vmatpush1.msra.mxu0 0.0
        %914 = vmatprep.subr.mxu0 0.0
        %915 = vmatpush1.msra.mxu0 0.0
        %916 = vmatprep.subr.mxu0 0.0
        %917 = vmatpush1.msra.mxu0 0.0
        %918 = vmatprep.subr.mxu0 0.0
        %919 = vmatpush1.msra.mxu0 0.0
        %920 = vmatprep.subr.mxu0 0.0
        %921 = vmatpush1.msra.mxu0 0.0
        %922 = vmatprep.subr.mxu0 0.0
        %923 = vmatpush1.msra.mxu0 0.0
        %924 = vmatprep.subr.mxu0 0.0
        %925 = vmatpush1.msra.mxu0 0.0
        %926 = vmatprep.subr.mxu0 0.0
        %927 = vmatpush1.msra.mxu0 0.0
        %928 = vmatprep.subr.mxu0 0.0
        %929 = vmatpush1.msra.mxu0 0.0
        %930 = vmatprep.subr.mxu0 0.0
        %931 = vmatpush1.msra.mxu0 0.0
        %932 = vmatprep.subr.mxu0 0.0
        %933 = vmatpush1.msra.mxu0 %v829
        %934 = vmatprep.subr.mxu0 0.0
        %935 = vmatpush2.msra.mxu0 0.0
        %936 = vmatprep.subr.mxu0 0.0
        %937 = vmatpush2.msra.mxu0 0.0
        %938 = vmatprep.subr.mxu0 0.0
        %939 = vmatpush2.msra.mxu0 0.0
        %940 = vmatprep.subr.mxu0 0.0
        %941 = vmatpush2.msra.mxu0 0.0
        %942 = vmatprep.subr.mxu0 0.0
        %943 = vmatpush2.msra.mxu0 0.0
        %944 = vmatprep.subr.mxu0 0.0
        %945 = vmatpush2.msra.mxu0 0.0
        %946 = vmatprep.subr.mxu0 0.0
        %947 = vmatpush2.msra.mxu0 0.0
        %948 = vmatprep.subr.mxu0 0.0
        %949 = vmatpush2.msra.mxu0 0.0
        %950 = vmatprep.subr.mxu0 0.0
        %951 = vmatpush2.msra.mxu0 0.0
        %952 = vmatprep.subr.mxu0 0.0
        %953 = vmatpush2.msra.mxu0 0.0
        %954 = vmatprep.subr.mxu0 0.0
        %955 = vmatpush2.msra.mxu0 0.0
        %956 = vmatprep.subr.mxu0 0.0
        %957 = vmatpush2.msra.mxu0 0.0
        %958 = vmatprep.subr.mxu0 0.0
        %959 = vmatpush2.msra.mxu0 0.0
        %960 = vmatprep.subr.mxu0 0.0
        %961 = vmatpush2.msra.mxu0 0.0
        %962 = vmatprep.subr.mxu0 0.0
        %963 = vmatpush2.msra.mxu0 0.0
        %964 = vmatprep.subr.mxu0 0.0
        %965 = vmatpush2.msra.mxu0 0.0
        %966 = vmatprep.mubr.f32.mxu0 0.0
        %967 = vmatmul.mubr.f32.gmra.mxu0 %v823
        %v968 = vpop.f32.mrf.mxu0
        %v969 = vadd.f32 0.0, %v968
        %v970 = vpop.f32.mrf.mxu0
        %971 = vdwg.mxu0
        %v974 = vcombine.low %v898, %v900
        %v976 = vadd.f32 %v808, %v974
        %v977 = vadd.f32 %v809, %v969
        %978 = vst [vmem:[#allocation2 + $0x4] sm:$0xff] %v976
        %979 = vst.msk [vmem:[#allocation2 + $0xc] sm:$0xf] %vm450, %v977
        %v980 = vld [vmem:[%s276] sm:$0xff]
        %v981 = vld [vmem:[%s276 + $0x8] sm:$0xf]
        %s982 = scalar_lea.vmem %s1, 16
        %v983 = vld [vmem:[%s982] sm:$0xf]
        %v984 = vld [vmem:[#allocation2 + $0x4] sm:$0xff]
        %v985 = vld [vmem:[#allocation2 + $0xc] sm:$0xf]
        %v988 = vcombine.high %v980, %v980
        %989 = vrot.lane.b32.xlu0 %v980, 109
        %v990 = vpop.permute.xlu0 %989
        %991 = vrot.lane.b32.xlu0 %v988, 109
        %v992 = vpop.permute.xlu0 %991
        %993 = vrot.lane.b32.xlu0 %v981, 109
        %v994 = vpop.permute.xlu0 %993
        %vm995 = vcmask 891904
        %v996 = vsel %vm995, %v990, %v992
        %v997 = vsel %vm995, %v992, %v994
        %v999 = vsel %vm291, %v983, 0
        %v1001 = vsel %vm295, %v996, 0
        %v1003 = vsel %vm295, %v997, 0
        %v1005 = vsel %vm295, %v994, 0
        %1007 = vmatprep.subr.mxu0 0.0
        %1008 = vmatpush1.msra.mxu0 0.0
        %1009 = vmatprep.subr.mxu0 0.0
        %1010 = vmatpush1.msra.mxu0 0.0
        %1011 = vmatprep.subr.mxu0 0.0
        %1012 = vmatpush1.msra.mxu0 0.0
        %1013 = vmatprep.subr.mxu0 0.0
        %1014 = vmatpush1.msra.mxu0 0.0
        %1015 = vmatprep.subr.mxu0 0.0
        %1016 = vmatpush1.msra.mxu0 0.0
        %1017 = vmatprep.subr.mxu0 0.0
        %1018 = vmatpush1.msra.mxu0 0.0
        %1019 = vmatprep.subr.mxu0 0.0
        %1020 = vmatpush1.msra.mxu0 0.0
        %1021 = vmatprep.subr.mxu0 0.0
        %1022 = vmatpush1.msra.mxu0 0.0
        %1023 = vmatprep.subr.mxu0 0.0
        %1024 = vmatpush1.msra.mxu0 0.0
        %1025 = vmatprep.subr.mxu0 0.0
        %1026 = vmatpush1.msra.mxu0 0.0
        %1027 = vmatprep.subr.mxu0 0.0
        %1028 = vmatpush1.msra.mxu0 0.0
        %1029 = vmatprep.subr.mxu0 0.0
        %1030 = vmatpush1.msra.mxu0 0.0
        %1031 = vmatprep.subr.mxu0 0.0
        %1032 = vmatpush1.msra.mxu0 0.0
        %1033 = vmatprep.subr.mxu0 0.0
        %1034 = vmatpush1.msra.mxu0 0.0
        %1035 = vmatprep.subr.mxu0 0.0
        %1036 = vmatpush1.msra.mxu0 0.0
        %1037 = vmatprep.subr.mxu0 %v1003
        %1038 = vmatpush1.msra.mxu0 %v1001
        %1039 = vmatprep.subr.mxu0 0.0
        %1040 = vmatpush2.msra.mxu0 0.0
        %1041 = vmatprep.subr.mxu0 0.0
        %1042 = vmatpush2.msra.mxu0 0.0
        %1043 = vmatprep.subr.mxu0 0.0
        %1044 = vmatpush2.msra.mxu0 0.0
        %1045 = vmatprep.subr.mxu0 0.0
        %1046 = vmatpush2.msra.mxu0 0.0
        %1047 = vmatprep.subr.mxu0 0.0
        %1048 = vmatpush2.msra.mxu0 0.0
        %1049 = vmatprep.subr.mxu0 0.0
        %1050 = vmatpush2.msra.mxu0 0.0
        %1051 = vmatprep.subr.mxu0 0.0
        %1052 = vmatpush2.msra.mxu0 0.0
        %1053 = vmatprep.subr.mxu0 0.0
        %1054 = vmatpush2.msra.mxu0 0.0
        %1055 = vmatprep.subr.mxu0 0.0
        %1056 = vmatpush2.msra.mxu0 0.0
        %1057 = vmatprep.subr.mxu0 0.0
        %1058 = vmatpush2.msra.mxu0 0.0
        %1059 = vmatprep.subr.mxu0 0.0
        %1060 = vmatpush2.msra.mxu0 0.0
        %1061 = vmatprep.subr.mxu0 0.0
        %1062 = vmatpush2.msra.mxu0 0.0
        %1063 = vmatprep.subr.mxu0 0.0
        %1064 = vmatpush2.msra.mxu0 0.0
        %1065 = vmatprep.subr.mxu0 0.0
        %1066 = vmatpush2.msra.mxu0 0.0
        %1067 = vmatprep.subr.mxu0 0.0
        %1068 = vmatpush2.msra.mxu0 0.0
        %1069 = vmatprep.subr.mxu0 0.0
        %1070 = vmatpush2.msra.mxu0 0.0
        %1071 = vmatprep.mubr.f32.mxu0 0.0
        %1072 = vmatmul.mubr.f32.gmra.mxu0 %v999
        %v1073 = vpop.f32.mrf.mxu0
        %v1074 = vadd.f32 0.0, %v1073
        %v1075 = vpop.f32.mrf.mxu0
        %v1076 = vadd.f32 0.0, %v1075
        %1077 = vdwg.mxu0
        %1078 = vmatprep.subr.mxu0 0.0
        %1079 = vmatpush1.msra.mxu0 0.0
        %1080 = vmatprep.subr.mxu0 0.0
        %1081 = vmatpush1.msra.mxu0 0.0
        %1082 = vmatprep.subr.mxu0 0.0
        %1083 = vmatpush1.msra.mxu0 0.0
        %1084 = vmatprep.subr.mxu0 0.0
        %1085 = vmatpush1.msra.mxu0 0.0
        %1086 = vmatprep.subr.mxu0 0.0
        %1087 = vmatpush1.msra.mxu0 0.0
        %1088 = vmatprep.subr.mxu0 0.0
        %1089 = vmatpush1.msra.mxu0 0.0
        %1090 = vmatprep.subr.mxu0 0.0
        %1091 = vmatpush1.msra.mxu0 0.0
        %1092 = vmatprep.subr.mxu0 0.0
        %1093 = vmatpush1.msra.mxu0 0.0
        %1094 = vmatprep.subr.mxu0 0.0
        %1095 = vmatpush1.msra.mxu0 0.0
        %1096 = vmatprep.subr.mxu0 0.0
        %1097 = vmatpush1.msra.mxu0 0.0
        %1098 = vmatprep.subr.mxu0 0.0
        %1099 = vmatpush1.msra.mxu0 0.0
        %1100 = vmatprep.subr.mxu0 0.0
        %1101 = vmatpush1.msra.mxu0 0.0
        %1102 = vmatprep.subr.mxu0 0.0
        %1103 = vmatpush1.msra.mxu0 0.0
        %1104 = vmatprep.subr.mxu0 0.0
        %1105 = vmatpush1.msra.mxu0 0.0
        %1106 = vmatprep.subr.mxu0 0.0
        %1107 = vmatpush1.msra.mxu0 0.0
        %1108 = vmatprep.subr.mxu0 0.0
        %1109 = vmatpush1.msra.mxu0 %v1005
        %1110 = vmatprep.subr.mxu0 0.0
        %1111 = vmatpush2.msra.mxu0 0.0
        %1112 = vmatprep.subr.mxu0 0.0
        %1113 = vmatpush2.msra.mxu0 0.0
        %1114 = vmatprep.subr.mxu0 0.0
        %1115 = vmatpush2.msra.mxu0 0.0
        %1116 = vmatprep.subr.mxu0 0.0
        %1117 = vmatpush2.msra.mxu0 0.0
        %1118 = vmatprep.subr.mxu0 0.0
        %1119 = vmatpush2.msra.mxu0 0.0
        %1120 = vmatprep.subr.mxu0 0.0
        %1121 = vmatpush2.msra.mxu0 0.0
        %1122 = vmatprep.subr.mxu0 0.0
        %1123 = vmatpush2.msra.mxu0 0.0
        %1124 = vmatprep.subr.mxu0 0.0
        %1125 = vmatpush2.msra.mxu0 0.0
        %1126 = vmatprep.subr.mxu0 0.0
        %1127 = vmatpush2.msra.mxu0 0.0
        %1128 = vmatprep.subr.mxu0 0.0
        %1129 = vmatpush2.msra.mxu0 0.0
        %1130 = vmatprep.subr.mxu0 0.0
        %1131 = vmatpush2.msra.mxu0 0.0
        %1132 = vmatprep.subr.mxu0 0.0
        %1133 = vmatpush2.msra.mxu0 0.0
        %1134 = vmatprep.subr.mxu0 0.0
        %1135 = vmatpush2.msra.mxu0 0.0
        %1136 = vmatprep.subr.mxu0 0.0
        %1137 = vmatpush2.msra.mxu0 0.0
        %1138 = vmatprep.subr.mxu0 0.0
        %1139 = vmatpush2.msra.mxu0 0.0
        %1140 = vmatprep.subr.mxu0 0.0
        %1141 = vmatpush2.msra.mxu0 0.0
        %1142 = vmatprep.mubr.f32.mxu0 0.0
        %1143 = vmatmul.mubr.f32.gmra.mxu0 %v999
        %v1144 = vpop.f32.mrf.mxu0
        %v1145 = vadd.f32 0.0, %v1144
        %v1146 = vpop.f32.mrf.mxu0
        %1147 = vdwg.mxu0
        %v1150 = vcombine.low %v1074, %v1076
        %v1152 = vadd.f32 %v984, %v1150
        %v1153 = vadd.f32 %v985, %v1145
        %1154 = vst [vmem:[#allocation2 + $0x4] sm:$0xff] %v1152
        %1155 = vst.msk [vmem:[#allocation2 + $0xc] sm:$0xf] %vm450, %v1153
        %v1156 = vld [vmem:[%s276] sm:$0xff]
        %v1157 = vld [vmem:[%s276 + $0x8] sm:$0xf]
        %s1158 = scalar_lea.vmem %s1, 20
        %v1159 = vld [vmem:[%s1158] sm:$0xf]
        %v1160 = vld [vmem:[#allocation2 + $0x4] sm:$0xff]
        %v1161 = vld [vmem:[#allocation2 + $0xc] sm:$0xf]
        %v1164 = vcombine.high %v1156, %v1156
        %1165 = vrot.lane.b32.xlu0 %v1156, 108
        %v1166 = vpop.permute.xlu0 %1165
        %1167 = vrot.lane.b32.xlu0 %v1164, 108
        %v1168 = vpop.permute.xlu0 %1167
        %1169 = vrot.lane.b32.xlu0 %v1157, 108
        %v1170 = vpop.permute.xlu0 %1169
        %vm1171 = vcmask 883712
        %v1172 = vsel %vm1171, %v1166, %v1168
        %v1173 = vsel %vm1171, %v1168, %v1170
        %v1175 = vsel %vm291, %v1159, 0
        %v1177 = vsel %vm295, %v1172, 0
        %v1179 = vsel %vm295, %v1173, 0
        %v1181 = vsel %vm295, %v1170, 0
        %1183 = vmatprep.subr.mxu0 0.0
        %1184 = vmatpush1.msra.mxu0 0.0
        %1185 = vmatprep.subr.mxu0 0.0
        %1186 = vmatpush1.msra.mxu0 0.0
        %1187 = vmatprep.subr.mxu0 0.0
        %1188 = vmatpush1.msra.mxu0 0.0
        %1189 = vmatprep.subr.mxu0 0.0
        %1190 = vmatpush1.msra.mxu0 0.0
        %1191 = vmatprep.subr.mxu0 0.0
        %1192 = vmatpush1.msra.mxu0 0.0
        %1193 = vmatprep.subr.mxu0 0.0
        %1194 = vmatpush1.msra.mxu0 0.0
        %1195 = vmatprep.subr.mxu0 0.0
        %1196 = vmatpush1.msra.mxu0 0.0
        %1197 = vmatprep.subr.mxu0 0.0
        %1198 = vmatpush1.msra.mxu0 0.0
        %1199 = vmatprep.subr.mxu0 0.0
        %1200 = vmatpush1.msra.mxu0 0.0
        %1201 = vmatprep.subr.mxu0 0.0
        %1202 = vmatpush1.msra.mxu0 0.0
        %1203 = vmatprep.subr.mxu0 0.0
        %1204 = vmatpush1.msra.mxu0 0.0
        %1205 = vmatprep.subr.mxu0 0.0
        %1206 = vmatpush1.msra.mxu0 0.0
        %1207 = vmatprep.subr.mxu0 0.0
        %1208 = vmatpush1.msra.mxu0 0.0
        %1209 = vmatprep.subr.mxu0 0.0
        %1210 = vmatpush1.msra.mxu0 0.0
        %1211 = vmatprep.subr.mxu0 0.0
        %1212 = vmatpush1.msra.mxu0 0.0
        %1213 = vmatprep.subr.mxu0 %v1179
        %1214 = vmatpush1.msra.mxu0 %v1177
        %1215 = vmatprep.subr.mxu0 0.0
        %1216 = vmatpush2.msra.mxu0 0.0
        %1217 = vmatprep.subr.mxu0 0.0
        %1218 = vmatpush2.msra.mxu0 0.0
        %1219 = vmatprep.subr.mxu0 0.0
        %1220 = vmatpush2.msra.mxu0 0.0
        %1221 = vmatprep.subr.mxu0 0.0
        %1222 = vmatpush2.msra.mxu0 0.0
        %1223 = vmatprep.subr.mxu0 0.0
        %1224 = vmatpush2.msra.mxu0 0.0
        %1225 = vmatprep.subr.mxu0 0.0
        %1226 = vmatpush2.msra.mxu0 0.0
        %1227 = vmatprep.subr.mxu0 0.0
        %1228 = vmatpush2.msra.mxu0 0.0
        %1229 = vmatprep.subr.mxu0 0.0
        %1230 = vmatpush2.msra.mxu0 0.0
        %1231 = vmatprep.subr.mxu0 0.0
        %1232 = vmatpush2.msra.mxu0 0.0
        %1233 = vmatprep.subr.mxu0 0.0
        %1234 = vmatpush2.msra.mxu0 0.0
        %1235 = vmatprep.subr.mxu0 0.0
        %1236 = vmatpush2.msra.mxu0 0.0
        %1237 = vmatprep.subr.mxu0 0.0
        %1238 = vmatpush2.msra.mxu0 0.0
        %1239 = vmatprep.subr.mxu0 0.0
        %1240 = vmatpush2.msra.mxu0 0.0
        %1241 = vmatprep.subr.mxu0 0.0
        %1242 = vmatpush2.msra.mxu0 0.0
        %1243 = vmatprep.subr.mxu0 0.0
        %1244 = vmatpush2.msra.mxu0 0.0
        %1245 = vmatprep.subr.mxu0 0.0
        %1246 = vmatpush2.msra.mxu0 0.0
        %1247 = vmatprep.mubr.f32.mxu0 0.0
        %1248 = vmatmul.mubr.f32.gmra.mxu0 %v1175
        %v1249 = vpop.f32.mrf.mxu0
        %v1250 = vadd.f32 0.0, %v1249
        %v1251 = vpop.f32.mrf.mxu0
        %v1252 = vadd.f32 0.0, %v1251
        %1253 = vdwg.mxu0
        %1254 = vmatprep.subr.mxu0 0.0
        %1255 = vmatpush1.msra.mxu0 0.0
        %1256 = vmatprep.subr.mxu0 0.0
        %1257 = vmatpush1.msra.mxu0 0.0
        %1258 = vmatprep.subr.mxu0 0.0
        %1259 = vmatpush1.msra.mxu0 0.0
        %1260 = vmatprep.subr.mxu0 0.0
        %1261 = vmatpush1.msra.mxu0 0.0
        %1262 = vmatprep.subr.mxu0 0.0
        %1263 = vmatpush1.msra.mxu0 0.0
        %1264 = vmatprep.subr.mxu0 0.0
        %1265 = vmatpush1.msra.mxu0 0.0
        %1266 = vmatprep.subr.mxu0 0.0
        %1267 = vmatpush1.msra.mxu0 0.0
        %1268 = vmatprep.subr.mxu0 0.0
        %1269 = vmatpush1.msra.mxu0 0.0
        %1270 = vmatprep.subr.mxu0 0.0
        %1271 = vmatpush1.msra.mxu0 0.0
        %1272 = vmatprep.subr.mxu0 0.0
        %1273 = vmatpush1.msra.mxu0 0.0
        %1274 = vmatprep.subr.mxu0 0.0
        %1275 = vmatpush1.msra.mxu0 0.0
        %1276 = vmatprep.subr.mxu0 0.0
        %1277 = vmatpush1.msra.mxu0 0.0
        %1278 = vmatprep.subr.mxu0 0.0
        %1279 = vmatpush1.msra.mxu0 0.0
        %1280 = vmatprep.subr.mxu0 0.0
        %1281 = vmatpush1.msra.mxu0 0.0
        %1282 = vmatprep.subr.mxu0 0.0
        %1283 = vmatpush1.msra.mxu0 0.0
        %1284 = vmatprep.subr.mxu0 0.0
        %1285 = vmatpush1.msra.mxu0 %v1181
        %1286 = vmatprep.subr.mxu0 0.0
        %1287 = vmatpush2.msra.mxu0 0.0
        %1288 = vmatprep.subr.mxu0 0.0
        %1289 = vmatpush2.msra.mxu0 0.0
        %1290 = vmatprep.subr.mxu0 0.0
        %1291 = vmatpush2.msra.mxu0 0.0
        %1292 = vmatprep.subr.mxu0 0.0
        %1293 = vmatpush2.msra.mxu0 0.0
        %1294 = vmatprep.subr.mxu0 0.0
        %1295 = vmatpush2.msra.mxu0 0.0
        %1296 = vmatprep.subr.mxu0 0.0
        %1297 = vmatpush2.msra.mxu0 0.0
        %1298 = vmatprep.subr.mxu0 0.0
        %1299 = vmatpush2.msra.mxu0 0.0
        %1300 = vmatprep.subr.mxu0 0.0
        %1301 = vmatpush2.msra.mxu0 0.0
        %1302 = vmatprep.subr.mxu0 0.0
        %1303 = vmatpush2.msra.mxu0 0.0
        %1304 = vmatprep.subr.mxu0 0.0
        %1305 = vmatpush2.msra.mxu0 0.0
        %1306 = vmatprep.subr.mxu0 0.0
        %1307 = vmatpush2.msra.mxu0 0.0
        %1308 = vmatprep.subr.mxu0 0.0
        %1309 = vmatpush2.msra.mxu0 0.0
        %1310 = vmatprep.subr.mxu0 0.0
        %1311 = vmatpush2.msra.mxu0 0.0
        %1312 = vmatprep.subr.mxu0 0.0
        %1313 = vmatpush2.msra.mxu0 0.0
        %1314 = vmatprep.subr.mxu0 0.0
        %1315 = vmatpush2.msra.mxu0 0.0
        %1316 = vmatprep.subr.mxu0 0.0
        %1317 = vmatpush2.msra.mxu0 0.0
        %1318 = vmatprep.mubr.f32.mxu0 0.0
        %1319 = vmatmul.mubr.f32.gmra.mxu0 %v1175
        %v1320 = vpop.f32.mrf.mxu0
        %v1321 = vadd.f32 0.0, %v1320
        %v1322 = vpop.f32.mrf.mxu0
        %1323 = vdwg.mxu0
        %v1326 = vcombine.low %v1250, %v1252
        %v1328 = vadd.f32 %v1160, %v1326
        %v1329 = vadd.f32 %v1161, %v1321
        %1330 = vst [vmem:[#allocation2 + $0x4] sm:$0xff] %v1328
        %1331 = vst.msk [vmem:[#allocation2 + $0xc] sm:$0xf] %vm450, %v1329
        %v1332 = vld [vmem:[%s276] sm:$0xff]
        %v1333 = vld [vmem:[%s276 + $0x8] sm:$0xf]
        %s1334 = scalar_lea.vmem %s1, 24
        %v1335 = vld [vmem:[%s1334] sm:$0xf]
        %v1336 = vld [vmem:[#allocation2 + $0x4] sm:$0xff]
        %v1337 = vld [vmem:[#allocation2 + $0xc] sm:$0xf]
        %v1340 = vcombine.high %v1332, %v1332
        %1341 = vrot.lane.b32.xlu0 %v1332, 92
        %v1342 = vpop.permute.xlu0 %1341
        %1343 = vrot.lane.b32.xlu0 %v1340, 92
        %v1344 = vpop.permute.xlu0 %1343
        %1345 = vrot.lane.b32.xlu0 %v1333, 92
        %v1346 = vpop.permute.xlu0 %1345
        %vm1347 = vcmask 752640
        %v1348 = vsel %vm1347, %v1342, %v1344
        %v1349 = vsel %vm1347, %v1344, %v1346
        %v1351 = vsel %vm291, %v1335, 0
        %v1353 = vsel %vm295, %v1348, 0
        %v1355 = vsel %vm295, %v1349, 0
        %v1357 = vsel %vm295, %v1346, 0
        %1359 = vmatprep.subr.mxu0 0.0
        %1360 = vmatpush1.msra.mxu0 0.0
        %1361 = vmatprep.subr.mxu0 0.0
        %1362 = vmatpush1.msra.mxu0 0.0
        %1363 = vmatprep.subr.mxu0 0.0
        %1364 = vmatpush1.msra.mxu0 0.0
        %1365 = vmatprep.subr.mxu0 0.0
        %1366 = vmatpush1.msra.mxu0 0.0
        %1367 = vmatprep.subr.mxu0 0.0
        %1368 = vmatpush1.msra.mxu0 0.0
        %1369 = vmatprep.subr.mxu0 0.0
        %1370 = vmatpush1.msra.mxu0 0.0
        %1371 = vmatprep.subr.mxu0 0.0
        %1372 = vmatpush1.msra.mxu0 0.0
        %1373 = vmatprep.subr.mxu0 0.0
        %1374 = vmatpush1.msra.mxu0 0.0
        %1375 = vmatprep.subr.mxu0 0.0
        %1376 = vmatpush1.msra.mxu0 0.0
        %1377 = vmatprep.subr.mxu0 0.0
        %1378 = vmatpush1.msra.mxu0 0.0
        %1379 = vmatprep.subr.mxu0 0.0
        %1380 = vmatpush1.msra.mxu0 0.0
        %1381 = vmatprep.subr.mxu0 0.0
        %1382 = vmatpush1.msra.mxu0 0.0
        %1383 = vmatprep.subr.mxu0 0.0
        %1384 = vmatpush1.msra.mxu0 0.0
        %1385 = vmatprep.subr.mxu0 0.0
        %1386 = vmatpush1.msra.mxu0 0.0
        %1387 = vmatprep.subr.mxu0 0.0
        %1388 = vmatpush1.msra.mxu0 0.0
        %1389 = vmatprep.subr.mxu0 %v1355
        %1390 = vmatpush1.msra.mxu0 %v1353
        %1391 = vmatprep.subr.mxu0 0.0
        %1392 = vmatpush2.msra.mxu0 0.0
        %1393 = vmatprep.subr.mxu0 0.0
        %1394 = vmatpush2.msra.mxu0 0.0
        %1395 = vmatprep.subr.mxu0 0.0
        %1396 = vmatpush2.msra.mxu0 0.0
        %1397 = vmatprep.subr.mxu0 0.0
        %1398 = vmatpush2.msra.mxu0 0.0
        %1399 = vmatprep.subr.mxu0 0.0
        %1400 = vmatpush2.msra.mxu0 0.0
        %1401 = vmatprep.subr.mxu0 0.0
        %1402 = vmatpush2.msra.mxu0 0.0
        %1403 = vmatprep.subr.mxu0 0.0
        %1404 = vmatpush2.msra.mxu0 0.0
        %1405 = vmatprep.subr.mxu0 0.0
        %1406 = vmatpush2.msra.mxu0 0.0
        %1407 = vmatprep.subr.mxu0 0.0
        %1408 = vmatpush2.msra.mxu0 0.0
        %1409 = vmatprep.subr.mxu0 0.0
        %1410 = vmatpush2.msra.mxu0 0.0
        %1411 = vmatprep.subr.mxu0 0.0
        %1412 = vmatpush2.msra.mxu0 0.0
        %1413 = vmatprep.subr.mxu0 0.0
        %1414 = vmatpush2.msra.mxu0 0.0
        %1415 = vmatprep.subr.mxu0 0.0
        %1416 = vmatpush2.msra.mxu0 0.0
        %1417 = vmatprep.subr.mxu0 0.0
        %1418 = vmatpush2.msra.mxu0 0.0
        %1419 = vmatprep.subr.mxu0 0.0
        %1420 = vmatpush2.msra.mxu0 0.0
        %1421 = vmatprep.subr.mxu0 0.0
        %1422 = vmatpush2.msra.mxu0 0.0
        %1423 = vmatprep.mubr.f32.mxu0 0.0
        %1424 = vmatmul.mubr.f32.gmra.mxu0 %v1351
        %v1425 = vpop.f32.mrf.mxu0
        %v1426 = vadd.f32 0.0, %v1425
        %v1427 = vpop.f32.mrf.mxu0
        %v1428 = vadd.f32 0.0, %v1427
        %1429 = vdwg.mxu0
        %1430 = vmatprep.subr.mxu0 0.0
        %1431 = vmatpush1.msra.mxu0 0.0
        %1432 = vmatprep.subr.mxu0 0.0
        %1433 = vmatpush1.msra.mxu0 0.0
        %1434 = vmatprep.subr.mxu0 0.0
        %1435 = vmatpush1.msra.mxu0 0.0
        %1436 = vmatprep.subr.mxu0 0.0
        %1437 = vmatpush1.msra.mxu0 0.0
        %1438 = vmatprep.subr.mxu0 0.0
        %1439 = vmatpush1.msra.mxu0 0.0
        %1440 = vmatprep.subr.mxu0 0.0
        %1441 = vmatpush1.msra.mxu0 0.0
        %1442 = vmatprep.subr.mxu0 0.0
        %1443 = vmatpush1.msra.mxu0 0.0
        %1444 = vmatprep.subr.mxu0 0.0
        %1445 = vmatpush1.msra.mxu0 0.0
        %1446 = vmatprep.subr.mxu0 0.0
        %1447 = vmatpush1.msra.mxu0 0.0
        %1448 = vmatprep.subr.mxu0 0.0
        %1449 = vmatpush1.msra.mxu0 0.0
        %1450 = vmatprep.subr.mxu0 0.0
        %1451 = vmatpush1.msra.mxu0 0.0
        %1452 = vmatprep.subr.mxu0 0.0
        %1453 = vmatpush1.msra.mxu0 0.0
        %1454 = vmatprep.subr.mxu0 0.0
        %1455 = vmatpush1.msra.mxu0 0.0
        %1456 = vmatprep.subr.mxu0 0.0
        %1457 = vmatpush1.msra.mxu0 0.0
        %1458 = vmatprep.subr.mxu0 0.0
        %1459 = vmatpush1.msra.mxu0 0.0
        %1460 = vmatprep.subr.mxu0 0.0
        %1461 = vmatpush1.msra.mxu0 %v1357
        %1462 = vmatprep.subr.mxu0 0.0
        %1463 = vmatpush2.msra.mxu0 0.0
        %1464 = vmatprep.subr.mxu0 0.0
        %1465 = vmatpush2.msra.mxu0 0.0
        %1466 = vmatprep.subr.mxu0 0.0
        %1467 = vmatpush2.msra.mxu0 0.0
        %1468 = vmatprep.subr.mxu0 0.0
        %1469 = vmatpush2.msra.mxu0 0.0
        %1470 = vmatprep.subr.mxu0 0.0
        %1471 = vmatpush2.msra.mxu0 0.0
        %1472 = vmatprep.subr.mxu0 0.0
        %1473 = vmatpush2.msra.mxu0 0.0
        %1474 = vmatprep.subr.mxu0 0.0
        %1475 = vmatpush2.msra.mxu0 0.0
        %1476 = vmatprep.subr.mxu0 0.0
        %1477 = vmatpush2.msra.mxu0 0.0
        %1478 = vmatprep.subr.mxu0 0.0
        %1479 = vmatpush2.msra.mxu0 0.0
        %1480 = vmatprep.subr.mxu0 0.0
        %1481 = vmatpush2.msra.mxu0 0.0
        %1482 = vmatprep.subr.mxu0 0.0
        %1483 = vmatpush2.msra.mxu0 0.0
        %1484 = vmatprep.subr.mxu0 0.0
        %1485 = vmatpush2.msra.mxu0 0.0
        %1486 = vmatprep.subr.mxu0 0.0
        %1487 = vmatpush2.msra.mxu0 0.0
        %1488 = vmatprep.subr.mxu0 0.0
        %1489 = vmatpush2.msra.mxu0 0.0
        %1490 = vmatprep.subr.mxu0 0.0
        %1491 = vmatpush2.msra.mxu0 0.0
        %1492 = vmatprep.subr.mxu0 0.0
        %1493 = vmatpush2.msra.mxu0 0.0
        %1494 = vmatprep.mubr.f32.mxu0 0.0
        %1495 = vmatmul.mubr.f32.gmra.mxu0 %v1351
        %v1496 = vpop.f32.mrf.mxu0
        %v1497 = vadd.f32 0.0, %v1496
        %v1498 = vpop.f32.mrf.mxu0
        %1499 = vdwg.mxu0
        %v1502 = vcombine.low %v1426, %v1428
        %v1504 = vadd.f32 %v1336, %v1502
        %v1505 = vadd.f32 %v1337, %v1497
        %1506 = vst [vmem:[#allocation2 + $0x4] sm:$0xff] %v1504
        %1507 = vst.msk [vmem:[#allocation2 + $0xc] sm:$0xf] %vm450, %v1505
        %v1508 = vld [vmem:[%s276] sm:$0xff]
        %v1509 = vld [vmem:[%s276 + $0x8] sm:$0xf]
        %s1510 = scalar_lea.vmem %s1, 28
        %v1511 = vld [vmem:[%s1510] sm:$0xf]
        %v1512 = vld [vmem:[#allocation2 + $0x4] sm:$0xff]
        %v1513 = vld [vmem:[#allocation2 + $0xc] sm:$0xf]
        %v1516 = vcombine.high %v1508, %v1508
        %1517 = vrot.lane.b32.xlu0 %v1508, 91
        %v1518 = vpop.permute.xlu0 %1517
        %1519 = vrot.lane.b32.xlu0 %v1516, 91
        %v1520 = vpop.permute.xlu0 %1519
        %1521 = vrot.lane.b32.xlu0 %v1509, 91
        %v1522 = vpop.permute.xlu0 %1521
        %vm1523 = vcmask 744448
        %v1524 = vsel %vm1523, %v1518, %v1520
        %v1525 = vsel %vm1523, %v1520, %v1522
        %v1527 = vsel %vm291, %v1511, 0
        %v1529 = vsel %vm295, %v1524, 0
        %v1531 = vsel %vm295, %v1525, 0
        %v1533 = vsel %vm295, %v1522, 0
        %1535 = vmatprep.subr.mxu0 0.0
        %1536 = vmatpush1.msra.mxu0 0.0
        %1537 = vmatprep.subr.mxu0 0.0
        %1538 = vmatpush1.msra.mxu0 0.0
        %1539 = vmatprep.subr.mxu0 0.0
        %1540 = vmatpush1.msra.mxu0 0.0
        %1541 = vmatprep.subr.mxu0 0.0
        %1542 = vmatpush1.msra.mxu0 0.0
        %1543 = vmatprep.subr.mxu0 0.0
        %1544 = vmatpush1.msra.mxu0 0.0
        %1545 = vmatprep.subr.mxu0 0.0
        %1546 = vmatpush1.msra.mxu0 0.0
        %1547 = vmatprep.subr.mxu0 0.0
        %1548 = vmatpush1.msra.mxu0 0.0
        %1549 = vmatprep.subr.mxu0 0.0
        %1550 = vmatpush1.msra.mxu0 0.0
        %1551 = vmatprep.subr.mxu0 0.0
        %1552 = vmatpush1.msra.mxu0 0.0
        %1553 = vmatprep.subr.mxu0 0.0
        %1554 = vmatpush1.msra.mxu0 0.0
        %1555 = vmatprep.subr.mxu0 0.0
        %1556 = vmatpush1.msra.mxu0 0.0
        %1557 = vmatprep.subr.mxu0 0.0
        %1558 = vmatpush1.msra.mxu0 0.0
        %1559 = vmatprep.subr.mxu0 0.0
        %1560 = vmatpush1.msra.mxu0 0.0
        %1561 = vmatprep.subr.mxu0 0.0
        %1562 = vmatpush1.msra.mxu0 0.0
        %1563 = vmatprep.subr.mxu0 0.0
        %1564 = vmatpush1.msra.mxu0 0.0
        %1565 = vmatprep.subr.mxu0 %v1531
        %1566 = vmatpush1.msra.mxu0 %v1529
        %1567 = vmatprep.subr.mxu0 0.0
        %1568 = vmatpush2.msra.mxu0 0.0
        %1569 = vmatprep.subr.mxu0 0.0
        %1570 = vmatpush2.msra.mxu0 0.0
        %1571 = vmatprep.subr.mxu0 0.0
        %1572 = vmatpush2.msra.mxu0 0.0
        %1573 = vmatprep.subr.mxu0 0.0
        %1574 = vmatpush2.msra.mxu0 0.0
        %1575 = vmatprep.subr.mxu0 0.0
        %1576 = vmatpush2.msra.mxu0 0.0
        %1577 = vmatprep.subr.mxu0 0.0
        %1578 = vmatpush2.msra.mxu0 0.0
        %1579 = vmatprep.subr.mxu0 0.0
        %1580 = vmatpush2.msra.mxu0 0.0
        %1581 = vmatprep.subr.mxu0 0.0
        %1582 = vmatpush2.msra.mxu0 0.0
        %1583 = vmatprep.subr.mxu0 0.0
        %1584 = vmatpush2.msra.mxu0 0.0
        %1585 = vmatprep.subr.mxu0 0.0
        %1586 = vmatpush2.msra.mxu0 0.0
        %1587 = vmatprep.subr.mxu0 0.0
        %1588 = vmatpush2.msra.mxu0 0.0
        %1589 = vmatprep.subr.mxu0 0.0
        %1590 = vmatpush2.msra.mxu0 0.0
        %1591 = vmatprep.subr.mxu0 0.0
        %1592 = vmatpush2.msra.mxu0 0.0
        %1593 = vmatprep.subr.mxu0 0.0
        %1594 = vmatpush2.msra.mxu0 0.0
        %1595 = vmatprep.subr.mxu0 0.0
        %1596 = vmatpush2.msra.mxu0 0.0
        %1597 = vmatprep.subr.mxu0 0.0
        %1598 = vmatpush2.msra.mxu0 0.0
        %1599 = vmatprep.mubr.f32.mxu0 0.0
        %1600 = vmatmul.mubr.f32.gmra.mxu0 %v1527
        %v1601 = vpop.f32.mrf.mxu0
        %v1602 = vadd.f32 0.0, %v1601
        %v1603 = vpop.f32.mrf.mxu0
        %v1604 = vadd.f32 0.0, %v1603
        %1605 = vdwg.mxu0
        %1606 = vmatprep.subr.mxu0 0.0
        %1607 = vmatpush1.msra.mxu0 0.0
        %1608 = vmatprep.subr.mxu0 0.0
        %1609 = vmatpush1.msra.mxu0 0.0
        %1610 = vmatprep.subr.mxu0 0.0
        %1611 = vmatpush1.msra.mxu0 0.0
        %1612 = vmatprep.subr.mxu0 0.0
        %1613 = vmatpush1.msra.mxu0 0.0
        %1614 = vmatprep.subr.mxu0 0.0
        %1615 = vmatpush1.msra.mxu0 0.0
        %1616 = vmatprep.subr.mxu0 0.0
        %1617 = vmatpush1.msra.mxu0 0.0
        %1618 = vmatprep.subr.mxu0 0.0
        %1619 = vmatpush1.msra.mxu0 0.0
        %1620 = vmatprep.subr.mxu0 0.0
        %1621 = vmatpush1.msra.mxu0 0.0
        %1622 = vmatprep.subr.mxu0 0.0
        %1623 = vmatpush1.msra.mxu0 0.0
        %1624 = vmatprep.subr.mxu0 0.0
        %1625 = vmatpush1.msra.mxu0 0.0
        %1626 = vmatprep.subr.mxu0 0.0
        %1627 = vmatpush1.msra.mxu0 0.0
        %1628 = vmatprep.subr.mxu0 0.0
        %1629 = vmatpush1.msra.mxu0 0.0
        %1630 = vmatprep.subr.mxu0 0.0
        %1631 = vmatpush1.msra.mxu0 0.0
        %1632 = vmatprep.subr.mxu0 0.0
        %1633 = vmatpush1.msra.mxu0 0.0
        %1634 = vmatprep.subr.mxu0 0.0
        %1635 = vmatpush1.msra.mxu0 0.0
        %1636 = vmatprep.subr.mxu0 0.0
        %1637 = vmatpush1.msra.mxu0 %v1533
        %1638 = vmatprep.subr.mxu0 0.0
        %1639 = vmatpush2.msra.mxu0 0.0
        %1640 = vmatprep.subr.mxu0 0.0
        %1641 = vmatpush2.msra.mxu0 0.0
        %1642 = vmatprep.subr.mxu0 0.0
        %1643 = vmatpush2.msra.mxu0 0.0
        %1644 = vmatprep.subr.mxu0 0.0
        %1645 = vmatpush2.msra.mxu0 0.0
        %1646 = vmatprep.subr.mxu0 0.0
        %1647 = vmatpush2.msra.mxu0 0.0
        %1648 = vmatprep.subr.mxu0 0.0
        %1649 = vmatpush2.msra.mxu0 0.0
        %1650 = vmatprep.subr.mxu0 0.0
        %1651 = vmatpush2.msra.mxu0 0.0
        %1652 = vmatprep.subr.mxu0 0.0
        %1653 = vmatpush2.msra.mxu0 0.0
        %1654 = vmatprep.subr.mxu0 0.0
        %1655 = vmatpush2.msra.mxu0 0.0
        %1656 = vmatprep.subr.mxu0 0.0
        %1657 = vmatpush2.msra.mxu0 0.0
        %1658 = vmatprep.subr.mxu0 0.0
        %1659 = vmatpush2.msra.mxu0 0.0
        %1660 = vmatprep.subr.mxu0 0.0
        %1661 = vmatpush2.msra.mxu0 0.0
        %1662 = vmatprep.subr.mxu0 0.0
        %1663 = vmatpush2.msra.mxu0 0.0
        %1664 = vmatprep.subr.mxu0 0.0
        %1665 = vmatpush2.msra.mxu0 0.0
        %1666 = vmatprep.subr.mxu0 0.0
        %1667 = vmatpush2.msra.mxu0 0.0
        %1668 = vmatprep.subr.mxu0 0.0
        %1669 = vmatpush2.msra.mxu0 0.0
        %1670 = vmatprep.mubr.f32.mxu0 0.0
        %1671 = vmatmul.mubr.f32.gmra.mxu0 %v1527
        %v1672 = vpop.f32.mrf.mxu0
        %v1673 = vadd.f32 0.0, %v1672
        %v1674 = vpop.f32.mrf.mxu0
        %1675 = vdwg.mxu0
        %v1678 = vcombine.low %v1602, %v1604
        %v1680 = vadd.f32 %v1512, %v1678
        %v1681 = vadd.f32 %v1513, %v1673
        %1682 = vst [vmem:[#allocation2 + $0x4] sm:$0xff] %v1680
        %1683 = vst.msk [vmem:[#allocation2 + $0xc] sm:$0xf] %vm450, %v1681
        %v1684 = vld [vmem:[%s276] sm:$0xff]
        %v1685 = vld [vmem:[%s276 + $0x8] sm:$0xf]
        %s1686 = scalar_lea.vmem %s1, 32
        %v1687 = vld [vmem:[%s1686] sm:$0xf]
        %v1688 = vld [vmem:[#allocation2 + $0x4] sm:$0xff]
        %v1689 = vld [vmem:[#allocation2 + $0xc] sm:$0xf]
        %v1692 = vcombine.high %v1684, %v1684
        %1693 = vrot.lane.b32.xlu0 %v1684, 90
        %v1694 = vpop.permute.xlu0 %1693
        %1695 = vrot.lane.b32.xlu0 %v1692, 90
        %v1696 = vpop.permute.xlu0 %1695
        %1697 = vrot.lane.b32.xlu0 %v1685, 90
        %v1698 = vpop.permute.xlu0 %1697
        %vm1699 = vcmask 736256
        %v1700 = vsel %vm1699, %v1694, %v1696
        %v1701 = vsel %vm1699, %v1696, %v1698
        %v1703 = vsel %vm291, %v1687, 0
        %v1705 = vsel %vm295, %v1700, 0
        %v1707 = vsel %vm295, %v1701, 0
        %v1709 = vsel %vm295, %v1698, 0
        %1711 = vmatprep.subr.mxu0 0.0
        %1712 = vmatpush1.msra.mxu0 0.0
        %1713 = vmatprep.subr.mxu0 0.0
        %1714 = vmatpush1.msra.mxu0 0.0
        %1715 = vmatprep.subr.mxu0 0.0
        %1716 = vmatpush1.msra.mxu0 0.0
        %1717 = vmatprep.subr.mxu0 0.0
        %1718 = vmatpush1.msra.mxu0 0.0
        %1719 = vmatprep.subr.mxu0 0.0
        %1720 = vmatpush1.msra.mxu0 0.0
        %1721 = vmatprep.subr.mxu0 0.0
        %1722 = vmatpush1.msra.mxu0 0.0
        %1723 = vmatprep.subr.mxu0 0.0
        %1724 = vmatpush1.msra.mxu0 0.0
        %1725 = vmatprep.subr.mxu0 0.0
        %1726 = vmatpush1.msra.mxu0 0.0
        %1727 = vmatprep.subr.mxu0 0.0
        %1728 = vmatpush1.msra.mxu0 0.0
        %1729 = vmatprep.subr.mxu0 0.0
        %1730 = vmatpush1.msra.mxu0 0.0
        %1731 = vmatprep.subr.mxu0 0.0
        %1732 = vmatpush1.msra.mxu0 0.0
        %1733 = vmatprep.subr.mxu0 0.0
        %1734 = vmatpush1.msra.mxu0 0.0
        %1735 = vmatprep.subr.mxu0 0.0
        %1736 = vmatpush1.msra.mxu0 0.0
        %1737 = vmatprep.subr.mxu0 0.0
        %1738 = vmatpush1.msra.mxu0 0.0
        %1739 = vmatprep.subr.mxu0 0.0
        %1740 = vmatpush1.msra.mxu0 0.0
        %1741 = vmatprep.subr.mxu0 %v1707
        %1742 = vmatpush1.msra.mxu0 %v1705
        %1743 = vmatprep.subr.mxu0 0.0
        %1744 = vmatpush2.msra.mxu0 0.0
        %1745 = vmatprep.subr.mxu0 0.0
        %1746 = vmatpush2.msra.mxu0 0.0
        %1747 = vmatprep.subr.mxu0 0.0
        %1748 = vmatpush2.msra.mxu0 0.0
        %1749 = vmatprep.subr.mxu0 0.0
        %1750 = vmatpush2.msra.mxu0 0.0
        %1751 = vmatprep.subr.mxu0 0.0
        %1752 = vmatpush2.msra.mxu0 0.0
        %1753 = vmatprep.subr.mxu0 0.0
        %1754 = vmatpush2.msra.mxu0 0.0
        %1755 = vmatprep.subr.mxu0 0.0
        %1756 = vmatpush2.msra.mxu0 0.0
        %1757 = vmatprep.subr.mxu0 0.0
        %1758 = vmatpush2.msra.mxu0 0.0
        %1759 = vmatprep.subr.mxu0 0.0
        %1760 = vmatpush2.msra.mxu0 0.0
        %1761 = vmatprep.subr.mxu0 0.0
        %1762 = vmatpush2.msra.mxu0 0.0
        %1763 = vmatprep.subr.mxu0 0.0
        %1764 = vmatpush2.msra.mxu0 0.0
        %1765 = vmatprep.subr.mxu0 0.0
        %1766 = vmatpush2.msra.mxu0 0.0
        %1767 = vmatprep.subr.mxu0 0.0
        %1768 = vmatpush2.msra.mxu0 0.0
        %1769 = vmatprep.subr.mxu0 0.0
        %1770 = vmatpush2.msra.mxu0 0.0
        %1771 = vmatprep.subr.mxu0 0.0
        %1772 = vmatpush2.msra.mxu0 0.0
        %1773 = vmatprep.subr.mxu0 0.0
        %1774 = vmatpush2.msra.mxu0 0.0
        %1775 = vmatprep.mubr.f32.mxu0 0.0
        %1776 = vmatmul.mubr.f32.gmra.mxu0 %v1703
        %v1777 = vpop.f32.mrf.mxu0
        %v1778 = vadd.f32 0.0, %v1777
        %v1779 = vpop.f32.mrf.mxu0
        %v1780 = vadd.f32 0.0, %v1779
        %1781 = vdwg.mxu0
        %1782 = vmatprep.subr.mxu0 0.0
        %1783 = vmatpush1.msra.mxu0 0.0
        %1784 = vmatprep.subr.mxu0 0.0
        %1785 = vmatpush1.msra.mxu0 0.0
        %1786 = vmatprep.subr.mxu0 0.0
        %1787 = vmatpush1.msra.mxu0 0.0
        %1788 = vmatprep.subr.mxu0 0.0
        %1789 = vmatpush1.msra.mxu0 0.0
        %1790 = vmatprep.subr.mxu0 0.0
        %1791 = vmatpush1.msra.mxu0 0.0
        %1792 = vmatprep.subr.mxu0 0.0
        %1793 = vmatpush1.msra.mxu0 0.0
        %1794 = vmatprep.subr.mxu0 0.0
        %1795 = vmatpush1.msra.mxu0 0.0
        %1796 = vmatprep.subr.mxu0 0.0
        %1797 = vmatpush1.msra.mxu0 0.0
        %1798 = vmatprep.subr.mxu0 0.0
        %1799 = vmatpush1.msra.mxu0 0.0
        %1800 = vmatprep.subr.mxu0 0.0
        %1801 = vmatpush1.msra.mxu0 0.0
        %1802 = vmatprep.subr.mxu0 0.0
        %1803 = vmatpush1.msra.mxu0 0.0
        %1804 = vmatprep.subr.mxu0 0.0
        %1805 = vmatpush1.msra.mxu0 0.0
        %1806 = vmatprep.subr.mxu0 0.0
        %1807 = vmatpush1.msra.mxu0 0.0
        %1808 = vmatprep.subr.mxu0 0.0
        %1809 = vmatpush1.msra.mxu0 0.0
        %1810 = vmatprep.subr.mxu0 0.0
        %1811 = vmatpush1.msra.mxu0 0.0
        %1812 = vmatprep.subr.mxu0 0.0
        %1813 = vmatpush1.msra.mxu0 %v1709
        %1814 = vmatprep.subr.mxu0 0.0
        %1815 = vmatpush2.msra.mxu0 0.0
        %1816 = vmatprep.subr.mxu0 0.0
        %1817 = vmatpush2.msra.mxu0 0.0
        %1818 = vmatprep.subr.mxu0 0.0
        %1819 = vmatpush2.msra.mxu0 0.0
        %1820 = vmatprep.subr.mxu0 0.0
        %1821 = vmatpush2.msra.mxu0 0.0
        %1822 = vmatprep.subr.mxu0 0.0
        %1823 = vmatpush2.msra.mxu0 0.0
        %1824 = vmatprep.subr.mxu0 0.0
        %1825 = vmatpush2.msra.mxu0 0.0
        %1826 = vmatprep.subr.mxu0 0.0
        %1827 = vmatpush2.msra.mxu0 0.0
        %1828 = vmatprep.subr.mxu0 0.0
        %1829 = vmatpush2.msra.mxu0 0.0
        %1830 = vmatprep.subr.mxu0 0.0
        %1831 = vmatpush2.msra.mxu0 0.0
        %1832 = vmatprep.subr.mxu0 0.0
        %1833 = vmatpush2.msra.mxu0 0.0
        %1834 = vmatprep.subr.mxu0 0.0
        %1835 = vmatpush2.msra.mxu0 0.0
        %1836 = vmatprep.subr.mxu0 0.0
        %1837 = vmatpush2.msra.mxu0 0.0
        %1838 = vmatprep.subr.mxu0 0.0
        %1839 = vmatpush2.msra.mxu0 0.0
        %1840 = vmatprep.subr.mxu0 0.0
        %1841 = vmatpush2.msra.mxu0 0.0
        %1842 = vmatprep.subr.mxu0 0.0
        %1843 = vmatpush2.msra.mxu0 0.0
        %1844 = vmatprep.subr.mxu0 0.0
        %1845 = vmatpush2.msra.mxu0 0.0
        %1846 = vmatprep.mubr.f32.mxu0 0.0
        %1847 = vmatmul.mubr.f32.gmra.mxu0 %v1703
        %v1848 = vpop.f32.mrf.mxu0
        %v1849 = vadd.f32 0.0, %v1848
        %v1850 = vpop.f32.mrf.mxu0
        %1851 = vdwg.mxu0
        %v1854 = vcombine.low %v1778, %v1780
        %v1856 = vadd.f32 %v1688, %v1854
        %v1857 = vadd.f32 %v1689, %v1849
        %1858 = vst [vmem:[#allocation2 + $0x4] sm:$0xff] %v1856
        %1859 = vst.msk [vmem:[#allocation2 + $0xc] sm:$0xf] %vm450, %v1857
        %v1860 = vld [vmem:[#allocation2 + $0x4] sm:$0xff]
        %v1861 = vld [vmem:[#allocation2 + $0xc] sm:$0xf]
        %v1862 = vld [vmem:[%s2] sm:$0xf]
        %1864 = vset.pattern.permute.xlu0 0
        %1865 = vperm.xlu0 %1864, %v1862
        %v1866 = vpop.permute.xlu0 %1865
        %v1868 = vunpack.c.l.s4 839922192
        %v1869 = vunpack.c.0.s8 %v1868
        %v1870 = vlaneseq
        %v1871 = vshrl.u32 %v1870, 7
        %v1872 = vsub.s32 %v1869, %v1871
        %v1873 = vrot.slane %v1866, %v1872
        %v1875 = vadd.f32 %v1860, %v1873
        %v1876 = vadd.f32 %v1861, %v1873
        %vm1877 = vcmp.ge.f32.partialorder %v1875, 0.0
        %vm1878 = vcmp.ge.f32.partialorder %v1876, 0.0
        %v1879 = vmul.f32 %v1875, 0.2
        %v1880 = vmul.f32 %v1876, 0.2
        %v1881 = vsel %vm1877, %v1875, %v1879
        %v1882 = vsel %vm1878, %v1876, %v1880
        %v1883 = vld [vmem:[%s5] sm:$0x7]
        %v1885 = vlaneseq
        %v1886 = vshrl.u32 %v1885, 7
        %v1887 = vsub.s32 0, %v1886
        %v1888 = vrot.slane %v1883, %v1887
        %v1889 = vlaneseq
        %v1890 = vshrl.u32 %v1889, 7
        %v1891 = vsub.s32 1, %v1890
        %v1892 = vrot.slane %v1883, %v1891
        %v1893 = vlaneseq
        %v1894 = vshrl.u32 %v1893, 7
        %v1895 = vsub.s32 2, %v1894
        %v1896 = vrot.slane %v1883, %v1895
        %v1898 = vcombine.low %v1888, %v1892
        %v1900 = vmul.f32 %v1881, %v1898
        %v1901 = vmul.f32 %v1882, %v1896
        %1902 = vst [vmem:[#allocation2 + $0x4] sm:$0xff] %v1900
        %1903 = vst.msk [vmem:[#allocation2 + $0xc] sm:$0xf] %vm450, %v1901
        %v1904 = vld [vmem:[#allocation2] sm:$0xff]
        %v1905 = vld [vmem:[#allocation2 + $0x8] sm:$0xff]
        %v1906 = vld [vmem:[%s3] sm:$0xff]
        %v1907 = vld [vmem:[#allocation3] sm:$0xff]
        %v1908 = vld [vmem:[#allocation3 + $0x8] sm:$0xff]
        %v1909 = vld [vmem:[#allocation3 + $0x10] sm:$0xff]
        %v1912 = vcombine.high %v1904, %v1904
        %v1913 = vcombine.high %v1905, %v1905
        %1914 = vrot.lane.b32.xlu0 %v1904, 19
        %v1915 = vpop.permute.xlu0 %1914
        %1916 = vrot.lane.b32.xlu0 %v1912, 19
        %v1917 = vpop.permute.xlu0 %1916
        %1918 = vrot.lane.b32.xlu0 %v1905, 19
        %v1919 = vpop.permute.xlu0 %1918
        %1920 = vrot.lane.b32.xlu0 %v1913, 19
        %v1921 = vpop.permute.xlu0 %1920
        %vm1922 = vcmask 154624
        %v1923 = vsel %vm1922, %v1915, %v1917
        %v1924 = vsel %vm1922, %v1917, %v1919
        %v1925 = vsel %vm1922, %v1919, %v1921
        %v1927 = vsel %vm291, %v1906, 0
        %v1929 = vsel %vm295, %v1923, 0
        %v1931 = vsel %vm295, %v1924, 0
        %v1933 = vsel %vm295, %v1925, 0
        %1935 = vmatprep.subr.mxu0 0.0
        %1936 = vmatpush1.msra.mxu0 0.0
        %1937 = vmatprep.subr.mxu0 0.0
        %1938 = vmatpush1.msra.mxu0 0.0
        %1939 = vmatprep.subr.mxu0 0.0
        %1940 = vmatpush1.msra.mxu0 0.0
        %1941 = vmatprep.subr.mxu0 0.0
        %1942 = vmatpush1.msra.mxu0 0.0
        %1943 = vmatprep.subr.mxu0 0.0
        %1944 = vmatpush1.msra.mxu0 0.0
        %1945 = vmatprep.subr.mxu0 0.0
        %1946 = vmatpush1.msra.mxu0 0.0
        %1947 = vmatprep.subr.mxu0 0.0
        %1948 = vmatpush1.msra.mxu0 0.0
        %1949 = vmatprep.subr.mxu0 0.0
        %1950 = vmatpush1.msra.mxu0 0.0
        %1951 = vmatprep.subr.mxu0 0.0
        %1952 = vmatpush1.msra.mxu0 0.0
        %1953 = vmatprep.subr.mxu0 0.0
        %1954 = vmatpush1.msra.mxu0 0.0
        %1955 = vmatprep.subr.mxu0 0.0
        %1956 = vmatpush1.msra.mxu0 0.0
        %1957 = vmatprep.subr.mxu0 0.0
        %1958 = vmatpush1.msra.mxu0 0.0
        %1959 = vmatprep.subr.mxu0 0.0
        %1960 = vmatpush1.msra.mxu0 0.0
        %1961 = vmatprep.subr.mxu0 0.0
        %1962 = vmatpush1.msra.mxu0 0.0
        %1963 = vmatprep.subr.mxu0 0.0
        %1964 = vmatpush1.msra.mxu0 0.0
        %1965 = vmatprep.subr.mxu0 %v1931
        %1966 = vmatpush1.msra.mxu0 %v1929
        %1967 = vmatprep.subr.mxu0 0.0
        %1968 = vmatpush2.msra.mxu0 0.0
        %1969 = vmatprep.subr.mxu0 0.0
        %1970 = vmatpush2.msra.mxu0 0.0
        %1971 = vmatprep.subr.mxu0 0.0
        %1972 = vmatpush2.msra.mxu0 0.0
        %1973 = vmatprep.subr.mxu0 0.0
        %1974 = vmatpush2.msra.mxu0 0.0
        %1975 = vmatprep.subr.mxu0 0.0
        %1976 = vmatpush2.msra.mxu0 0.0
        %1977 = vmatprep.subr.mxu0 0.0
        %1978 = vmatpush2.msra.mxu0 0.0
        %1979 = vmatprep.subr.mxu0 0.0
        %1980 = vmatpush2.msra.mxu0 0.0
        %1981 = vmatprep.subr.mxu0 0.0
        %1982 = vmatpush2.msra.mxu0 0.0
        %1983 = vmatprep.subr.mxu0 0.0
        %1984 = vmatpush2.msra.mxu0 0.0
        %1985 = vmatprep.subr.mxu0 0.0
        %1986 = vmatpush2.msra.mxu0 0.0
        %1987 = vmatprep.subr.mxu0 0.0
        %1988 = vmatpush2.msra.mxu0 0.0
        %1989 = vmatprep.subr.mxu0 0.0
        %1990 = vmatpush2.msra.mxu0 0.0
        %1991 = vmatprep.subr.mxu0 0.0
        %1992 = vmatpush2.msra.mxu0 0.0
        %1993 = vmatprep.subr.mxu0 0.0
        %1994 = vmatpush2.msra.mxu0 0.0
        %1995 = vmatprep.subr.mxu0 0.0
        %1996 = vmatpush2.msra.mxu0 0.0
        %1997 = vmatprep.subr.mxu0 0.0
        %1998 = vmatpush2.msra.mxu0 0.0
        %1999 = vmatprep.mubr.f32.mxu0 0.0
        %2000 = vmatmul.mubr.f32.gmra.mxu0 %v1927
        %v2001 = vpop.f32.mrf.mxu0
        %v2002 = vadd.f32 0.0, %v2001
        %v2003 = vpop.f32.mrf.mxu0
        %v2004 = vadd.f32 0.0, %v2003
        %2005 = vdwg.mxu0
        %2006 = vmatprep.subr.mxu0 0.0
        %2007 = vmatpush1.msra.mxu0 0.0
        %2008 = vmatprep.subr.mxu0 0.0
        %2009 = vmatpush1.msra.mxu0 0.0
        %2010 = vmatprep.subr.mxu0 0.0
        %2011 = vmatpush1.msra.mxu0 0.0
        %2012 = vmatprep.subr.mxu0 0.0
        %2013 = vmatpush1.msra.mxu0 0.0
        %2014 = vmatprep.subr.mxu0 0.0
        %2015 = vmatpush1.msra.mxu0 0.0
        %2016 = vmatprep.subr.mxu0 0.0
        %2017 = vmatpush1.msra.mxu0 0.0
        %2018 = vmatprep.subr.mxu0 0.0
        %2019 = vmatpush1.msra.mxu0 0.0
        %2020 = vmatprep.subr.mxu0 0.0
        %2021 = vmatpush1.msra.mxu0 0.0
        %2022 = vmatprep.subr.mxu0 0.0
        %2023 = vmatpush1.msra.mxu0 0.0
        %2024 = vmatprep.subr.mxu0 0.0
        %2025 = vmatpush1.msra.mxu0 0.0
        %2026 = vmatprep.subr.mxu0 0.0
        %2027 = vmatpush1.msra.mxu0 0.0
        %2028 = vmatprep.subr.mxu0 0.0
        %2029 = vmatpush1.msra.mxu0 0.0
        %2030 = vmatprep.subr.mxu0 0.0
        %2031 = vmatpush1.msra.mxu0 0.0
        %2032 = vmatprep.subr.mxu0 0.0
        %2033 = vmatpush1.msra.mxu0 0.0
        %2034 = vmatprep.subr.mxu0 0.0
        %2035 = vmatpush1.msra.mxu0 0.0
        %2036 = vmatprep.subr.mxu0 0.0
        %2037 = vmatpush1.msra.mxu0 %v1933
        %2038 = vmatprep.subr.mxu0 0.0
        %2039 = vmatpush2.msra.mxu0 0.0
        %2040 = vmatprep.subr.mxu0 0.0
        %2041 = vmatpush2.msra.mxu0 0.0
        %2042 = vmatprep.subr.mxu0 0.0
        %2043 = vmatpush2.msra.mxu0 0.0
        %2044 = vmatprep.subr.mxu0 0.0
        %2045 = vmatpush2.msra.mxu0 0.0
        %2046 = vmatprep.subr.mxu0 0.0
        %2047 = vmatpush2.msra.mxu0 0.0
        %2048 = vmatprep.subr.mxu0 0.0
        %2049 = vmatpush2.msra.mxu0 0.0
        %2050 = vmatprep.subr.mxu0 0.0
        %2051 = vmatpush2.msra.mxu0 0.0
        %2052 = vmatprep.subr.mxu0 0.0
        %2053 = vmatpush2.msra.mxu0 0.0
        %2054 = vmatprep.subr.mxu0 0.0
        %2055 = vmatpush2.msra.mxu0 0.0
        %2056 = vmatprep.subr.mxu0 0.0
        %2057 = vmatpush2.msra.mxu0 0.0
        %2058 = vmatprep.subr.mxu0 0.0
        %2059 = vmatpush2.msra.mxu0 0.0
        %2060 = vmatprep.subr.mxu0 0.0
        %2061 = vmatpush2.msra.mxu0 0.0
        %2062 = vmatprep.subr.mxu0 0.0
        %2063 = vmatpush2.msra.mxu0 0.0
        %2064 = vmatprep.subr.mxu0 0.0
        %2065 = vmatpush2.msra.mxu0 0.0
        %2066 = vmatprep.subr.mxu0 0.0
        %2067 = vmatpush2.msra.mxu0 0.0
        %2068 = vmatprep.subr.mxu0 0.0
        %2069 = vmatpush2.msra.mxu0 0.0
        %2070 = vmatprep.mubr.f32.mxu0 0.0
        %2071 = vmatmul.mubr.f32.gmra.mxu0 %v1927
        %v2072 = vpop.f32.mrf.mxu0
        %v2073 = vadd.f32 0.0, %v2072
        %v2074 = vpop.f32.mrf.mxu0
        %2075 = vdwg.mxu0
        %v2076 = vadd.f32 %v1907, %v2002
        %v2077 = vadd.f32 %v1908, %v2004
        %v2078 = vadd.f32 %v1909, %v2073
        %2079 = vst [vmem:[#allocation3] sm:$0xff] %v2076
        %2080 = vst [vmem:[#allocation3 + $0x8] sm:$0xff] %v2077
        %2081 = vst.msk [vmem:[#allocation3 + $0x10] sm:$0xff] %vm281, %v2078
        %v2082 = vld [vmem:[#allocation2] sm:$0xff]
        %v2083 = vld [vmem:[#allocation2 + $0x8] sm:$0xff]
        %s2084 = scalar_lea.vmem %s3, 8
        %v2085 = vld [vmem:[%s2084] sm:$0xff]
        %v2086 = vld [vmem:[#allocation3] sm:$0xff]
        %v2087 = vld [vmem:[#allocation3 + $0x8] sm:$0xff]
        %v2088 = vld [vmem:[#allocation3 + $0x10] sm:$0xff]
        %v2091 = vcombine.high %v2082, %v2082
        %v2092 = vcombine.high %v2083, %v2083
        %2093 = vrot.lane.b32.xlu0 %v2082, 18
        %v2094 = vpop.permute.xlu0 %2093
        %2095 = vrot.lane.b32.xlu0 %v2091, 18
        %v2096 = vpop.permute.xlu0 %2095
        %2097 = vrot.lane.b32.xlu0 %v2083, 18
        %v2098 = vpop.permute.xlu0 %2097
        %2099 = vrot.lane.b32.xlu0 %v2092, 18
        %v2100 = vpop.permute.xlu0 %2099
        %vm2101 = vcmask 146432
        %v2102 = vsel %vm2101, %v2094, %v2096
        %v2103 = vsel %vm2101, %v2096, %v2098
        %v2104 = vsel %vm2101, %v2098, %v2100
        %v2106 = vsel %vm291, %v2085, 0
        %v2108 = vsel %vm295, %v2102, 0
        %v2110 = vsel %vm295, %v2103, 0
        %v2112 = vsel %vm295, %v2104, 0
        %2114 = vmatprep.subr.mxu0 0.0
        %2115 = vmatpush1.msra.mxu0 0.0
        %2116 = vmatprep.subr.mxu0 0.0
        %2117 = vmatpush1.msra.mxu0 0.0
        %2118 = vmatprep.subr.mxu0 0.0
        %2119 = vmatpush1.msra.mxu0 0.0
        %2120 = vmatprep.subr.mxu0 0.0
        %2121 = vmatpush1.msra.mxu0 0.0
        %2122 = vmatprep.subr.mxu0 0.0
        %2123 = vmatpush1.msra.mxu0 0.0
        %2124 = vmatprep.subr.mxu0 0.0
        %2125 = vmatpush1.msra.mxu0 0.0
        %2126 = vmatprep.subr.mxu0 0.0
        %2127 = vmatpush1.msra.mxu0 0.0
        %2128 = vmatprep.subr.mxu0 0.0
        %2129 = vmatpush1.msra.mxu0 0.0
        %2130 = vmatprep.subr.mxu0 0.0
        %2131 = vmatpush1.msra.mxu0 0.0
        %2132 = vmatprep.subr.mxu0 0.0
        %2133 = vmatpush1.msra.mxu0 0.0
        %2134 = vmatprep.subr.mxu0 0.0
        %2135 = vmatpush1.msra.mxu0 0.0
        %2136 = vmatprep.subr.mxu0 0.0
        %2137 = vmatpush1.msra.mxu0 0.0
        %2138 = vmatprep.subr.mxu0 0.0
        %2139 = vmatpush1.msra.mxu0 0.0
        %2140 = vmatprep.subr.mxu0 0.0
        %2141 = vmatpush1.msra.mxu0 0.0
        %2142 = vmatprep.subr.mxu0 0.0
        %2143 = vmatpush1.msra.mxu0 0.0
        %2144 = vmatprep.subr.mxu0 %v2110
        %2145 = vmatpush1.msra.mxu0 %v2108
        %2146 = vmatprep.subr.mxu0 0.0
        %2147 = vmatpush2.msra.mxu0 0.0
        %2148 = vmatprep.subr.mxu0 0.0
        %2149 = vmatpush2.msra.mxu0 0.0
        %2150 = vmatprep.subr.mxu0 0.0
        %2151 = vmatpush2.msra.mxu0 0.0
        %2152 = vmatprep.subr.mxu0 0.0
        %2153 = vmatpush2.msra.mxu0 0.0
        %2154 = vmatprep.subr.mxu0 0.0
        %2155 = vmatpush2.msra.mxu0 0.0
        %2156 = vmatprep.subr.mxu0 0.0
        %2157 = vmatpush2.msra.mxu0 0.0
        %2158 = vmatprep.subr.mxu0 0.0
        %2159 = vmatpush2.msra.mxu0 0.0
        %2160 = vmatprep.subr.mxu0 0.0
        %2161 = vmatpush2.msra.mxu0 0.0
        %2162 = vmatprep.subr.mxu0 0.0
        %2163 = vmatpush2.msra.mxu0 0.0
        %2164 = vmatprep.subr.mxu0 0.0
        %2165 = vmatpush2.msra.mxu0 0.0
        %2166 = vmatprep.subr.mxu0 0.0
        %2167 = vmatpush2.msra.mxu0 0.0
        %2168 = vmatprep.subr.mxu0 0.0
        %2169 = vmatpush2.msra.mxu0 0.0
        %2170 = vmatprep.subr.mxu0 0.0
        %2171 = vmatpush2.msra.mxu0 0.0
        %2172 = vmatprep.subr.mxu0 0.0
        %2173 = vmatpush2.msra.mxu0 0.0
        %2174 = vmatprep.subr.mxu0 0.0
        %2175 = vmatpush2.msra.mxu0 0.0
        %2176 = vmatprep.subr.mxu0 0.0
        %2177 = vmatpush2.msra.mxu0 0.0
        %2178 = vmatprep.mubr.f32.mxu0 0.0
        %2179 = vmatmul.mubr.f32.gmra.mxu0 %v2106
        %v2180 = vpop.f32.mrf.mxu0
        %v2181 = vadd.f32 0.0, %v2180
        %v2182 = vpop.f32.mrf.mxu0
        %v2183 = vadd.f32 0.0, %v2182
        %2184 = vdwg.mxu0
        %2185 = vmatprep.subr.mxu0 0.0
        %2186 = vmatpush1.msra.mxu0 0.0
        %2187 = vmatprep.subr.mxu0 0.0
        %2188 = vmatpush1.msra.mxu0 0.0
        %2189 = vmatprep.subr.mxu0 0.0
        %2190 = vmatpush1.msra.mxu0 0.0
        %2191 = vmatprep.subr.mxu0 0.0
        %2192 = vmatpush1.msra.mxu0 0.0
        %2193 = vmatprep.subr.mxu0 0.0
        %2194 = vmatpush1.msra.mxu0 0.0
        %2195 = vmatprep.subr.mxu0 0.0
        %2196 = vmatpush1.msra.mxu0 0.0
        %2197 = vmatprep.subr.mxu0 0.0
        %2198 = vmatpush1.msra.mxu0 0.0
        %2199 = vmatprep.subr.mxu0 0.0
        %2200 = vmatpush1.msra.mxu0 0.0
        %2201 = vmatprep.subr.mxu0 0.0
        %2202 = vmatpush1.msra.mxu0 0.0
        %2203 = vmatprep.subr.mxu0 0.0
        %2204 = vmatpush1.msra.mxu0 0.0
        %2205 = vmatprep.subr.mxu0 0.0
        %2206 = vmatpush1.msra.mxu0 0.0
        %2207 = vmatprep.subr.mxu0 0.0
        %2208 = vmatpush1.msra.mxu0 0.0
        %2209 = vmatprep.subr.mxu0 0.0
        %2210 = vmatpush1.msra.mxu0 0.0
        %2211 = vmatprep.subr.mxu0 0.0
        %2212 = vmatpush1.msra.mxu0 0.0
        %2213 = vmatprep.subr.mxu0 0.0
        %2214 = vmatpush1.msra.mxu0 0.0
        %2215 = vmatprep.subr.mxu0 0.0
        %2216 = vmatpush1.msra.mxu0 %v2112
        %2217 = vmatprep.subr.mxu0 0.0
        %2218 = vmatpush2.msra.mxu0 0.0
        %2219 = vmatprep.subr.mxu0 0.0
        %2220 = vmatpush2.msra.mxu0 0.0
        %2221 = vmatprep.subr.mxu0 0.0
        %2222 = vmatpush2.msra.mxu0 0.0
        %2223 = vmatprep.subr.mxu0 0.0
        %2224 = vmatpush2.msra.mxu0 0.0
        %2225 = vmatprep.subr.mxu0 0.0
        %2226 = vmatpush2.msra.mxu0 0.0
        %2227 = vmatprep.subr.mxu0 0.0
        %2228 = vmatpush2.msra.mxu0 0.0
        %2229 = vmatprep.subr.mxu0 0.0
        %2230 = vmatpush2.msra.mxu0 0.0
        %2231 = vmatprep.subr.mxu0 0.0
        %2232 = vmatpush2.msra.mxu0 0.0
        %2233 = vmatprep.subr.mxu0 0.0
        %2234 = vmatpush2.msra.mxu0 0.0
        %2235 = vmatprep.subr.mxu0 0.0
        %2236 = vmatpush2.msra.mxu0 0.0
        %2237 = vmatprep.subr.mxu0 0.0
        %2238 = vmatpush2.msra.mxu0 0.0
        %2239 = vmatprep.subr.mxu0 0.0
        %2240 = vmatpush2.msra.mxu0 0.0
        %2241 = vmatprep.subr.mxu0 0.0
        %2242 = vmatpush2.msra.mxu0 0.0
        %2243 = vmatprep.subr.mxu0 0.0
        %2244 = vmatpush2.msra.mxu0 0.0
        %2245 = vmatprep.subr.mxu0 0.0
        %2246 = vmatpush2.msra.mxu0 0.0
        %2247 = vmatprep.subr.mxu0 0.0
        %2248 = vmatpush2.msra.mxu0 0.0
        %2249 = vmatprep.mubr.f32.mxu0 0.0
        %2250 = vmatmul.mubr.f32.gmra.mxu0 %v2106
        %v2251 = vpop.f32.mrf.mxu0
        %v2252 = vadd.f32 0.0, %v2251
        %v2253 = vpop.f32.mrf.mxu0
        %2254 = vdwg.mxu0
        %v2255 = vadd.f32 %v2086, %v2181
        %v2256 = vadd.f32 %v2087, %v2183
        %v2257 = vadd.f32 %v2088, %v2252
        %2258 = vst [vmem:[#allocation3] sm:$0xff] %v2255
        %2259 = vst [vmem:[#allocation3 + $0x8] sm:$0xff] %v2256
        %2260 = vst.msk [vmem:[#allocation3 + $0x10] sm:$0xff] %vm281, %v2257
        %v2261 = vld [vmem:[#allocation2] sm:$0xff]
        %v2262 = vld [vmem:[#allocation2 + $0x8] sm:$0xff]
        %s2263 = scalar_lea.vmem %s3, 16
        %v2264 = vld [vmem:[%s2263] sm:$0xff]
        %v2265 = vld [vmem:[#allocation3] sm:$0xff]
        %v2266 = vld [vmem:[#allocation3 + $0x8] sm:$0xff]
        %v2267 = vld [vmem:[#allocation3 + $0x10] sm:$0xff]
        %v2270 = vcombine.high %v2261, %v2261
        %v2271 = vcombine.high %v2262, %v2262
        %2272 = vrot.lane.b32.xlu0 %v2261, 17
        %v2273 = vpop.permute.xlu0 %2272
        %2274 = vrot.lane.b32.xlu0 %v2270, 17
        %v2275 = vpop.permute.xlu0 %2274
        %2276 = vrot.lane.b32.xlu0 %v2262, 17
        %v2277 = vpop.permute.xlu0 %2276
        %2278 = vrot.lane.b32.xlu0 %v2271, 17
        %v2279 = vpop.permute.xlu0 %2278
        %vm2280 = vcmask 138240
        %v2281 = vsel %vm2280, %v2273, %v2275
        %v2282 = vsel %vm2280, %v2275, %v2277
        %v2283 = vsel %vm2280, %v2277, %v2279
        %v2285 = vsel %vm291, %v2264, 0
        %v2287 = vsel %vm295, %v2281, 0
        %v2289 = vsel %vm295, %v2282, 0
        %v2291 = vsel %vm295, %v2283, 0
        %2293 = vmatprep.subr.mxu0 0.0
        %2294 = vmatpush1.msra.mxu0 0.0
        %2295 = vmatprep.subr.mxu0 0.0
        %2296 = vmatpush1.msra.mxu0 0.0
        %2297 = vmatprep.subr.mxu0 0.0
        %2298 = vmatpush1.msra.mxu0 0.0
        %2299 = vmatprep.subr.mxu0 0.0
        %2300 = vmatpush1.msra.mxu0 0.0
        %2301 = vmatprep.subr.mxu0 0.0
        %2302 = vmatpush1.msra.mxu0 0.0
        %2303 = vmatprep.subr.mxu0 0.0
        %2304 = vmatpush1.msra.mxu0 0.0
        %2305 = vmatprep.subr.mxu0 0.0
        %2306 = vmatpush1.msra.mxu0 0.0
        %2307 = vmatprep.subr.mxu0 0.0
        %2308 = vmatpush1.msra.mxu0 0.0
        %2309 = vmatprep.subr.mxu0 0.0
        %2310 = vmatpush1.msra.mxu0 0.0
        %2311 = vmatprep.subr.mxu0 0.0
        %2312 = vmatpush1.msra.mxu0 0.0
        %2313 = vmatprep.subr.mxu0 0.0
        %2314 = vmatpush1.msra.mxu0 0.0
        %2315 = vmatprep.subr.mxu0 0.0
        %2316 = vmatpush1.msra.mxu0 0.0
        %2317 = vmatprep.subr.mxu0 0.0
        %2318 = vmatpush1.msra.mxu0 0.0
        %2319 = vmatprep.subr.mxu0 0.0
        %2320 = vmatpush1.msra.mxu0 0.0
        %2321 = vmatprep.subr.mxu0 0.0
        %2322 = vmatpush1.msra.mxu0 0.0
        %2323 = vmatprep.subr.mxu0 %v2289
        %2324 = vmatpush1.msra.mxu0 %v2287
        %2325 = vmatprep.subr.mxu0 0.0
        %2326 = vmatpush2.msra.mxu0 0.0
        %2327 = vmatprep.subr.mxu0 0.0
        %2328 = vmatpush2.msra.mxu0 0.0
        %2329 = vmatprep.subr.mxu0 0.0
        %2330 = vmatpush2.msra.mxu0 0.0
        %2331 = vmatprep.subr.mxu0 0.0
        %2332 = vmatpush2.msra.mxu0 0.0
        %2333 = vmatprep.subr.mxu0 0.0
        %2334 = vmatpush2.msra.mxu0 0.0
        %2335 = vmatprep.subr.mxu0 0.0
        %2336 = vmatpush2.msra.mxu0 0.0
        %2337 = vmatprep.subr.mxu0 0.0
        %2338 = vmatpush2.msra.mxu0 0.0
        %2339 = vmatprep.subr.mxu0 0.0
        %2340 = vmatpush2.msra.mxu0 0.0
        %2341 = vmatprep.subr.mxu0 0.0
        %2342 = vmatpush2.msra.mxu0 0.0
        %2343 = vmatprep.subr.mxu0 0.0
        %2344 = vmatpush2.msra.mxu0 0.0
        %2345 = vmatprep.subr.mxu0 0.0
        %2346 = vmatpush2.msra.mxu0 0.0
        %2347 = vmatprep.subr.mxu0 0.0
        %2348 = vmatpush2.msra.mxu0 0.0
        %2349 = vmatprep.subr.mxu0 0.0
        %2350 = vmatpush2.msra.mxu0 0.0
        %2351 = vmatprep.subr.mxu0 0.0
        %2352 = vmatpush2.msra.mxu0 0.0
        %2353 = vmatprep.subr.mxu0 0.0
        %2354 = vmatpush2.msra.mxu0 0.0
        %2355 = vmatprep.subr.mxu0 0.0
        %2356 = vmatpush2.msra.mxu0 0.0
        %2357 = vmatprep.mubr.f32.mxu0 0.0
        %2358 = vmatmul.mubr.f32.gmra.mxu0 %v2285
        %v2359 = vpop.f32.mrf.mxu0
        %v2360 = vadd.f32 0.0, %v2359
        %v2361 = vpop.f32.mrf.mxu0
        %v2362 = vadd.f32 0.0, %v2361
        %2363 = vdwg.mxu0
        %2364 = vmatprep.subr.mxu0 0.0
        %2365 = vmatpush1.msra.mxu0 0.0
        %2366 = vmatprep.subr.mxu0 0.0
        %2367 = vmatpush1.msra.mxu0 0.0
        %2368 = vmatprep.subr.mxu0 0.0
        %2369 = vmatpush1.msra.mxu0 0.0
        %2370 = vmatprep.subr.mxu0 0.0
        %2371 = vmatpush1.msra.mxu0 0.0
        %2372 = vmatprep.subr.mxu0 0.0
        %2373 = vmatpush1.msra.mxu0 0.0
        %2374 = vmatprep.subr.mxu0 0.0
        %2375 = vmatpush1.msra.mxu0 0.0
        %2376 = vmatprep.subr.mxu0 0.0
        %2377 = vmatpush1.msra.mxu0 0.0
        %2378 = vmatprep.subr.mxu0 0.0
        %2379 = vmatpush1.msra.mxu0 0.0
        %2380 = vmatprep.subr.mxu0 0.0
        %2381 = vmatpush1.msra.mxu0 0.0
        %2382 = vmatprep.subr.mxu0 0.0
        %2383 = vmatpush1.msra.mxu0 0.0
        %2384 = vmatprep.subr.mxu0 0.0
        %2385 = vmatpush1.msra.mxu0 0.0
        %2386 = vmatprep.subr.mxu0 0.0
        %2387 = vmatpush1.msra.mxu0 0.0
        %2388 = vmatprep.subr.mxu0 0.0
        %2389 = vmatpush1.msra.mxu0 0.0
        %2390 = vmatprep.subr.mxu0 0.0
        %2391 = vmatpush1.msra.mxu0 0.0
        %2392 = vmatprep.subr.mxu0 0.0
        %2393 = vmatpush1.msra.mxu0 0.0
        %2394 = vmatprep.subr.mxu0 0.0
        %2395 = vmatpush1.msra.mxu0 %v2291
        %2396 = vmatprep.subr.mxu0 0.0
        %2397 = vmatpush2.msra.mxu0 0.0
        %2398 = vmatprep.subr.mxu0 0.0
        %2399 = vmatpush2.msra.mxu0 0.0
        %2400 = vmatprep.subr.mxu0 0.0
        %2401 = vmatpush2.msra.mxu0 0.0
        %2402 = vmatprep.subr.mxu0 0.0
        %2403 = vmatpush2.msra.mxu0 0.0
        %2404 = vmatprep.subr.mxu0 0.0
        %2405 = vmatpush2.msra.mxu0 0.0
        %2406 = vmatprep.subr.mxu0 0.0
        %2407 = vmatpush2.msra.mxu0 0.0
        %2408 = vmatprep.subr.mxu0 0.0
        %2409 = vmatpush2.msra.mxu0 0.0
        %2410 = vmatprep.subr.mxu0 0.0
        %2411 = vmatpush2.msra.mxu0 0.0
        %2412 = vmatprep.subr.mxu0 0.0
        %2413 = vmatpush2.msra.mxu0 0.0
        %2414 = vmatprep.subr.mxu0 0.0
        %2415 = vmatpush2.msra.mxu0 0.0
        %2416 = vmatprep.subr.mxu0 0.0
        %2417 = vmatpush2.msra.mxu0 0.0
        %2418 = vmatprep.subr.mxu0 0.0
        %2419 = vmatpush2.msra.mxu0 0.0
        %2420 = vmatprep.subr.mxu0 0.0
        %2421 = vmatpush2.msra.mxu0 0.0
        %2422 = vmatprep.subr.mxu0 0.0
        %2423 = vmatpush2.msra.mxu0 0.0
        %2424 = vmatprep.subr.mxu0 0.0
        %2425 = vmatpush2.msra.mxu0 0.0
        %2426 = vmatprep.subr.mxu0 0.0
        %2427 = vmatpush2.msra.mxu0 0.0
        %2428 = vmatprep.mubr.f32.mxu0 0.0
        %2429 = vmatmul.mubr.f32.gmra.mxu0 %v2285
        %v2430 = vpop.f32.mrf.mxu0
        %v2431 = vadd.f32 0.0, %v2430
        %v2432 = vpop.f32.mrf.mxu0
        %2433 = vdwg.mxu0
        %v2434 = vadd.f32 %v2265, %v2360
        %v2435 = vadd.f32 %v2266, %v2362
        %v2436 = vadd.f32 %v2267, %v2431
        %2437 = vst [vmem:[#allocation3] sm:$0xff] %v2434
        %2438 = vst [vmem:[#allocation3 + $0x8] sm:$0xff] %v2435
        %2439 = vst.msk [vmem:[#allocation3 + $0x10] sm:$0xff] %vm281, %v2436
        %v2440 = vld [vmem:[#allocation2] sm:$0xff]
        %v2441 = vld [vmem:[#allocation2 + $0x8] sm:$0xff]
        %s2442 = scalar_lea.vmem %s3, 24
        %v2443 = vld [vmem:[%s2442] sm:$0xff]
        %v2444 = vld [vmem:[#allocation3] sm:$0xff]
        %v2445 = vld [vmem:[#allocation3 + $0x8] sm:$0xff]
        %v2446 = vld [vmem:[#allocation3 + $0x10] sm:$0xff]
        %v2449 = vcombine.high %v2440, %v2440
        %v2450 = vcombine.high %v2441, %v2441
        %2451 = vrot.lane.b32.xlu0 %v2440, 1
        %v2452 = vpop.permute.xlu0 %2451
        %2453 = vrot.lane.b32.xlu0 %v2449, 1
        %v2454 = vpop.permute.xlu0 %2453
        %2455 = vrot.lane.b32.xlu0 %v2441, 1
        %v2456 = vpop.permute.xlu0 %2455
        %2457 = vrot.lane.b32.xlu0 %v2450, 1
        %v2458 = vpop.permute.xlu0 %2457
        %vm2459 = vcmask 7168
        %v2460 = vsel %vm2459, %v2452, %v2454
        %v2461 = vsel %vm2459, %v2454, %v2456
        %v2462 = vsel %vm2459, %v2456, %v2458
        %v2464 = vsel %vm291, %v2443, 0
        %v2466 = vsel %vm295, %v2460, 0
        %v2468 = vsel %vm295, %v2461, 0
        %v2470 = vsel %vm295, %v2462, 0
        %2472 = vmatprep.subr.mxu0 0.0
        %2473 = vmatpush1.msra.mxu0 0.0
        %2474 = vmatprep.subr.mxu0 0.0
        %2475 = vmatpush1.msra.mxu0 0.0
        %2476 = vmatprep.subr.mxu0 0.0
        %2477 = vmatpush1.msra.mxu0 0.0
        %2478 = vmatprep.subr.mxu0 0.0
        %2479 = vmatpush1.msra.mxu0 0.0
        %2480 = vmatprep.subr.mxu0 0.0
        %2481 = vmatpush1.msra.mxu0 0.0
        %2482 = vmatprep.subr.mxu0 0.0
        %2483 = vmatpush1.msra.mxu0 0.0
        %2484 = vmatprep.subr.mxu0 0.0
        %2485 = vmatpush1.msra.mxu0 0.0
        %2486 = vmatprep.subr.mxu0 0.0
        %2487 = vmatpush1.msra.mxu0 0.0
        %2488 = vmatprep.subr.mxu0 0.0
        %2489 = vmatpush1.msra.mxu0 0.0
        %2490 = vmatprep.subr.mxu0 0.0
        %2491 = vmatpush1.msra.mxu0 0.0
        %2492 = vmatprep.subr.mxu0 0.0
        %2493 = vmatpush1.msra.mxu0 0.0
        %2494 = vmatprep.subr.mxu0 0.0
        %2495 = vmatpush1.msra.mxu0 0.0
        %2496 = vmatprep.subr.mxu0 0.0
        %2497 = vmatpush1.msra.mxu0 0.0
        %2498 = vmatprep.subr.mxu0 0.0
        %2499 = vmatpush1.msra.mxu0 0.0
        %2500 = vmatprep.subr.mxu0 0.0
        %2501 = vmatpush1.msra.mxu0 0.0
        %2502 = vmatprep.subr.mxu0 %v2468
        %2503 = vmatpush1.msra.mxu0 %v2466
        %2504 = vmatprep.subr.mxu0 0.0
        %2505 = vmatpush2.msra.mxu0 0.0
        %2506 = vmatprep.subr.mxu0 0.0
        %2507 = vmatpush2.msra.mxu0 0.0
        %2508 = vmatprep.subr.mxu0 0.0
        %2509 = vmatpush2.msra.mxu0 0.0
        %2510 = vmatprep.subr.mxu0 0.0
        %2511 = vmatpush2.msra.mxu0 0.0
        %2512 = vmatprep.subr.mxu0 0.0
        %2513 = vmatpush2.msra.mxu0 0.0
        %2514 = vmatprep.subr.mxu0 0.0
        %2515 = vmatpush2.msra.mxu0 0.0
        %2516 = vmatprep.subr.mxu0 0.0
        %2517 = vmatpush2.msra.mxu0 0.0
        %2518 = vmatprep.subr.mxu0 0.0
        %2519 = vmatpush2.msra.mxu0 0.0
        %2520 = vmatprep.subr.mxu0 0.0
        %2521 = vmatpush2.msra.mxu0 0.0
        %2522 = vmatprep.subr.mxu0 0.0
        %2523 = vmatpush2.msra.mxu0 0.0
        %2524 = vmatprep.subr.mxu0 0.0
        %2525 = vmatpush2.msra.mxu0 0.0
        %2526 = vmatprep.subr.mxu0 0.0
        %2527 = vmatpush2.msra.mxu0 0.0
        %2528 = vmatprep.subr.mxu0 0.0
        %2529 = vmatpush2.msra.mxu0 0.0
        %2530 = vmatprep.subr.mxu0 0.0
        %2531 = vmatpush2.msra.mxu0 0.0
        %2532 = vmatprep.subr.mxu0 0.0
        %2533 = vmatpush2.msra.mxu0 0.0
        %2534 = vmatprep.subr.mxu0 0.0
        %2535 = vmatpush2.msra.mxu0 0.0
        %2536 = vmatprep.mubr.f32.mxu0 0.0
        %2537 = vmatmul.mubr.f32.gmra.mxu0 %v2464
        %v2538 = vpop.f32.mrf.mxu0
        %v2539 = vadd.f32 0.0, %v2538
        %v2540 = vpop.f32.mrf.mxu0
        %v2541 = vadd.f32 0.0, %v2540
        %2542 = vdwg.mxu0
        %2543 = vmatprep.subr.mxu0 0.0
        %2544 = vmatpush1.msra.mxu0 0.0
        %2545 = vmatprep.subr.mxu0 0.0
        %2546 = vmatpush1.msra.mxu0 0.0
        %2547 = vmatprep.subr.mxu0 0.0
        %2548 = vmatpush1.msra.mxu0 0.0
        %2549 = vmatprep.subr.mxu0 0.0
        %2550 = vmatpush1.msra.mxu0 0.0
        %2551 = vmatprep.subr.mxu0 0.0
        %2552 = vmatpush1.msra.mxu0 0.0
        %2553 = vmatprep.subr.mxu0 0.0
        %2554 = vmatpush1.msra.mxu0 0.0
        %2555 = vmatprep.subr.mxu0 0.0
        %2556 = vmatpush1.msra.mxu0 0.0
        %2557 = vmatprep.subr.mxu0 0.0
        %2558 = vmatpush1.msra.mxu0 0.0
        %2559 = vmatprep.subr.mxu0 0.0
        %2560 = vmatpush1.msra.mxu0 0.0
        %2561 = vmatprep.subr.mxu0 0.0
        %2562 = vmatpush1.msra.mxu0 0.0
        %2563 = vmatprep.subr.mxu0 0.0
        %2564 = vmatpush1.msra.mxu0 0.0
        %2565 = vmatprep.subr.mxu0 0.0
        %2566 = vmatpush1.msra.mxu0 0.0
        %2567 = vmatprep.subr.mxu0 0.0
        %2568 = vmatpush1.msra.mxu0 0.0
        %2569 = vmatprep.subr.mxu0 0.0
        %2570 = vmatpush1.msra.mxu0 0.0
        %2571 = vmatprep.subr.mxu0 0.0
        %2572 = vmatpush1.msra.mxu0 0.0
        %2573 = vmatprep.subr.mxu0 0.0
        %2574 = vmatpush1.msra.mxu0 %v2470
        %2575 = vmatprep.subr.mxu0 0.0
        %2576 = vmatpush2.msra.mxu0 0.0
        %2577 = vmatprep.subr.mxu0 0.0
        %2578 = vmatpush2.msra.mxu0 0.0
        %2579 = vmatprep.subr.mxu0 0.0
        %2580 = vmatpush2.msra.mxu0 0.0
        %2581 = vmatprep.subr.mxu0 0.0
        %2582 = vmatpush2.msra.mxu0 0.0
        %2583 = vmatprep.subr.mxu0 0.0
        %2584 = vmatpush2.msra.mxu0 0.0
        %2585 = vmatprep.subr.mxu0 0.0
        %2586 = vmatpush2.msra.mxu0 0.0
        %2587 = vmatprep.subr.mxu0 0.0
        %2588 = vmatpush2.msra.mxu0 0.0
        %2589 = vmatprep.subr.mxu0 0.0
        %2590 = vmatpush2.msra.mxu0 0.0
        %2591 = vmatprep.subr.mxu0 0.0
        %2592 = vmatpush2.msra.mxu0 0.0
        %2593 = vmatprep.subr.mxu0 0.0
        %2594 = vmatpush2.msra.mxu0 0.0
        %2595 = vmatprep.subr.mxu0 0.0
        %2596 = vmatpush2.msra.mxu0 0.0
        %2597 = vmatprep.subr.mxu0 0.0
        %2598 = vmatpush2.msra.mxu0 0.0
        %2599 = vmatprep.subr.mxu0 0.0
        %2600 = vmatpush2.msra.mxu0 0.0
        %2601 = vmatprep.subr.mxu0 0.0
        %2602 = vmatpush2.msra.mxu0 0.0
        %2603 = vmatprep.subr.mxu0 0.0
        %2604 = vmatpush2.msra.mxu0 0.0
        %2605 = vmatprep.subr.mxu0 0.0
        %2606 = vmatpush2.msra.mxu0 0.0
        %2607 = vmatprep.mubr.f32.mxu0 0.0
        %2608 = vmatmul.mubr.f32.gmra.mxu0 %v2464
        %v2609 = vpop.f32.mrf.mxu0
        %v2610 = vadd.f32 0.0, %v2609
        %v2611 = vpop.f32.mrf.mxu0
        %2612 = vdwg.mxu0
        %v2613 = vadd.f32 %v2444, %v2539
        %v2614 = vadd.f32 %v2445, %v2541
        %v2615 = vadd.f32 %v2446, %v2610
        %2616 = vst [vmem:[#allocation3] sm:$0xff] %v2613
        %2617 = vst [vmem:[#allocation3 + $0x8] sm:$0xff] %v2614
        %2618 = vst.msk [vmem:[#allocation3 + $0x10] sm:$0xff] %vm281, %v2615
        %v2619 = vld [vmem:[#allocation2 + $0x4] sm:$0xff]
        %v2620 = vld [vmem:[#allocation2 + $0xc] sm:$0xf]
        %s2621 = scalar_lea.vmem %s3, 32
        %v2622 = vld [vmem:[%s2621] sm:$0xff]
        %v2623 = vld [vmem:[#allocation3] sm:$0xff]
        %v2624 = vld [vmem:[#allocation3 + $0x8] sm:$0xff]
        %v2625 = vld [vmem:[#allocation3 + $0x10] sm:$0xff]
        %v2628 = vcombine.high %v2619, %v2619
        %v2630 = vsel %vm291, %v2622, 0
        %v2632 = vsel %vm295, %v2619, 0
        %v2634 = vsel %vm295, %v2628, 0
        %v2636 = vsel %vm295, %v2620, 0
        %2638 = vmatprep.subr.mxu0 0.0
        %2639 = vmatpush1.msra.mxu0 0.0
        %2640 = vmatprep.subr.mxu0 0.0
        %2641 = vmatpush1.msra.mxu0 0.0
        %2642 = vmatprep.subr.mxu0 0.0
        %2643 = vmatpush1.msra.mxu0 0.0
        %2644 = vmatprep.subr.mxu0 0.0
        %2645 = vmatpush1.msra.mxu0 0.0
        %2646 = vmatprep.subr.mxu0 0.0
        %2647 = vmatpush1.msra.mxu0 0.0
        %2648 = vmatprep.subr.mxu0 0.0
        %2649 = vmatpush1.msra.mxu0 0.0
        %2650 = vmatprep.subr.mxu0 0.0
        %2651 = vmatpush1.msra.mxu0 0.0
        %2652 = vmatprep.subr.mxu0 0.0
        %2653 = vmatpush1.msra.mxu0 0.0
        %2654 = vmatprep.subr.mxu0 0.0
        %2655 = vmatpush1.msra.mxu0 0.0
        %2656 = vmatprep.subr.mxu0 0.0
        %2657 = vmatpush1.msra.mxu0 0.0
        %2658 = vmatprep.subr.mxu0 0.0
        %2659 = vmatpush1.msra.mxu0 0.0
        %2660 = vmatprep.subr.mxu0 0.0
        %2661 = vmatpush1.msra.mxu0 0.0
        %2662 = vmatprep.subr.mxu0 0.0
        %2663 = vmatpush1.msra.mxu0 0.0
        %2664 = vmatprep.subr.mxu0 0.0
        %2665 = vmatpush1.msra.mxu0 0.0
        %2666 = vmatprep.subr.mxu0 0.0
        %2667 = vmatpush1.msra.mxu0 0.0
        %2668 = vmatprep.subr.mxu0 %v2634
        %2669 = vmatpush1.msra.mxu0 %v2632
        %2670 = vmatprep.subr.mxu0 0.0
        %2671 = vmatpush2.msra.mxu0 0.0
        %2672 = vmatprep.subr.mxu0 0.0
        %2673 = vmatpush2.msra.mxu0 0.0
        %2674 = vmatprep.subr.mxu0 0.0
        %2675 = vmatpush2.msra.mxu0 0.0
        %2676 = vmatprep.subr.mxu0 0.0
        %2677 = vmatpush2.msra.mxu0 0.0
        %2678 = vmatprep.subr.mxu0 0.0
        %2679 = vmatpush2.msra.mxu0 0.0
        %2680 = vmatprep.subr.mxu0 0.0
        %2681 = vmatpush2.msra.mxu0 0.0
        %2682 = vmatprep.subr.mxu0 0.0
        %2683 = vmatpush2.msra.mxu0 0.0
        %2684 = vmatprep.subr.mxu0 0.0
        %2685 = vmatpush2.msra.mxu0 0.0
        %2686 = vmatprep.subr.mxu0 0.0
        %2687 = vmatpush2.msra.mxu0 0.0
        %2688 = vmatprep.subr.mxu0 0.0
        %2689 = vmatpush2.msra.mxu0 0.0
        %2690 = vmatprep.subr.mxu0 0.0
        %2691 = vmatpush2.msra.mxu0 0.0
        %2692 = vmatprep.subr.mxu0 0.0
        %2693 = vmatpush2.msra.mxu0 0.0
        %2694 = vmatprep.subr.mxu0 0.0
        %2695 = vmatpush2.msra.mxu0 0.0
        %2696 = vmatprep.subr.mxu0 0.0
        %2697 = vmatpush2.msra.mxu0 0.0
        %2698 = vmatprep.subr.mxu0 0.0
        %2699 = vmatpush2.msra.mxu0 0.0
        %2700 = vmatprep.subr.mxu0 0.0
        %2701 = vmatpush2.msra.mxu0 0.0
        %2702 = vmatprep.mubr.f32.mxu0 0.0
        %2703 = vmatmul.mubr.f32.gmra.mxu0 %v2630
        %v2704 = vpop.f32.mrf.mxu0
        %v2705 = vadd.f32 0.0, %v2704
        %v2706 = vpop.f32.mrf.mxu0
        %v2707 = vadd.f32 0.0, %v2706
        %2708 = vdwg.mxu0
        %2709 = vmatprep.subr.mxu0 0.0
        %2710 = vmatpush1.msra.mxu0 0.0
        %2711 = vmatprep.subr.mxu0 0.0
        %2712 = vmatpush1.msra.mxu0 0.0
        %2713 = vmatprep.subr.mxu0 0.0
        %2714 = vmatpush1.msra.mxu0 0.0
        %2715 = vmatprep.subr.mxu0 0.0
        %2716 = vmatpush1.msra.mxu0 0.0
        %2717 = vmatprep.subr.mxu0 0.0
        %2718 = vmatpush1.msra.mxu0 0.0
        %2719 = vmatprep.subr.mxu0 0.0
        %2720 = vmatpush1.msra.mxu0 0.0
        %2721 = vmatprep.subr.mxu0 0.0
        %2722 = vmatpush1.msra.mxu0 0.0
        %2723 = vmatprep.subr.mxu0 0.0
        %2724 = vmatpush1.msra.mxu0 0.0
        %2725 = vmatprep.subr.mxu0 0.0
        %2726 = vmatpush1.msra.mxu0 0.0
        %2727 = vmatprep.subr.mxu0 0.0
        %2728 = vmatpush1.msra.mxu0 0.0
        %2729 = vmatprep.subr.mxu0 0.0
        %2730 = vmatpush1.msra.mxu0 0.0
        %2731 = vmatprep.subr.mxu0 0.0
        %2732 = vmatpush1.msra.mxu0 0.0
        %2733 = vmatprep.subr.mxu0 0.0
        %2734 = vmatpush1.msra.mxu0 0.0
        %2735 = vmatprep.subr.mxu0 0.0
        %2736 = vmatpush1.msra.mxu0 0.0
        %2737 = vmatprep.subr.mxu0 0.0
        %2738 = vmatpush1.msra.mxu0 0.0
        %2739 = vmatprep.subr.mxu0 0.0
        %2740 = vmatpush1.msra.mxu0 %v2636
        %2741 = vmatprep.subr.mxu0 0.0
        %2742 = vmatpush2.msra.mxu0 0.0
        %2743 = vmatprep.subr.mxu0 0.0
        %2744 = vmatpush2.msra.mxu0 0.0
        %2745 = vmatprep.subr.mxu0 0.0
        %2746 = vmatpush2.msra.mxu0 0.0
        %2747 = vmatprep.subr.mxu0 0.0
        %2748 = vmatpush2.msra.mxu0 0.0
        %2749 = vmatprep.subr.mxu0 0.0
        %2750 = vmatpush2.msra.mxu0 0.0
        %2751 = vmatprep.subr.mxu0 0.0
        %2752 = vmatpush2.msra.mxu0 0.0
        %2753 = vmatprep.subr.mxu0 0.0
        %2754 = vmatpush2.msra.mxu0 0.0
        %2755 = vmatprep.subr.mxu0 0.0
        %2756 = vmatpush2.msra.mxu0 0.0
        %2757 = vmatprep.subr.mxu0 0.0
        %2758 = vmatpush2.msra.mxu0 0.0
        %2759 = vmatprep.subr.mxu0 0.0
        %2760 = vmatpush2.msra.mxu0 0.0
        %2761 = vmatprep.subr.mxu0 0.0
        %2762 = vmatpush2.msra.mxu0 0.0
        %2763 = vmatprep.subr.mxu0 0.0
        %2764 = vmatpush2.msra.mxu0 0.0
        %2765 = vmatprep.subr.mxu0 0.0
        %2766 = vmatpush2.msra.mxu0 0.0
        %2767 = vmatprep.subr.mxu0 0.0
        %2768 = vmatpush2.msra.mxu0 0.0
        %2769 = vmatprep.subr.mxu0 0.0
        %2770 = vmatpush2.msra.mxu0 0.0
        %2771 = vmatprep.subr.mxu0 0.0
        %2772 = vmatpush2.msra.mxu0 0.0
        %2773 = vmatprep.mubr.f32.mxu0 0.0
        %2774 = vmatmul.mubr.f32.gmra.mxu0 %v2630
        %v2775 = vpop.f32.mrf.mxu0
        %v2776 = vadd.f32 0.0, %v2775
        %v2777 = vpop.f32.mrf.mxu0
        %2778 = vdwg.mxu0
        %v2779 = vadd.f32 %v2623, %v2705
        %v2780 = vadd.f32 %v2624, %v2707
        %v2781 = vadd.f32 %v2625, %v2776
        %2782 = vst [vmem:[#allocation3] sm:$0xff] %v2779
        %2783 = vst [vmem:[#allocation3 + $0x8] sm:$0xff] %v2780
        %2784 = vst.msk [vmem:[#allocation3 + $0x10] sm:$0xff] %vm281, %v2781
        %v2785 = vld [vmem:[#allocation2 + $0x4] sm:$0xff]
        %v2786 = vld [vmem:[#allocation2 + $0xc] sm:$0xf]
        %s2787 = scalar_lea.vmem %s3, 40
        %v2788 = vld [vmem:[%s2787] sm:$0xff]
        %v2789 = vld [vmem:[#allocation3] sm:$0xff]
        %v2790 = vld [vmem:[#allocation3 + $0x8] sm:$0xff]
        %v2791 = vld [vmem:[#allocation3 + $0x10] sm:$0xff]
        %v2794 = vcombine.high %v2785, %v2785
        %2795 = vrot.lane.b32.xlu0 %v2785, 127
        %v2796 = vpop.permute.xlu0 %2795
        %2797 = vrot.lane.b32.xlu0 %v2794, 127
        %v2798 = vpop.permute.xlu0 %2797
        %2799 = vrot.lane.b32.xlu0 %v2786, 127
        %v2800 = vpop.permute.xlu0 %2799
        %v2801 = vsel %vm467, %v2796, %v2798
        %v2802 = vsel %vm467, %v2798, %v2800
        %v2804 = vsel %vm291, %v2788, 0
        %v2806 = vsel %vm295, %v2801, 0
        %v2808 = vsel %vm295, %v2802, 0
        %v2810 = vsel %vm295, %v2800, 0
        %2812 = vmatprep.subr.mxu0 0.0
        %2813 = vmatpush1.msra.mxu0 0.0
        %2814 = vmatprep.subr.mxu0 0.0
        %2815 = vmatpush1.msra.mxu0 0.0
        %2816 = vmatprep.subr.mxu0 0.0
        %2817 = vmatpush1.msra.mxu0 0.0
        %2818 = vmatprep.subr.mxu0 0.0
        %2819 = vmatpush1.msra.mxu0 0.0
        %2820 = vmatprep.subr.mxu0 0.0
        %2821 = vmatpush1.msra.mxu0 0.0
        %2822 = vmatprep.subr.mxu0 0.0
        %2823 = vmatpush1.msra.mxu0 0.0
        %2824 = vmatprep.subr.mxu0 0.0
        %2825 = vmatpush1.msra.mxu0 0.0
        %2826 = vmatprep.subr.mxu0 0.0
        %2827 = vmatpush1.msra.mxu0 0.0
        %2828 = vmatprep.subr.mxu0 0.0
        %2829 = vmatpush1.msra.mxu0 0.0
        %2830 = vmatprep.subr.mxu0 0.0
        %2831 = vmatpush1.msra.mxu0 0.0
        %2832 = vmatprep.subr.mxu0 0.0
        %2833 = vmatpush1.msra.mxu0 0.0
        %2834 = vmatprep.subr.mxu0 0.0
        %2835 = vmatpush1.msra.mxu0 0.0
        %2836 = vmatprep.subr.mxu0 0.0
        %2837 = vmatpush1.msra.mxu0 0.0
        %2838 = vmatprep.subr.mxu0 0.0
        %2839 = vmatpush1.msra.mxu0 0.0
        %2840 = vmatprep.subr.mxu0 0.0
        %2841 = vmatpush1.msra.mxu0 0.0
        %2842 = vmatprep.subr.mxu0 %v2808
        %2843 = vmatpush1.msra.mxu0 %v2806
        %2844 = vmatprep.subr.mxu0 0.0
        %2845 = vmatpush2.msra.mxu0 0.0
        %2846 = vmatprep.subr.mxu0 0.0
        %2847 = vmatpush2.msra.mxu0 0.0
        %2848 = vmatprep.subr.mxu0 0.0
        %2849 = vmatpush2.msra.mxu0 0.0
        %2850 = vmatprep.subr.mxu0 0.0
        %2851 = vmatpush2.msra.mxu0 0.0
        %2852 = vmatprep.subr.mxu0 0.0
        %2853 = vmatpush2.msra.mxu0 0.0
        %2854 = vmatprep.subr.mxu0 0.0
        %2855 = vmatpush2.msra.mxu0 0.0
        %2856 = vmatprep.subr.mxu0 0.0
        %2857 = vmatpush2.msra.mxu0 0.0
        %2858 = vmatprep.subr.mxu0 0.0
        %2859 = vmatpush2.msra.mxu0 0.0
        %2860 = vmatprep.subr.mxu0 0.0
        %2861 = vmatpush2.msra.mxu0 0.0
        %2862 = vmatprep.subr.mxu0 0.0
        %2863 = vmatpush2.msra.mxu0 0.0
        %2864 = vmatprep.subr.mxu0 0.0
        %2865 = vmatpush2.msra.mxu0 0.0
        %2866 = vmatprep.subr.mxu0 0.0
        %2867 = vmatpush2.msra.mxu0 0.0
        %2868 = vmatprep.subr.mxu0 0.0
        %2869 = vmatpush2.msra.mxu0 0.0
        %2870 = vmatprep.subr.mxu0 0.0
        %2871 = vmatpush2.msra.mxu0 0.0
        %2872 = vmatprep.subr.mxu0 0.0
        %2873 = vmatpush2.msra.mxu0 0.0
        %2874 = vmatprep.subr.mxu0 0.0
        %2875 = vmatpush2.msra.mxu0 0.0
        %2876 = vmatprep.mubr.f32.mxu0 0.0
        %2877 = vmatmul.mubr.f32.gmra.mxu0 %v2804
        %v2878 = vpop.f32.mrf.mxu0
        %v2879 = vadd.f32 0.0, %v2878
        %v2880 = vpop.f32.mrf.mxu0
        %v2881 = vadd.f32 0.0, %v2880
        %2882 = vdwg.mxu0
        %2883 = vmatprep.subr.mxu0 0.0
        %2884 = vmatpush1.msra.mxu0 0.0
        %2885 = vmatprep.subr.mxu0 0.0
        %2886 = vmatpush1.msra.mxu0 0.0
        %2887 = vmatprep.subr.mxu0 0.0
        %2888 = vmatpush1.msra.mxu0 0.0
        %2889 = vmatprep.subr.mxu0 0.0
        %2890 = vmatpush1.msra.mxu0 0.0
        %2891 = vmatprep.subr.mxu0 0.0
        %2892 = vmatpush1.msra.mxu0 0.0
        %2893 = vmatprep.subr.mxu0 0.0
        %2894 = vmatpush1.msra.mxu0 0.0
        %2895 = vmatprep.subr.mxu0 0.0
        %2896 = vmatpush1.msra.mxu0 0.0
        %2897 = vmatprep.subr.mxu0 0.0
        %2898 = vmatpush1.msra.mxu0 0.0
        %2899 = vmatprep.subr.mxu0 0.0
        %2900 = vmatpush1.msra.mxu0 0.0
        %2901 = vmatprep.subr.mxu0 0.0
        %2902 = vmatpush1.msra.mxu0 0.0
        %2903 = vmatprep.subr.mxu0 0.0
        %2904 = vmatpush1.msra.mxu0 0.0
        %2905 = vmatprep.subr.mxu0 0.0
        %2906 = vmatpush1.msra.mxu0 0.0
        %2907 = vmatprep.subr.mxu0 0.0
        %2908 = vmatpush1.msra.mxu0 0.0
        %2909 = vmatprep.subr.mxu0 0.0
        %2910 = vmatpush1.msra.mxu0 0.0
        %2911 = vmatprep.subr.mxu0 0.0
        %2912 = vmatpush1.msra.mxu0 0.0
        %2913 = vmatprep.subr.mxu0 0.0
        %2914 = vmatpush1.msra.mxu0 %v2810
        %2915 = vmatprep.subr.mxu0 0.0
        %2916 = vmatpush2.msra.mxu0 0.0
        %2917 = vmatprep.subr.mxu0 0.0
        %2918 = vmatpush2.msra.mxu0 0.0
        %2919 = vmatprep.subr.mxu0 0.0
        %2920 = vmatpush2.msra.mxu0 0.0
        %2921 = vmatprep.subr.mxu0 0.0
        %2922 = vmatpush2.msra.mxu0 0.0
        %2923 = vmatprep.subr.mxu0 0.0
        %2924 = vmatpush2.msra.mxu0 0.0
        %2925 = vmatprep.subr.mxu0 0.0
        %2926 = vmatpush2.msra.mxu0 0.0
        %2927 = vmatprep.subr.mxu0 0.0
        %2928 = vmatpush2.msra.mxu0 0.0
        %2929 = vmatprep.subr.mxu0 0.0
        %2930 = vmatpush2.msra.mxu0 0.0
        %2931 = vmatprep.subr.mxu0 0.0
        %2932 = vmatpush2.msra.mxu0 0.0
        %2933 = vmatprep.subr.mxu0 0.0
        %2934 = vmatpush2.msra.mxu0 0.0
        %2935 = vmatprep.subr.mxu0 0.0
        %2936 = vmatpush2.msra.mxu0 0.0
        %2937 = vmatprep.subr.mxu0 0.0
        %2938 = vmatpush2.msra.mxu0 0.0
        %2939 = vmatprep.subr.mxu0 0.0
        %2940 = vmatpush2.msra.mxu0 0.0
        %2941 = vmatprep.subr.mxu0 0.0
        %2942 = vmatpush2.msra.mxu0 0.0
        %2943 = vmatprep.subr.mxu0 0.0
        %2944 = vmatpush2.msra.mxu0 0.0
        %2945 = vmatprep.subr.mxu0 0.0
        %2946 = vmatpush2.msra.mxu0 0.0
        %2947 = vmatprep.mubr.f32.mxu0 0.0
        %2948 = vmatmul.mubr.f32.gmra.mxu0 %v2804
        %v2949 = vpop.f32.mrf.mxu0
        %v2950 = vadd.f32 0.0, %v2949
        %v2951 = vpop.f32.mrf.mxu0
        %2952 = vdwg.mxu0
        %v2953 = vadd.f32 %v2789, %v2879
        %v2954 = vadd.f32 %v2790, %v2881
        %v2955 = vadd.f32 %v2791, %v2950
        %2956 = vst [vmem:[#allocation3] sm:$0xff] %v2953
        %2957 = vst [vmem:[#allocation3 + $0x8] sm:$0xff] %v2954
        %2958 = vst.msk [vmem:[#allocation3 + $0x10] sm:$0xff] %vm281, %v2955
        %v2959 = vld [vmem:[#allocation2 + $0x4] sm:$0xff]
        %v2960 = vld [vmem:[#allocation2 + $0xc] sm:$0xf]
        %s2961 = scalar_lea.vmem %s3, 48
        %v2962 = vld [vmem:[%s2961] sm:$0xff]
        %v2963 = vld [vmem:[#allocation3] sm:$0xff]
        %v2964 = vld [vmem:[#allocation3 + $0x8] sm:$0xff]
        %v2965 = vld [vmem:[#allocation3 + $0x10] sm:$0xff]
        %v2968 = vcombine.high %v2959, %v2959
        %2969 = vrot.lane.b32.xlu0 %v2959, 111
        %v2970 = vpop.permute.xlu0 %2969
        %2971 = vrot.lane.b32.xlu0 %v2968, 111
        %v2972 = vpop.permute.xlu0 %2971
        %2973 = vrot.lane.b32.xlu0 %v2960, 111
        %v2974 = vpop.permute.xlu0 %2973
        %vm2975 = vcmask 908288
        %v2976 = vsel %vm2975, %v2970, %v2972
        %v2977 = vsel %vm2975, %v2972, %v2974
        %v2979 = vsel %vm291, %v2962, 0
        %v2981 = vsel %vm295, %v2976, 0
        %v2983 = vsel %vm295, %v2977, 0
        %v2985 = vsel %vm295, %v2974, 0
        %2987 = vmatprep.subr.mxu0 0.0
        %2988 = vmatpush1.msra.mxu0 0.0
        %2989 = vmatprep.subr.mxu0 0.0
        %2990 = vmatpush1.msra.mxu0 0.0
        %2991 = vmatprep.subr.mxu0 0.0
        %2992 = vmatpush1.msra.mxu0 0.0
        %2993 = vmatprep.subr.mxu0 0.0
        %2994 = vmatpush1.msra.mxu0 0.0
        %2995 = vmatprep.subr.mxu0 0.0
        %2996 = vmatpush1.msra.mxu0 0.0
        %2997 = vmatprep.subr.mxu0 0.0
        %2998 = vmatpush1.msra.mxu0 0.0
        %2999 = vmatprep.subr.mxu0 0.0
        %3000 = vmatpush1.msra.mxu0 0.0
        %3001 = vmatprep.subr.mxu0 0.0
        %3002 = vmatpush1.msra.mxu0 0.0
        %3003 = vmatprep.subr.mxu0 0.0
        %3004 = vmatpush1.msra.mxu0 0.0
        %3005 = vmatprep.subr.mxu0 0.0
        %3006 = vmatpush1.msra.mxu0 0.0
        %3007 = vmatprep.subr.mxu0 0.0
        %3008 = vmatpush1.msra.mxu0 0.0
        %3009 = vmatprep.subr.mxu0 0.0
        %3010 = vmatpush1.msra.mxu0 0.0
        %3011 = vmatprep.subr.mxu0 0.0
        %3012 = vmatpush1.msra.mxu0 0.0
        %3013 = vmatprep.subr.mxu0 0.0
        %3014 = vmatpush1.msra.mxu0 0.0
        %3015 = vmatprep.subr.mxu0 0.0
        %3016 = vmatpush1.msra.mxu0 0.0
        %3017 = vmatprep.subr.mxu0 %v2983
        %3018 = vmatpush1.msra.mxu0 %v2981
        %3019 = vmatprep.subr.mxu0 0.0
        %3020 = vmatpush2.msra.mxu0 0.0
        %3021 = vmatprep.subr.mxu0 0.0
        %3022 = vmatpush2.msra.mxu0 0.0
        %3023 = vmatprep.subr.mxu0 0.0
        %3024 = vmatpush2.msra.mxu0 0.0
        %3025 = vmatprep.subr.mxu0 0.0
        %3026 = vmatpush2.msra.mxu0 0.0
        %3027 = vmatprep.subr.mxu0 0.0
        %3028 = vmatpush2.msra.mxu0 0.0
        %3029 = vmatprep.subr.mxu0 0.0
        %3030 = vmatpush2.msra.mxu0 0.0
        %3031 = vmatprep.subr.mxu0 0.0
        %3032 = vmatpush2.msra.mxu0 0.0
        %3033 = vmatprep.subr.mxu0 0.0
        %3034 = vmatpush2.msra.mxu0 0.0
        %3035 = vmatprep.subr.mxu0 0.0
        %3036 = vmatpush2.msra.mxu0 0.0
        %3037 = vmatprep.subr.mxu0 0.0
        %3038 = vmatpush2.msra.mxu0 0.0
        %3039 = vmatprep.subr.mxu0 0.0
        %3040 = vmatpush2.msra.mxu0 0.0
        %3041 = vmatprep.subr.mxu0 0.0
        %3042 = vmatpush2.msra.mxu0 0.0
        %3043 = vmatprep.subr.mxu0 0.0
        %3044 = vmatpush2.msra.mxu0 0.0
        %3045 = vmatprep.subr.mxu0 0.0
        %3046 = vmatpush2.msra.mxu0 0.0
        %3047 = vmatprep.subr.mxu0 0.0
        %3048 = vmatpush2.msra.mxu0 0.0
        %3049 = vmatprep.subr.mxu0 0.0
        %3050 = vmatpush2.msra.mxu0 0.0
        %3051 = vmatprep.mubr.f32.mxu0 0.0
        %3052 = vmatmul.mubr.f32.gmra.mxu0 %v2979
        %v3053 = vpop.f32.mrf.mxu0
        %v3054 = vadd.f32 0.0, %v3053
        %v3055 = vpop.f32.mrf.mxu0
        %v3056 = vadd.f32 0.0, %v3055
        %3057 = vdwg.mxu0
        %3058 = vmatprep.subr.mxu0 0.0
        %3059 = vmatpush1.msra.mxu0 0.0
        %3060 = vmatprep.subr.mxu0 0.0
        %3061 = vmatpush1.msra.mxu0 0.0
        %3062 = vmatprep.subr.mxu0 0.0
        %3063 = vmatpush1.msra.mxu0 0.0
        %3064 = vmatprep.subr.mxu0 0.0
        %3065 = vmatpush1.msra.mxu0 0.0
        %3066 = vmatprep.subr.mxu0 0.0
        %3067 = vmatpush1.msra.mxu0 0.0
        %3068 = vmatprep.subr.mxu0 0.0
        %3069 = vmatpush1.msra.mxu0 0.0
        %3070 = vmatprep.subr.mxu0 0.0
        %3071 = vmatpush1.msra.mxu0 0.0
        %3072 = vmatprep.subr.mxu0 0.0
        %3073 = vmatpush1.msra.mxu0 0.0
        %3074 = vmatprep.subr.mxu0 0.0
        %3075 = vmatpush1.msra.mxu0 0.0
        %3076 = vmatprep.subr.mxu0 0.0
        %3077 = vmatpush1.msra.mxu0 0.0
        %3078 = vmatprep.subr.mxu0 0.0
        %3079 = vmatpush1.msra.mxu0 0.0
        %3080 = vmatprep.subr.mxu0 0.0
        %3081 = vmatpush1.msra.mxu0 0.0
        %3082 = vmatprep.subr.mxu0 0.0
        %3083 = vmatpush1.msra.mxu0 0.0
        %3084 = vmatprep.subr.mxu0 0.0
        %3085 = vmatpush1.msra.mxu0 0.0
        %3086 = vmatprep.subr.mxu0 0.0
        %3087 = vmatpush1.msra.mxu0 0.0
        %3088 = vmatprep.subr.mxu0 0.0
        %3089 = vmatpush1.msra.mxu0 %v2985
        %3090 = vmatprep.subr.mxu0 0.0
        %3091 = vmatpush2.msra.mxu0 0.0
        %3092 = vmatprep.subr.mxu0 0.0
        %3093 = vmatpush2.msra.mxu0 0.0
        %3094 = vmatprep.subr.mxu0 0.0
        %3095 = vmatpush2.msra.mxu0 0.0
        %3096 = vmatprep.subr.mxu0 0.0
        %3097 = vmatpush2.msra.mxu0 0.0
        %3098 = vmatprep.subr.mxu0 0.0
        %3099 = vmatpush2.msra.mxu0 0.0
        %3100 = vmatprep.subr.mxu0 0.0
        %3101 = vmatpush2.msra.mxu0 0.0
        %3102 = vmatprep.subr.mxu0 0.0
        %3103 = vmatpush2.msra.mxu0 0.0
        %3104 = vmatprep.subr.mxu0 0.0
        %3105 = vmatpush2.msra.mxu0 0.0
        %3106 = vmatprep.subr.mxu0 0.0
        %3107 = vmatpush2.msra.mxu0 0.0
        %3108 = vmatprep.subr.mxu0 0.0
        %3109 = vmatpush2.msra.mxu0 0.0
        %3110 = vmatprep.subr.mxu0 0.0
        %3111 = vmatpush2.msra.mxu0 0.0
        %3112 = vmatprep.subr.mxu0 0.0
        %3113 = vmatpush2.msra.mxu0 0.0
        %3114 = vmatprep.subr.mxu0 0.0
        %3115 = vmatpush2.msra.mxu0 0.0
        %3116 = vmatprep.subr.mxu0 0.0
        %3117 = vmatpush2.msra.mxu0 0.0
        %3118 = vmatprep.subr.mxu0 0.0
        %3119 = vmatpush2.msra.mxu0 0.0
        %3120 = vmatprep.subr.mxu0 0.0
        %3121 = vmatpush2.msra.mxu0 0.0
        %3122 = vmatprep.mubr.f32.mxu0 0.0
        %3123 = vmatmul.mubr.f32.gmra.mxu0 %v2979
        %v3124 = vpop.f32.mrf.mxu0
        %v3125 = vadd.f32 0.0, %v3124
        %v3126 = vpop.f32.mrf.mxu0
        %3127 = vdwg.mxu0
        %v3128 = vadd.f32 %v2963, %v3054
        %v3129 = vadd.f32 %v2964, %v3056
        %v3130 = vadd.f32 %v2965, %v3125
        %3131 = vst [vmem:[#allocation3] sm:$0xff] %v3128
        %3132 = vst [vmem:[#allocation3 + $0x8] sm:$0xff] %v3129
        %3133 = vst.msk [vmem:[#allocation3 + $0x10] sm:$0xff] %vm281, %v3130
        %v3134 = vld [vmem:[#allocation2 + $0x4] sm:$0xff]
        %v3135 = vld [vmem:[#allocation2 + $0xc] sm:$0xf]
        %s3136 = scalar_lea.vmem %s3, 56
        %v3137 = vld [vmem:[%s3136] sm:$0xff]
        %v3138 = vld [vmem:[#allocation3] sm:$0xff]
        %v3139 = vld [vmem:[#allocation3 + $0x8] sm:$0xff]
        %v3140 = vld [vmem:[#allocation3 + $0x10] sm:$0xff]
        %v3143 = vcombine.high %v3134, %v3134
        %3144 = vrot.lane.b32.xlu0 %v3134, 110
        %v3145 = vpop.permute.xlu0 %3144
        %3146 = vrot.lane.b32.xlu0 %v3143, 110
        %v3147 = vpop.permute.xlu0 %3146
        %3148 = vrot.lane.b32.xlu0 %v3135, 110
        %v3149 = vpop.permute.xlu0 %3148
        %v3150 = vsel %vm819, %v3145, %v3147
        %v3151 = vsel %vm819, %v3147, %v3149
        %v3153 = vsel %vm291, %v3137, 0
        %v3155 = vsel %vm295, %v3150, 0
        %v3157 = vsel %vm295, %v3151, 0
        %v3159 = vsel %vm295, %v3149, 0
        %3161 = vmatprep.subr.mxu0 0.0
        %3162 = vmatpush1.msra.mxu0 0.0
        %3163 = vmatprep.subr.mxu0 0.0
        %3164 = vmatpush1.msra.mxu0 0.0
        %3165 = vmatprep.subr.mxu0 0.0
        %3166 = vmatpush1.msra.mxu0 0.0
        %3167 = vmatprep.subr.mxu0 0.0
        %3168 = vmatpush1.msra.mxu0 0.0
        %3169 = vmatprep.subr.mxu0 0.0
        %3170 = vmatpush1.msra.mxu0 0.0
        %3171 = vmatprep.subr.mxu0 0.0
        %3172 = vmatpush1.msra.mxu0 0.0
        %3173 = vmatprep.subr.mxu0 0.0
        %3174 = vmatpush1.msra.mxu0 0.0
        %3175 = vmatprep.subr.mxu0 0.0
        %3176 = vmatpush1.msra.mxu0 0.0
        %3177 = vmatprep.subr.mxu0 0.0
        %3178 = vmatpush1.msra.mxu0 0.0
        %3179 = vmatprep.subr.mxu0 0.0
        %3180 = vmatpush1.msra.mxu0 0.0
        %3181 = vmatprep.subr.mxu0 0.0
        %3182 = vmatpush1.msra.mxu0 0.0
        %3183 = vmatprep.subr.mxu0 0.0
        %3184 = vmatpush1.msra.mxu0 0.0
        %3185 = vmatprep.subr.mxu0 0.0
        %3186 = vmatpush1.msra.mxu0 0.0
        %3187 = vmatprep.subr.mxu0 0.0
        %3188 = vmatpush1.msra.mxu0 0.0
        %3189 = vmatprep.subr.mxu0 0.0
        %3190 = vmatpush1.msra.mxu0 0.0
        %3191 = vmatprep.subr.mxu0 %v3157
        %3192 = vmatpush1.msra.mxu0 %v3155
        %3193 = vmatprep.subr.mxu0 0.0
        %3194 = vmatpush2.msra.mxu0 0.0
        %3195 = vmatprep.subr.mxu0 0.0
        %3196 = vmatpush2.msra.mxu0 0.0
        %3197 = vmatprep.subr.mxu0 0.0
        %3198 = vmatpush2.msra.mxu0 0.0
        %3199 = vmatprep.subr.mxu0 0.0
        %3200 = vmatpush2.msra.mxu0 0.0
        %3201 = vmatprep.subr.mxu0 0.0
        %3202 = vmatpush2.msra.mxu0 0.0
        %3203 = vmatprep.subr.mxu0 0.0
        %3204 = vmatpush2.msra.mxu0 0.0
        %3205 = vmatprep.subr.mxu0 0.0
        %3206 = vmatpush2.msra.mxu0 0.0
        %3207 = vmatprep.subr.mxu0 0.0
        %3208 = vmatpush2.msra.mxu0 0.0
        %3209 = vmatprep.subr.mxu0 0.0
        %3210 = vmatpush2.msra.mxu0 0.0
        %3211 = vmatprep.subr.mxu0 0.0
        %3212 = vmatpush2.msra.mxu0 0.0
        %3213 = vmatprep.subr.mxu0 0.0
        %3214 = vmatpush2.msra.mxu0 0.0
        %3215 = vmatprep.subr.mxu0 0.0
        %3216 = vmatpush2.msra.mxu0 0.0
        %3217 = vmatprep.subr.mxu0 0.0
        %3218 = vmatpush2.msra.mxu0 0.0
        %3219 = vmatprep.subr.mxu0 0.0
        %3220 = vmatpush2.msra.mxu0 0.0
        %3221 = vmatprep.subr.mxu0 0.0
        %3222 = vmatpush2.msra.mxu0 0.0
        %3223 = vmatprep.subr.mxu0 0.0
        %3224 = vmatpush2.msra.mxu0 0.0
        %3225 = vmatprep.mubr.f32.mxu0 0.0
        %3226 = vmatmul.mubr.f32.gmra.mxu0 %v3153
        %v3227 = vpop.f32.mrf.mxu0
        %v3228 = vadd.f32 0.0, %v3227
        %v3229 = vpop.f32.mrf.mxu0
        %v3230 = vadd.f32 0.0, %v3229
        %3231 = vdwg.mxu0
        %3232 = vmatprep.subr.mxu0 0.0
        %3233 = vmatpush1.msra.mxu0 0.0
        %3234 = vmatprep.subr.mxu0 0.0
        %3235 = vmatpush1.msra.mxu0 0.0
        %3236 = vmatprep.subr.mxu0 0.0
        %3237 = vmatpush1.msra.mxu0 0.0
        %3238 = vmatprep.subr.mxu0 0.0
        %3239 = vmatpush1.msra.mxu0 0.0
        %3240 = vmatprep.subr.mxu0 0.0
        %3241 = vmatpush1.msra.mxu0 0.0
        %3242 = vmatprep.subr.mxu0 0.0
        %3243 = vmatpush1.msra.mxu0 0.0
        %3244 = vmatprep.subr.mxu0 0.0
        %3245 = vmatpush1.msra.mxu0 0.0
        %3246 = vmatprep.subr.mxu0 0.0
        %3247 = vmatpush1.msra.mxu0 0.0
        %3248 = vmatprep.subr.mxu0 0.0
        %3249 = vmatpush1.msra.mxu0 0.0
        %3250 = vmatprep.subr.mxu0 0.0
        %3251 = vmatpush1.msra.mxu0 0.0
        %3252 = vmatprep.subr.mxu0 0.0
        %3253 = vmatpush1.msra.mxu0 0.0
        %3254 = vmatprep.subr.mxu0 0.0
        %3255 = vmatpush1.msra.mxu0 0.0
        %3256 = vmatprep.subr.mxu0 0.0
        %3257 = vmatpush1.msra.mxu0 0.0
        %3258 = vmatprep.subr.mxu0 0.0
        %3259 = vmatpush1.msra.mxu0 0.0
        %3260 = vmatprep.subr.mxu0 0.0
        %3261 = vmatpush1.msra.mxu0 0.0
        %3262 = vmatprep.subr.mxu0 0.0
        %3263 = vmatpush1.msra.mxu0 %v3159
        %3264 = vmatprep.subr.mxu0 0.0
        %3265 = vmatpush2.msra.mxu0 0.0
        %3266 = vmatprep.subr.mxu0 0.0
        %3267 = vmatpush2.msra.mxu0 0.0
        %3268 = vmatprep.subr.mxu0 0.0
        %3269 = vmatpush2.msra.mxu0 0.0
        %3270 = vmatprep.subr.mxu0 0.0
        %3271 = vmatpush2.msra.mxu0 0.0
        %3272 = vmatprep.subr.mxu0 0.0
        %3273 = vmatpush2.msra.mxu0 0.0
        %3274 = vmatprep.subr.mxu0 0.0
        %3275 = vmatpush2.msra.mxu0 0.0
        %3276 = vmatprep.subr.mxu0 0.0
        %3277 = vmatpush2.msra.mxu0 0.0
        %3278 = vmatprep.subr.mxu0 0.0
        %3279 = vmatpush2.msra.mxu0 0.0
        %3280 = vmatprep.subr.mxu0 0.0
        %3281 = vmatpush2.msra.mxu0 0.0
        %3282 = vmatprep.subr.mxu0 0.0
        %3283 = vmatpush2.msra.mxu0 0.0
        %3284 = vmatprep.subr.mxu0 0.0
        %3285 = vmatpush2.msra.mxu0 0.0
        %3286 = vmatprep.subr.mxu0 0.0
        %3287 = vmatpush2.msra.mxu0 0.0
        %3288 = vmatprep.subr.mxu0 0.0
        %3289 = vmatpush2.msra.mxu0 0.0
        %3290 = vmatprep.subr.mxu0 0.0
        %3291 = vmatpush2.msra.mxu0 0.0
        %3292 = vmatprep.subr.mxu0 0.0
        %3293 = vmatpush2.msra.mxu0 0.0
        %3294 = vmatprep.subr.mxu0 0.0
        %3295 = vmatpush2.msra.mxu0 0.0
        %3296 = vmatprep.mubr.f32.mxu0 0.0
        %3297 = vmatmul.mubr.f32.gmra.mxu0 %v3153
        %v3298 = vpop.f32.mrf.mxu0
        %v3299 = vadd.f32 0.0, %v3298
        %v3300 = vpop.f32.mrf.mxu0
        %3301 = vdwg.mxu0
        %v3302 = vadd.f32 %v3138, %v3228
        %v3303 = vadd.f32 %v3139, %v3230
        %v3304 = vadd.f32 %v3140, %v3299
        %3305 = vst [vmem:[#allocation3] sm:$0xff] %v3302
        %3306 = vst [vmem:[#allocation3 + $0x8] sm:$0xff] %v3303
        %3307 = vst.msk [vmem:[#allocation3 + $0x10] sm:$0xff] %vm281, %v3304
        %v3308 = vld [vmem:[#allocation2 + $0x4] sm:$0xff]
        %v3309 = vld [vmem:[#allocation2 + $0xc] sm:$0xf]
        %s3310 = scalar_lea.vmem %s3, 64
        %v3311 = vld [vmem:[%s3310] sm:$0xff]
        %v3312 = vld [vmem:[#allocation3] sm:$0xff]
        %v3313 = vld [vmem:[#allocation3 + $0x8] sm:$0xff]
        %v3314 = vld [vmem:[#allocation3 + $0x10] sm:$0xff]
        %v3317 = vcombine.high %v3308, %v3308
        %3318 = vrot.lane.b32.xlu0 %v3308, 109
        %v3319 = vpop.permute.xlu0 %3318
        %3320 = vrot.lane.b32.xlu0 %v3317, 109
        %v3321 = vpop.permute.xlu0 %3320
        %3322 = vrot.lane.b32.xlu0 %v3309, 109
        %v3323 = vpop.permute.xlu0 %3322
        %v3324 = vsel %vm995, %v3319, %v3321
        %v3325 = vsel %vm995, %v3321, %v3323
        %v3327 = vsel %vm291, %v3311, 0
        %v3329 = vsel %vm295, %v3324, 0
        %v3331 = vsel %vm295, %v3325, 0
        %v3333 = vsel %vm295, %v3323, 0
        %3335 = vmatprep.subr.mxu0 0.0
        %3336 = vmatpush1.msra.mxu0 0.0
        %3337 = vmatprep.subr.mxu0 0.0
        %3338 = vmatpush1.msra.mxu0 0.0
        %3339 = vmatprep.subr.mxu0 0.0
        %3340 = vmatpush1.msra.mxu0 0.0
        %3341 = vmatprep.subr.mxu0 0.0
        %3342 = vmatpush1.msra.mxu0 0.0
        %3343 = vmatprep.subr.mxu0 0.0
        %3344 = vmatpush1.msra.mxu0 0.0
        %3345 = vmatprep.subr.mxu0 0.0
        %3346 = vmatpush1.msra.mxu0 0.0
        %3347 = vmatprep.subr.mxu0 0.0
        %3348 = vmatpush1.msra.mxu0 0.0
        %3349 = vmatprep.subr.mxu0 0.0
        %3350 = vmatpush1.msra.mxu0 0.0
        %3351 = vmatprep.subr.mxu0 0.0
        %3352 = vmatpush1.msra.mxu0 0.0
        %3353 = vmatprep.subr.mxu0 0.0
        %3354 = vmatpush1.msra.mxu0 0.0
        %3355 = vmatprep.subr.mxu0 0.0
        %3356 = vmatpush1.msra.mxu0 0.0
        %3357 = vmatprep.subr.mxu0 0.0
        %3358 = vmatpush1.msra.mxu0 0.0
        %3359 = vmatprep.subr.mxu0 0.0
        %3360 = vmatpush1.msra.mxu0 0.0
        %3361 = vmatprep.subr.mxu0 0.0
        %3362 = vmatpush1.msra.mxu0 0.0
        %3363 = vmatprep.subr.mxu0 0.0
        %3364 = vmatpush1.msra.mxu0 0.0
        %3365 = vmatprep.subr.mxu0 %v3331
        %3366 = vmatpush1.msra.mxu0 %v3329
        %3367 = vmatprep.subr.mxu0 0.0
        %3368 = vmatpush2.msra.mxu0 0.0
        %3369 = vmatprep.subr.mxu0 0.0
        %3370 = vmatpush2.msra.mxu0 0.0
        %3371 = vmatprep.subr.mxu0 0.0
        %3372 = vmatpush2.msra.mxu0 0.0
        %3373 = vmatprep.subr.mxu0 0.0
        %3374 = vmatpush2.msra.mxu0 0.0
        %3375 = vmatprep.subr.mxu0 0.0
        %3376 = vmatpush2.msra.mxu0 0.0
        %3377 = vmatprep.subr.mxu0 0.0
        %3378 = vmatpush2.msra.mxu0 0.0
        %3379 = vmatprep.subr.mxu0 0.0
        %3380 = vmatpush2.msra.mxu0 0.0
        %3381 = vmatprep.subr.mxu0 0.0
        %3382 = vmatpush2.msra.mxu0 0.0
        %3383 = vmatprep.subr.mxu0 0.0
        %3384 = vmatpush2.msra.mxu0 0.0
        %3385 = vmatprep.subr.mxu0 0.0
        %3386 = vmatpush2.msra.mxu0 0.0
        %3387 = vmatprep.subr.mxu0 0.0
        %3388 = vmatpush2.msra.mxu0 0.0
        %3389 = vmatprep.subr.mxu0 0.0
        %3390 = vmatpush2.msra.mxu0 0.0
        %3391 = vmatprep.subr.mxu0 0.0
        %3392 = vmatpush2.msra.mxu0 0.0
        %3393 = vmatprep.subr.mxu0 0.0
        %3394 = vmatpush2.msra.mxu0 0.0
        %3395 = vmatprep.subr.mxu0 0.0
        %3396 = vmatpush2.msra.mxu0 0.0
        %3397 = vmatprep.subr.mxu0 0.0
        %3398 = vmatpush2.msra.mxu0 0.0
        %3399 = vmatprep.mubr.f32.mxu0 0.0
        %3400 = vmatmul.mubr.f32.gmra.mxu0 %v3327
        %v3401 = vpop.f32.mrf.mxu0
        %v3402 = vadd.f32 0.0, %v3401
        %v3403 = vpop.f32.mrf.mxu0
        %v3404 = vadd.f32 0.0, %v3403
        %3405 = vdwg.mxu0
        %3406 = vmatprep.subr.mxu0 0.0
        %3407 = vmatpush1.msra.mxu0 0.0
        %3408 = vmatprep.subr.mxu0 0.0
        %3409 = vmatpush1.msra.mxu0 0.0
        %3410 = vmatprep.subr.mxu0 0.0
        %3411 = vmatpush1.msra.mxu0 0.0
        %3412 = vmatprep.subr.mxu0 0.0
        %3413 = vmatpush1.msra.mxu0 0.0
        %3414 = vmatprep.subr.mxu0 0.0
        %3415 = vmatpush1.msra.mxu0 0.0
        %3416 = vmatprep.subr.mxu0 0.0
        %3417 = vmatpush1.msra.mxu0 0.0
        %3418 = vmatprep.subr.mxu0 0.0
        %3419 = vmatpush1.msra.mxu0 0.0
        %3420 = vmatprep.subr.mxu0 0.0
        %3421 = vmatpush1.msra.mxu0 0.0
        %3422 = vmatprep.subr.mxu0 0.0
        %3423 = vmatpush1.msra.mxu0 0.0
        %3424 = vmatprep.subr.mxu0 0.0
        %3425 = vmatpush1.msra.mxu0 0.0
        %3426 = vmatprep.subr.mxu0 0.0
        %3427 = vmatpush1.msra.mxu0 0.0
        %3428 = vmatprep.subr.mxu0 0.0
        %3429 = vmatpush1.msra.mxu0 0.0
        %3430 = vmatprep.subr.mxu0 0.0
        %3431 = vmatpush1.msra.mxu0 0.0
        %3432 = vmatprep.subr.mxu0 0.0
        %3433 = vmatpush1.msra.mxu0 0.0
        %3434 = vmatprep.subr.mxu0 0.0
        %3435 = vmatpush1.msra.mxu0 0.0
        %3436 = vmatprep.subr.mxu0 0.0
        %3437 = vmatpush1.msra.mxu0 %v3333
        %3438 = vmatprep.subr.mxu0 0.0
        %3439 = vmatpush2.msra.mxu0 0.0
        %3440 = vmatprep.subr.mxu0 0.0
        %3441 = vmatpush2.msra.mxu0 0.0
        %3442 = vmatprep.subr.mxu0 0.0
        %3443 = vmatpush2.msra.mxu0 0.0
        %3444 = vmatprep.subr.mxu0 0.0
        %3445 = vmatpush2.msra.mxu0 0.0
        %3446 = vmatprep.subr.mxu0 0.0
        %3447 = vmatpush2.msra.mxu0 0.0
        %3448 = vmatprep.subr.mxu0 0.0
        %3449 = vmatpush2.msra.mxu0 0.0
        %3450 = vmatprep.subr.mxu0 0.0
        %3451 = vmatpush2.msra.mxu0 0.0
        %3452 = vmatprep.subr.mxu0 0.0
        %3453 = vmatpush2.msra.mxu0 0.0
        %3454 = vmatprep.subr.mxu0 0.0
        %3455 = vmatpush2.msra.mxu0 0.0
        %3456 = vmatprep.subr.mxu0 0.0
        %3457 = vmatpush2.msra.mxu0 0.0
        %3458 = vmatprep.subr.mxu0 0.0
        %3459 = vmatpush2.msra.mxu0 0.0
        %3460 = vmatprep.subr.mxu0 0.0
        %3461 = vmatpush2.msra.mxu0 0.0
        %3462 = vmatprep.subr.mxu0 0.0
        %3463 = vmatpush2.msra.mxu0 0.0
        %3464 = vmatprep.subr.mxu0 0.0
        %3465 = vmatpush2.msra.mxu0 0.0
        %3466 = vmatprep.subr.mxu0 0.0
        %3467 = vmatpush2.msra.mxu0 0.0
        %3468 = vmatprep.subr.mxu0 0.0
        %3469 = vmatpush2.msra.mxu0 0.0
        %3470 = vmatprep.mubr.f32.mxu0 0.0
        %3471 = vmatmul.mubr.f32.gmra.mxu0 %v3327
        %v3472 = vpop.f32.mrf.mxu0
        %v3473 = vadd.f32 0.0, %v3472
        %v3474 = vpop.f32.mrf.mxu0
        %3475 = vdwg.mxu0
        %v3476 = vadd.f32 %v3312, %v3402
        %v3477 = vadd.f32 %v3313, %v3404
        %v3478 = vadd.f32 %v3314, %v3473
        %3479 = vst [vmem:[#allocation3] sm:$0xff] %v3476
        %3480 = vst [vmem:[#allocation3 + $0x8] sm:$0xff] %v3477
        %3481 = vst.msk [vmem:[#allocation3 + $0x10] sm:$0xff] %vm281, %v3478
        %v3482 = vld [vmem:[#allocation3] sm:$0xff]
        %v3483 = vld [vmem:[#allocation3 + $0x8] sm:$0xff]
        %v3484 = vld [vmem:[#allocation3 + $0x10] sm:$0xff]
        %v3485 = vld [vmem:[%s4] sm:$0xff]
        %3487 = vset.pattern.permute.xlu0 0
        %3488 = vperm.xlu0 %3487, %v3485
        %v3489 = vpop.permute.xlu0 %3488
        %v3491 = vadd.f32 %v3482, %v3489
        %v3492 = vadd.f32 %v3483, %v3489
        %v3493 = vadd.f32 %v3484, %v3489
        %vm3494 = vcmp.ge.f32.partialorder %v3491, 0.0
        %vm3495 = vcmp.ge.f32.partialorder %v3492, 0.0
        %vm3496 = vcmp.ge.f32.partialorder %v3493, 0.0
        %v3497 = vmul.f32 %v3491, 0.2
        %v3498 = vmul.f32 %v3492, 0.2
        %v3499 = vmul.f32 %v3493, 0.2
        %v3500 = vsel %vm3494, %v3491, %v3497
        %v3501 = vsel %vm3495, %v3492, %v3498
        %v3502 = vsel %vm3496, %v3493, %v3499
        %v3503 = vld [vmem:[%s6] sm:$0xff]
        %v3504 = vld [vmem:[%s6 + $0x8] sm:$0xff]
        %v3505 = vld [vmem:[%s6 + $0x10] sm:$0xff]
        %v3506 = vld [vmem:[%s6 + $0x18] sm:$0xff]
        %v3507 = vld [vmem:[%s6 + $0x20] sm:$0xff]
        %v3508 = vld [vmem:[%s6 + $0x28] sm:$0xff]
        %v3509 = vld [vmem:[%s6 + $0x30] sm:$0xff]
        %v3510 = vld [vmem:[%s6 + $0x38] sm:$0xff]
        %v3511 = vld [vmem:[%s6 + $0x40] sm:$0xff]
        %v3512 = vld [vmem:[%s6 + $0x48] sm:$0xff]
        %v3513 = vld [vmem:[%s6 + $0x50] sm:$0xff]
        %v3514 = vld [vmem:[%s6 + $0x58] sm:$0xff]
        %v3515 = vld [vmem:[%s6 + $0x60] sm:$0xff]
        %v3516 = vld [vmem:[%s6 + $0x68] sm:$0xff]
        %v3517 = vld [vmem:[%s6 + $0x70] sm:$0xff]
        %v3518 = vld [vmem:[%s6 + $0x78] sm:$0xff]
        %v3519 = vld [vmem:[%s6 + $0x80] sm:$0xff]
        %v3520 = vld [vmem:[%s6 + $0x88] sm:$0xff]
        %v3521 = vld [vmem:[%s6 + $0x90] sm:$0xff]
        %v3522 = vld [vmem:[%s6 + $0x98] sm:$0xff]
        %v3523 = vld [vmem:[%s6 + $0xa0] sm:$0xff]
        %v3524 = vld [vmem:[%s6 + $0xa8] sm:$0xff]
        %v3525 = vld [vmem:[%s6 + $0xb0] sm:$0xff]
        %v3526 = vld [vmem:[%s6 + $0xb8] sm:$0xff]
        %v3527 = vld [vmem:[%s6 + $0xc0] sm:$0xff]
        %v3528 = vld [vmem:[%s6 + $0xc8] sm:$0xff]
        %v3529 = vld [vmem:[%s6 + $0xd0] sm:$0xff]
        %v3530 = vld [vmem:[%s6 + $0xd8] sm:$0xff]
        %v3531 = vld [vmem:[%s6 + $0xe0] sm:$0xff]
        %v3532 = vld [vmem:[%s6 + $0xe8] sm:$0xff]
        %v3533 = vld [vmem:[%s6 + $0xf0] sm:$0xff]
        %v3534 = vld [vmem:[%s6 + $0xf8] sm:$0xff]
        %v3535 = vld [vmem:[%s6 + $0x100] sm:$0xff]
        %v3536 = vld [vmem:[%s6 + $0x108] sm:$0xff]
        %v3537 = vld [vmem:[%s6 + $0x110] sm:$0xff]
        %v3538 = vld [vmem:[%s6 + $0x118] sm:$0xff]
        %v3540 = vsel %vm281, %v3502, 0
        %3542 = vmatprep.subr.mxu0 0.0
        %3543 = vmatpush1.msra.mxu0 %v3518
        %3544 = vmatprep.subr.mxu0 0.0
        %3545 = vmatpush1.msra.mxu0 %v3517
        %3546 = vmatprep.subr.mxu0 0.0
        %3547 = vmatpush1.msra.mxu0 %v3516
        %3548 = vmatprep.subr.mxu0 0.0
        %3549 = vmatpush1.msra.mxu0 %v3515
        %3550 = vmatprep.subr.mxu0 0.0
        %3551 = vmatpush1.msra.mxu0 %v3514
        %3552 = vmatprep.subr.mxu0 0.0
        %3553 = vmatpush1.msra.mxu0 %v3513
        %3554 = vmatprep.subr.mxu0 0.0
        %3555 = vmatpush1.msra.mxu0 %v3512
        %3556 = vmatprep.subr.mxu0 0.0
        %3557 = vmatpush1.msra.mxu0 %v3511
        %3558 = vmatprep.subr.mxu0 0.0
        %3559 = vmatpush1.msra.mxu0 %v3510
        %3560 = vmatprep.subr.mxu0 0.0
        %3561 = vmatpush1.msra.mxu0 %v3509
        %3562 = vmatprep.subr.mxu0 0.0
        %3563 = vmatpush1.msra.mxu0 %v3508
        %3564 = vmatprep.subr.mxu0 0.0
        %3565 = vmatpush1.msra.mxu0 %v3507
        %3566 = vmatprep.subr.mxu0 0.0
        %3567 = vmatpush1.msra.mxu0 %v3506
        %3568 = vmatprep.subr.mxu0 0.0
        %3569 = vmatpush1.msra.mxu0 %v3505
        %3570 = vmatprep.subr.mxu0 0.0
        %3571 = vmatpush1.msra.mxu0 %v3504
        %3572 = vmatprep.subr.mxu0 0.0
        %3573 = vmatpush1.msra.mxu0 %v3503
        %3574 = vmatprep.subr.mxu0 0.0
        %3575 = vmatpush2.msra.mxu0 %v3534
        %3576 = vmatprep.subr.mxu0 0.0
        %3577 = vmatpush2.msra.mxu0 %v3533
        %3578 = vmatprep.subr.mxu0 0.0
        %3579 = vmatpush2.msra.mxu0 %v3532
        %3580 = vmatprep.subr.mxu0 0.0
        %3581 = vmatpush2.msra.mxu0 %v3531
        %3582 = vmatprep.subr.mxu0 0.0
        %3583 = vmatpush2.msra.mxu0 %v3530
        %3584 = vmatprep.subr.mxu0 0.0
        %3585 = vmatpush2.msra.mxu0 %v3529
        %3586 = vmatprep.subr.mxu0 0.0
        %3587 = vmatpush2.msra.mxu0 %v3528
        %3588 = vmatprep.subr.mxu0 0.0
        %3589 = vmatpush2.msra.mxu0 %v3527
        %3590 = vmatprep.subr.mxu0 0.0
        %3591 = vmatpush2.msra.mxu0 %v3526
        %3592 = vmatprep.subr.mxu0 0.0
        %3593 = vmatpush2.msra.mxu0 %v3525
        %3594 = vmatprep.subr.mxu0 0.0
        %3595 = vmatpush2.msra.mxu0 %v3524
        %3596 = vmatprep.subr.mxu0 0.0
        %3597 = vmatpush2.msra.mxu0 %v3523
        %3598 = vmatprep.subr.mxu0 0.0
        %3599 = vmatpush2.msra.mxu0 %v3522
        %3600 = vmatprep.subr.mxu0 0.0
        %3601 = vmatpush2.msra.mxu0 %v3521
        %3602 = vmatprep.subr.mxu0 0.0
        %3603 = vmatpush2.msra.mxu0 %v3520
        %3604 = vmatprep.subr.mxu0 0.0
        %3605 = vmatpush2.msra.mxu0 %v3519
        %3606 = vmatprep.mubr.f32.mxu0 %v3501
        %3607 = vmatmul.mubr.f32.gmra.mxu0 %v3500
        %v3608 = vpop.f32.mrf.mxu0
        %v3609 = vadd.f32 0.0, %v3608
        %v3610 = vpop.f32.mrf.mxu0
        %3611 = vdwg.mxu0
        %3612 = vmatprep.subr.mxu0 0.0
        %3613 = vmatpush1.msra.mxu0 0.0
        %3614 = vmatprep.subr.mxu0 0.0
        %3615 = vmatpush1.msra.mxu0 0.0
        %3616 = vmatprep.subr.mxu0 0.0
        %3617 = vmatpush1.msra.mxu0 0.0
        %3618 = vmatprep.subr.mxu0 0.0
        %3619 = vmatpush1.msra.mxu0 0.0
        %3620 = vmatprep.subr.mxu0 0.0
        %3621 = vmatpush1.msra.mxu0 0.0
        %3622 = vmatprep.subr.mxu0 0.0
        %3623 = vmatpush1.msra.mxu0 0.0
        %3624 = vmatprep.subr.mxu0 0.0
        %3625 = vmatpush1.msra.mxu0 0.0
        %3626 = vmatprep.subr.mxu0 0.0
        %3627 = vmatpush1.msra.mxu0 0.0
        %3628 = vmatprep.subr.mxu0 0.0
        %3629 = vmatpush1.msra.mxu0 0.0
        %3630 = vmatprep.subr.mxu0 0.0
        %3631 = vmatpush1.msra.mxu0 0.0
        %3632 = vmatprep.subr.mxu0 0.0
        %3633 = vmatpush1.msra.mxu0 0.0
        %3634 = vmatprep.subr.mxu0 0.0
        %3635 = vmatpush1.msra.mxu0 0.0
        %3636 = vmatprep.subr.mxu0 0.0
        %3637 = vmatpush1.msra.mxu0 %v3538
        %3638 = vmatprep.subr.mxu0 0.0
        %3639 = vmatpush1.msra.mxu0 %v3537
        %3640 = vmatprep.subr.mxu0 0.0
        %3641 = vmatpush1.msra.mxu0 %v3536
        %3642 = vmatprep.subr.mxu0 0.0
        %3643 = vmatpush1.msra.mxu0 %v3535
        %3644 = vmatprep.subr.mxu0 0.0
        %3645 = vmatpush2.msra.mxu0 0.0
        %3646 = vmatprep.subr.mxu0 0.0
        %3647 = vmatpush2.msra.mxu0 0.0
        %3648 = vmatprep.subr.mxu0 0.0
        %3649 = vmatpush2.msra.mxu0 0.0
        %3650 = vmatprep.subr.mxu0 0.0
        %3651 = vmatpush2.msra.mxu0 0.0
        %3652 = vmatprep.subr.mxu0 0.0
        %3653 = vmatpush2.msra.mxu0 0.0
        %3654 = vmatprep.subr.mxu0 0.0
        %3655 = vmatpush2.msra.mxu0 0.0
        %3656 = vmatprep.subr.mxu0 0.0
        %3657 = vmatpush2.msra.mxu0 0.0
        %3658 = vmatprep.subr.mxu0 0.0
        %3659 = vmatpush2.msra.mxu0 0.0
        %3660 = vmatprep.subr.mxu0 0.0
        %3661 = vmatpush2.msra.mxu0 0.0
        %3662 = vmatprep.subr.mxu0 0.0
        %3663 = vmatpush2.msra.mxu0 0.0
        %3664 = vmatprep.subr.mxu0 0.0
        %3665 = vmatpush2.msra.mxu0 0.0
        %3666 = vmatprep.subr.mxu0 0.0
        %3667 = vmatpush2.msra.mxu0 0.0
        %3668 = vmatprep.subr.mxu0 0.0
        %3669 = vmatpush2.msra.mxu0 0.0
        %3670 = vmatprep.subr.mxu0 0.0
        %3671 = vmatpush2.msra.mxu0 0.0
        %3672 = vmatprep.subr.mxu0 0.0
        %3673 = vmatpush2.msra.mxu0 0.0
        %3674 = vmatprep.subr.mxu0 0.0
        %3675 = vmatpush2.msra.mxu0 0.0
        %3676 = vmatprep.mubr.f32.mxu0 0.0
        %3677 = vmatmul.mubr.f32.gmra.mxu0 %v3540
        %v3678 = vpop.f32.mrf.mxu0
        %v3679 = vadd.f32 %v3609, %v3678
        %v3680 = vpop.f32.mrf.mxu0
        %3681 = vdwg.mxu0
        %vm3682 = vcmask 523264
        %3683 = vst.msk [vmem:[%s271] sm:$0xff] %vm3682, %v3679
        %s3684 = sand.u32 %s181, 1
        %s3685 = scalar_lea.sflag [#allocation5], %s3684
        %s3686 = sand.u32 %s181, 1
        %s3687 = smul.addr %s3686, 8
        %s3688 = scalar_lea.vmem [#allocation4], %s3687
        // Predicated region
        $region49: #{tpu_custom_call.1} parent=47 // pred_check
          %p3689 = pneg %p191
        $region50: #{tpu_custom_call.1} parent=47 // pred_check_branch
          %3691 = sbr.rel (%p3689) target = $region52
        $region51: #{tpu_custom_call.1} parent=47 // pred_region
          %s3693 = ssub.s32 128, 128
          %3694 = vsyncadd %s3685, %s3693
          %s3695 = smul.addr %s21, 128
          %s3696 = scalar_lea.hbm %s7, %s3695
          %s3698 = sshll.u32 %s3688, 4
          %s3699 = int_to_ptr.vmem [resolvable:$true] %s3698
          %3701 = dma.vmem_to_hbm [thread:$0]  %s3699, 128, %s3696, %s3685
        $region52: #{tpu_custom_call.1} parent=47 // pred_fallthru
          _
      $region48: #{tpu_custom_call.1} parent=5 // pred_fallthru
        _
      %p3702 = scmp.le.s32.totalorder 2, %s16
      // Predicated region
      $region53: #{tpu_custom_call.1} parent=5 // pred_check
        %p3703 = pneg %p3702
      $region54: #{tpu_custom_call.1} parent=5 // pred_check_branch
        %3705 = sbr.rel (%p3703) target = $region56
      $region55: #{tpu_custom_call.1} parent=5 // pred_region
        %s3706 = ssub.s32 %s16, 2
        // Predicated region
        $region57: #{tpu_custom_call.1} parent=55 // pred_check
          %p3707 = pneg %p197
        $region58: #{tpu_custom_call.1} parent=55 // pred_check_branch
          %3709 = sbr.rel (%p3707) target = $region60
        $region59: #{tpu_custom_call.1} parent=55 // pred_region
          %s3710 = sand.u32 %s182, 1
          %s3711 = scalar_lea.sflag [#allocation5], %s3710
          %s3712 = sand.u32 %s182, 1
          %s3713 = smul.addr %s3712, 8
          %s3714 = scalar_lea.vmem [#allocation4], %s3713
          %3715 = dma.done %s3711, 128
        $region60: #{tpu_custom_call.1} parent=55 // pred_fallthru
          _
      $region56: #{tpu_custom_call.1} parent=5 // pred_fallthru
        _
    $region6: #{tpu_custom_call.1} parent=1 // loop_footer
      %s20 = sadd.s32 1, %s16
    $region7: #{tpu_custom_call.1} parent=1 // loop_footer_branch
      %15 = sbr.rel target = $region3
    $region8: #{tpu_custom_call.1} parent=1 // loop_exit
      _
    %3716 = vsyncpa [#allocation5], 1
    %s3717 = scalar_lea.sflag [#allocation5], 1
    %3718 = vsyncpa %s3717, 1

</llo_original>
